<compile_context>
chip_gen: v7x
topology: tpu7x:2x2x1
jax: 0.10.0
libtpu: 0.0.40
codegen_flags: <defaults>
</compile_context>

<pallas_src>
import functools

import jax
import jax.numpy as jnp
from jax.experimental import pallas as pl
from jax.experimental.pallas import tpu as pltpu


# ---------------------------------------------------------------------------
# Pallas kernel: one ConvLSTM *layer*, full time recurrence inside the body.
# Grid = (B,), batch axis "parallel".
# ---------------------------------------------------------------------------
def _convlstm_layer_kernel(x_ref, w_ref, b_ref,          # inputs
                           h_all_ref, c_out_ref,         # outputs
                           col_ref,                      # VMEM scratch (K, N)
                           *, T, H, W, kh, kw, hid, cin_pad):
    N = H * W
    ph, pw = kh // 2, kw // 2
    step = cin_pad + hid                                 # per-tap channel rows (8-aligned)

    # Zero extension of the flat (row-major) spatial axis, rounded to a lane multiple
    # so the concat below is vreg-aligned.  Row over/underflow of a tap window then
    # reads zeros "for free"; only horizontal (column) wrap needs masking.
    padl = ((ph * W + pw + 127) // 128) * 128
    zext = jnp.zeros((step, padl), jnp.float32)

    # Column-validity masks (only depend on the horizontal tap offset), shape (1, N).
    xcol = jax.lax.broadcasted_iota(jnp.int32, (1, N), 1) % W
    col_masks = [((xcol + (dw - pw)) >= 0) & ((xcol + (dw - pw)) < W)
                 for dw in range(kw)]

    # Row mask for the fused gate nonlinearity: rows [0, 3*hid) are sigmoid gates.
    row = jax.lax.broadcasted_iota(jnp.int32, (4 * hid, 1), 0)
    is_sig = row < 3 * hid
    pre_scale = jnp.where(is_sig, jnp.float32(0.5), jnp.float32(1.0))

    def step_fn(t, carry):
        h, c = carry
        x_t = x_ref[t]                                   # (cin_pad, N)
        combined = jnp.concatenate([x_t, h], axis=0)     # (step, N), 8-aligned concat
        ext = jnp.concatenate([zext, combined, zext], axis=1)   # (step, N + 2*padl)

        # im2col: kh*kw full-lane-width, sublane-aligned copies into the (K, N) slab.
        for dh in range(kh):
            for dw in range(kw):
                tap = dh * kw + dw
                start = padl + (dh - ph) * W + (dw - pw)
                win = ext[:, start:start + N]            # lane-shifted window
                if dw != pw:                             # horizontal wrap -> zero
                    win = jnp.where(col_masks[dw], win, 0.0)
                col_ref[tap * step:(tap + 1) * step, :] = win

        # Whole conv for all four gates = ONE MXU matmul; (4*hid, N) is lane-dense
        # and store-ready.
        gates = jnp.dot(w_ref[...], col_ref[...],
                        preferred_element_type=jnp.float32) + b_ref[...]

        # Fused gate nonlinearities: single tanh pass over the packed gate block,
        # sigmoid(z) == 0.5*tanh(0.5*z) + 0.5 for the i/f/o rows.
        t_all = jnp.tanh(gates * pre_scale)
        acts = jnp.where(is_sig, 0.5 * t_all + 0.5, t_all)
        i_g = acts[0 * hid:1 * hid]
        f_g = acts[1 * hid:2 * hid]
        o_g = acts[2 * hid:3 * hid]
        g_g = acts[3 * hid:4 * hid]

        c_new = f_g * c + i_g * g_g
        h_new = o_g * jnp.tanh(c_new)
        h_all_ref[t] = h_new                             # lane-dense (hid, N) store
        return h_new, c_new

    h0 = jnp.zeros((hid, N), jnp.float32)
    c0 = jnp.zeros((hid, N), jnp.float32)
    _, c_fin = jax.lax.fori_loop(0, T, step_fn, (h0, c0))
    c_out_ref[...] = c_fin


# ---------------------------------------------------------------------------
# One ConvLSTM layer: channel-pad x to an 8-multiple, then a single pallas_call.
# ---------------------------------------------------------------------------
def _convlstm_layer(x, w, b, kernel_size, hid, H, W):
    """x: (B, T, cin, N) channels-first, spatial-flattened -> (h_all, c_last)."""
    B, T, cin, N = x.shape
    kh, kw = kernel_size
    cin_pad = ((cin + 7) // 8) * 8
    if cin_pad != cin:
        x = jnp.pad(x, ((0, 0), (0, 0), (0, cin_pad - cin), (0, 0)))
    step = cin_pad + hid
    K = kh * kw * step

    kernel = functools.partial(_convlstm_layer_kernel, T=T, H=H, W=W, kh=kh, kw=kw,
                               hid=hid, cin_pad=cin_pad)

    h_all, c_last = pl.pallas_call(
        kernel,
        out_shape=(jax.ShapeDtypeStruct((B, T, hid, N), jnp.float32),
                   jax.ShapeDtypeStruct((B, hid, N), jnp.float32)),
        grid=(B,),
        in_specs=[
            # Whole (T, cin_pad, N) slab per batch element: one large DMA, time loop
            # runs in-kernel.
            pl.BlockSpec((None, T, cin_pad, N), lambda bb: (bb, 0, 0, 0)),
            # Pre-flattened conv weight (4*hid, K): constant block, stays in VMEM.
            pl.BlockSpec((4 * hid, K), lambda bb: (0, 0)),
            pl.BlockSpec((4 * hid, 1), lambda bb: (0, 0)),
        ],
        out_specs=(
            pl.BlockSpec((None, T, hid, N), lambda bb: (bb, 0, 0, 0)),
            pl.BlockSpec((None, hid, N), lambda bb: (bb, 0, 0)),
        ),
        scratch_shapes=[pltpu.VMEM((K, N), jnp.float32)],   # im2col slab
        compiler_params=pltpu.CompilerParams(
            dimension_semantics=("parallel",)),
    )(x, w, b)
    return h_all, c_last


# ---------------------------------------------------------------------------
# Full ConvLSTM forward (batch_first=False, return_all_layers=False, bias=True)
# ---------------------------------------------------------------------------
@functools.partial(jax.jit, static_argnums=(2,))
def convlstm_forward(input_tensor, params, kernel_sizes):
    # input (t, b, c, h, w) -> batch-first, channels-first, spatial-flattened.
    T, B, C, H, W = input_tensor.shape
    x = jnp.transpose(input_tensor, (1, 0, 2, 3, 4)).reshape(B, T, C, H * W)

    cur = x
    hid, c_last = None, None
    for p, ksize in zip(params, kernel_sizes):
        hid = p['w'].shape[0] // 4
        cur, c_last = _convlstm_layer(cur, p['w'], p['b'], ksize, hid, H, W)

    # return_all_layers=False -> keep only the last layer.  The kernel already emits
    # NCHW-flattened order, so these are plain reshapes (no HBM transposes).
    layer_out = cur.reshape(B, T, hid, H, W)             # (b, t, c, h, w)
    h_last = layer_out[:, -1]                            # (b, c, h, w)
    c_last = c_last.reshape(B, hid, H, W)                # (b, c, h, w)
    return [layer_out], [(h_last, c_last)]


# ---------------------------------------------------------------------------
# Deterministic parameter init (PyTorch Conv2d-style uniform bounds).
# The kernel weight is pre-flattened ONCE into (4*hid, kh*kw*(cin_pad+hid)) with
# tap-major column order and zero rows for the padded x channels.
# ---------------------------------------------------------------------------
def init_params(key, input_dim, hidden_dims, kernel_sizes):
    params, ref_params = [], []
    for i, (hid, (kh, kw)) in enumerate(zip(hidden_dims, kernel_sizes)):
        cin = input_dim if i == 0 else hidden_dims[i - 1]
        cin_pad = ((cin + 7) // 8) * 8
        key, k1, k2 = jax.random.split(key, 3)
        fan_in = (cin + hid) * kh * kw
        bound = 1.0 / float(fan_in) ** 0.5
        w_pt = jax.random.uniform(k1, (4 * hid, cin + hid, kh, kw),
                                  jnp.float32, -bound, bound)      # OIHW (PyTorch)
        b_pt = jax.random.uniform(k2, (4 * hid,), jnp.float32, -bound, bound)
        # Column order per tap: [x channels, zero-padded x channels, h channels],
        # matching the in-kernel im2col row layout.
        w_x = jnp.pad(w_pt[:, :cin], ((0, 0), (0, cin_pad - cin), (0, 0), (0, 0)))
        w_cat = jnp.concatenate([w_x, w_pt[:, cin:]], axis=1)      # (4h, step, kh, kw)
        w_k = jnp.transpose(w_cat, (0, 2, 3, 1)).reshape(
            4 * hid, kh * kw * (cin_pad + hid))
        params.append({'w': w_k, 'b': b_pt.reshape(4 * hid, 1)})
        ref_params.append((w_pt, b_pt))
    return params, ref_params


# ---------------------------------------------------------------------------
# Pure-JAX reference mirroring the PyTorch forward (for correctness check)
# ---------------------------------------------------------------------------
def ref_forward(input_tensor, ref_params, kernel_sizes):
    x = jnp.transpose(input_tensor, (1, 0, 2, 3, 4))  # (b, t, c, h, w)
    B, T, _, H, W = x.shape
    cur = x
    for (w_pt, b_pt), (kh, kw) in zip(ref_params, kernel_sizes):
        hid = w_pt.shape[0] // 4
        h = jnp.zeros((B, hid, H, W), jnp.float32)
        c = jnp.zeros((B, hid, H, W), jnp.float32)
        outs = []
        for t in range(T):
            combined = jnp.concatenate([cur[:, t], h], axis=1)
            conv = jax.lax.conv_general_dilated(
                combined, w_pt, (1, 1),
                padding=((kh // 2, kh // 2), (kw // 2, kw // 2)),
                dimension_numbers=('NCHW', 'OIHW', 'NCHW'))
            conv = conv + b_pt[None, :, None, None]
            cc_i, cc_f, cc_o, cc_g = jnp.split(conv, 4, axis=1)
            i = jax.nn.sigmoid(cc_i)
            f = jax.nn.sigmoid(cc_f)
            o = jax.nn.sigmoid(cc_o)
            g = jnp.tanh(cc_g)
            c = f * c + i * g
            h = o * jnp.tanh(c)
            outs.append(h)
        cur = jnp.stack(outs, axis=1)
    return cur, (h, c)


if __name__ == "__main__":
    key = jax.random.PRNGKey(0)
    # batch_first=False -> input is (t, b, c, h, w)
    T, B, C, H, W = 8, 2, 4, 16, 16
    hidden_dims = (32, 32)
    kernel_sizes = ((3, 3), (3, 3))

    kx, kp = jax.random.split(key)
    x = jax.random.normal(kx, (T, B, C, H, W), jnp.float32)
    params, ref_params = init_params(kp, C, hidden_dims, kernel_sizes)

    layer_outputs, last_states = convlstm_forward(x, params, kernel_sizes)
    out = jax.block_until_ready(layer_outputs[-1])        # (b, t, hid, h, w)
    h_last, c_last = last_states[-1]

    # numerical check vs pure-JAX reference of the PyTorch forward
    ref_out, (ref_h, ref_c) = ref_forward(x, ref_params, kernel_sizes)
    assert out.shape == (B, T, hidden_dims[-1], H, W)
    assert jnp.allclose(out, ref_out, atol=1e-4, rtol=1e-4)
    assert jnp.allclose(h_last, ref_h, atol=1e-4, rtol=1e-4)
    assert jnp.allclose(c_last, ref_c, atol=1e-4, rtol=1e-4)

    print("KERNEL_OK")
</pallas_src>

<mosaic_0001>
module attributes {stable_mosaic.version = 11 : i64} {
  func.func @_convlstm_layer_kernel(%arg0: i32, %arg1: memref<1x8x8x256xf32, #tpu.memory_space<vmem>>, %arg2: memref<128x360xf32, #tpu.memory_space<vmem>>, %arg3: memref<128x1xf32, #tpu.memory_space<vmem>>, %arg4: memref<1x8x32x256xf32, #tpu.memory_space<vmem>>, %arg5: memref<1x32x256xf32, #tpu.memory_space<vmem>>, %arg6: memref<360x256xf32, #tpu.memory_space<vmem>>) attributes {dimension_semantics = [#tpu.dimension_semantics<parallel>], iteration_bounds = array<i64: 2>, scalar_prefetch = 0 : i64, scratch_operands = 1 : i64, tpu.core_type = #tpu.core_type<tc>, window_params = [{transform_indices = @transform_0, window_bounds = array<i64: 1, 8, 8, 256>}, {pipeline_mode = #tpu.pipeline_mode<synchronous>, transform_indices = @transform_1, window_bounds = array<i64: 128, 360>}, {pipeline_mode = #tpu.pipeline_mode<synchronous>, transform_indices = @transform_2, window_bounds = array<i64: 128, 1>}, {transform_indices = @transform_3, window_bounds = array<i64: 1, 8, 32, 256>}, {transform_indices = @transform_4, window_bounds = array<i64: 1, 32, 256>}]} {
    %cst = arith.constant 0.000000e+00 : f32
    %0 = vector.broadcast %cst : f32 to vector<40x128xf32>
    %1 = tpu.iota {dimensions = array<i32: 1>} : vector<1x256xi32>
    %c16_i32 = arith.constant 16 : i32
    %c0_i32 = arith.constant 0 : i32
    %2 = arith.cmpi eq, %c16_i32, %c0_i32 : i32
    %c1_i32 = arith.constant 1 : i32
    %3 = arith.select %2, %c1_i32, %c16_i32 : i32
    %4 = vector.broadcast %3 : i32 to vector<1x256xi32>
    %5 = arith.remsi %1, %4 : vector<1x256xi32>
    %c0_i32_0 = arith.constant 0 : i32
    %6 = vector.broadcast %c0_i32_0 : i32 to vector<1x256xi32>
    %7 = arith.cmpi ne, %5, %6 : vector<1x256xi32>
    %c0_i32_1 = arith.constant 0 : i32
    %8 = vector.broadcast %c0_i32_1 : i32 to vector<1x256xi32>
    %9 = arith.cmpi slt, %5, %8 : vector<1x256xi32>
    %c0_i32_2 = arith.constant 0 : i32
    %10 = arith.cmpi slt, %3, %c0_i32_2 : i32
    %11 = vector.broadcast %10 : i1 to vector<1x256xi1>
    %12 = vector.broadcast %11 : vector<1x256xi1> to vector<1x256xi1>
    %13 = arith.xori %9, %12 : vector<1x256xi1>
    %14 = arith.andi %13, %7 : vector<1x256xi1>
    %15 = vector.broadcast %3 : i32 to vector<1x256xi32>
    %16 = arith.addi %5, %15 : vector<1x256xi32>
    %17 = arith.select %14, %16, %5 : vector<1x256xi1>, vector<1x256xi32>
    %c-1_i32 = arith.constant -1 : i32
    %18 = vector.broadcast %c-1_i32 : i32 to vector<1x256xi32>
    %19 = arith.addi %17, %18 : vector<1x256xi32>
    %c0_i32_3 = arith.constant 0 : i32
    %20 = vector.broadcast %c0_i32_3 : i32 to vector<1x256xi32>
    %21 = arith.cmpi sge, %19, %20 : vector<1x256xi32>
    %c-1_i32_4 = arith.constant -1 : i32
    %22 = vector.broadcast %c-1_i32_4 : i32 to vector<1x256xi32>
    %23 = arith.addi %17, %22 : vector<1x256xi32>
    %c16_i32_5 = arith.constant 16 : i32
    %24 = vector.broadcast %c16_i32_5 : i32 to vector<1x256xi32>
    %25 = arith.cmpi slt, %23, %24 : vector<1x256xi32>
    %26 = arith.andi %21, %25 : vector<1x256xi1>
    %c1_i32_6 = arith.constant 1 : i32
    %27 = vector.broadcast %c1_i32_6 : i32 to vector<1x256xi32>
    %28 = arith.addi %17, %27 : vector<1x256xi32>
    %c0_i32_7 = arith.constant 0 : i32
    %29 = vector.broadcast %c0_i32_7 : i32 to vector<1x256xi32>
    %30 = arith.cmpi sge, %28, %29 : vector<1x256xi32>
    %c1_i32_8 = arith.constant 1 : i32
    %31 = vector.broadcast %c1_i32_8 : i32 to vector<1x256xi32>
    %32 = arith.addi %17, %31 : vector<1x256xi32>
    %c16_i32_9 = arith.constant 16 : i32
    %33 = vector.broadcast %c16_i32_9 : i32 to vector<1x256xi32>
    %34 = arith.cmpi slt, %32, %33 : vector<1x256xi32>
    %35 = arith.andi %30, %34 : vector<1x256xi1>
    %36 = tpu.iota {dimensions = array<i32: 0>} : vector<128x1xi32>
    %c96_i32 = arith.constant 96 : i32
    %37 = vector.broadcast %c96_i32 : i32 to vector<128x1xi32>
    %38 = arith.cmpi slt, %36, %37 : vector<128x1xi32>
    %cst_10 = arith.constant 5.000000e-01 : f32
    %cst_11 = arith.constant 1.000000e+00 : f32
    %39 = vector.broadcast %cst_10 : f32 to vector<128x1xf32>
    %40 = vector.broadcast %cst_11 : f32 to vector<128x1xf32>
    %41 = arith.select %38, %39, %40 : vector<128x1xi1>, vector<128x1xf32>
    %cst_12 = arith.constant 0.000000e+00 : f32
    %42 = vector.broadcast %cst_12 : f32 to vector<32x256xf32>
    %cst_13 = arith.constant 0.000000e+00 : f32
    %43 = vector.broadcast %cst_13 : f32 to vector<32x256xf32>
    %c0_i32_14 = arith.constant 0 : i32
    %c8_i32 = arith.constant 8 : i32
    %44 = arith.addi %c0_i32_14, %c8_i32 : i32
    %c1_i32_15 = arith.constant 1 : i32
    %45:2 = scf.for %arg7 = %c0_i32_14 to %44 step %c1_i32_15 iter_args(%arg8 = %42, %arg9 = %43) -> (vector<32x256xf32>, vector<32x256xf32>)  : i32 {
      %c0_19 = arith.constant 0 : index
      %49 = arith.index_cast %arg7 : i32 to index
      %c0_20 = arith.constant 0 : index
      %c0_21 = arith.constant 0 : index
      %50 = vector.load %arg1[%c0_19, %49, %c0_20, %c0_21] : memref<1x8x8x256xf32, #tpu.memory_space<vmem>>, vector<1x1x8x256xf32>
      %51 = vector.shape_cast %50 : vector<1x1x8x256xf32> to vector<8x256xf32>
      %52 = tpu.concatenate %51, %arg8 in 0 : vector<8x256xf32>, vector<32x256xf32> -> vector<40x256xf32>
      %53 = tpu.concatenate %0, %52, %0 in 1 : vector<40x128xf32>, vector<40x256xf32>, vector<40x128xf32> -> vector<40x512xf32>
      %54 = vector.extract_strided_slice %53 {offsets = [0, 111], sizes = [40, 256], strides = [1, 1]} : vector<40x512xf32> to vector<40x256xf32>
      %cst_22 = arith.constant 0.000000e+00 : f32
      %55 = vector.shape_cast %26 : vector<1x256xi1> to vector<1x256xi1>
      %56 = vector.broadcast %55 : vector<1x256xi1> to vector<40x256xi1>
      %57 = vector.broadcast %cst_22 : f32 to vector<40x256xf32>
      %58 = arith.select %56, %54, %57 : vector<40x256xi1>, vector<40x256xf32>
      %c0_23 = arith.constant 0 : index
      %c0_24 = arith.constant 0 : index
      %59 = vector.load %arg6[%c0_23, %c0_24] : memref<360x256xf32, #tpu.memory_space<vmem>>, vector<40x256xf32>
      tpu.vector_store %arg6[%c0_23, %c0_24], %58 {strides = array<i32>} : memref<360x256xf32, #tpu.memory_space<vmem>>, vector<40x256xf32>,
      %60 = vector.extract_strided_slice %53 {offsets = [0, 112], sizes = [40, 256], strides = [1, 1]} : vector<40x512xf32> to vector<40x256xf32>
      %c40 = arith.constant 40 : index
      %c0_25 = arith.constant 0 : index
      %61 = vector.load %arg6[%c40, %c0_25] : memref<360x256xf32, #tpu.memory_space<vmem>>, vector<40x256xf32>
      tpu.vector_store %arg6[%c40, %c0_25], %60 {strides = array<i32>} : memref<360x256xf32, #tpu.memory_space<vmem>>, vector<40x256xf32>,
      %62 = vector.extract_strided_slice %53 {offsets = [0, 113], sizes = [40, 256], strides = [1, 1]} : vector<40x512xf32> to vector<40x256xf32>
      %cst_26 = arith.constant 0.000000e+00 : f32
      %63 = vector.shape_cast %35 : vector<1x256xi1> to vector<1x256xi1>
      %64 = vector.broadcast %63 : vector<1x256xi1> to vector<40x256xi1>
      %65 = vector.broadcast %cst_26 : f32 to vector<40x256xf32>
      %66 = arith.select %64, %62, %65 : vector<40x256xi1>, vector<40x256xf32>
      %c80 = arith.constant 80 : index
      %c0_27 = arith.constant 0 : index
      %67 = vector.load %arg6[%c80, %c0_27] : memref<360x256xf32, #tpu.memory_space<vmem>>, vector<40x256xf32>
      tpu.vector_store %arg6[%c80, %c0_27], %66 {strides = array<i32>} : memref<360x256xf32, #tpu.memory_space<vmem>>, vector<40x256xf32>,
      %68 = vector.extract_strided_slice %53 {offsets = [0, 127], sizes = [40, 256], strides = [1, 1]} : vector<40x512xf32> to vector<40x256xf32>
      %cst_28 = arith.constant 0.000000e+00 : f32
      %69 = vector.shape_cast %26 : vector<1x256xi1> to vector<1x256xi1>
      %70 = vector.broadcast %69 : vector<1x256xi1> to vector<40x256xi1>
      %71 = vector.broadcast %cst_28 : f32 to vector<40x256xf32>
      %72 = arith.select %70, %68, %71 : vector<40x256xi1>, vector<40x256xf32>
      %c120 = arith.constant 120 : index
      %c0_29 = arith.constant 0 : index
      %73 = vector.load %arg6[%c120, %c0_29] : memref<360x256xf32, #tpu.memory_space<vmem>>, vector<40x256xf32>
      tpu.vector_store %arg6[%c120, %c0_29], %72 {strides = array<i32>} : memref<360x256xf32, #tpu.memory_space<vmem>>, vector<40x256xf32>,
      %74 = vector.extract_strided_slice %53 {offsets = [0, 128], sizes = [40, 256], strides = [1, 1]} : vector<40x512xf32> to vector<40x256xf32>
      %c160 = arith.constant 160 : index
      %c0_30 = arith.constant 0 : index
      %75 = vector.load %arg6[%c160, %c0_30] : memref<360x256xf32, #tpu.memory_space<vmem>>, vector<40x256xf32>
      tpu.vector_store %arg6[%c160, %c0_30], %74 {strides = array<i32>} : memref<360x256xf32, #tpu.memory_space<vmem>>, vector<40x256xf32>,
      %76 = vector.extract_strided_slice %53 {offsets = [0, 129], sizes = [40, 256], strides = [1, 1]} : vector<40x512xf32> to vector<40x256xf32>
      %cst_31 = arith.constant 0.000000e+00 : f32
      %77 = vector.shape_cast %35 : vector<1x256xi1> to vector<1x256xi1>
      %78 = vector.broadcast %77 : vector<1x256xi1> to vector<40x256xi1>
      %79 = vector.broadcast %cst_31 : f32 to vector<40x256xf32>
      %80 = arith.select %78, %76, %79 : vector<40x256xi1>, vector<40x256xf32>
      %c200 = arith.constant 200 : index
      %c0_32 = arith.constant 0 : index
      %81 = vector.load %arg6[%c200, %c0_32] : memref<360x256xf32, #tpu.memory_space<vmem>>, vector<40x256xf32>
      tpu.vector_store %arg6[%c200, %c0_32], %80 {strides = array<i32>} : memref<360x256xf32, #tpu.memory_space<vmem>>, vector<40x256xf32>,
      %82 = vector.extract_strided_slice %53 {offsets = [0, 143], sizes = [40, 256], strides = [1, 1]} : vector<40x512xf32> to vector<40x256xf32>
      %cst_33 = arith.constant 0.000000e+00 : f32
      %83 = vector.shape_cast %26 : vector<1x256xi1> to vector<1x256xi1>
      %84 = vector.broadcast %83 : vector<1x256xi1> to vector<40x256xi1>
      %85 = vector.broadcast %cst_33 : f32 to vector<40x256xf32>
      %86 = arith.select %84, %82, %85 : vector<40x256xi1>, vector<40x256xf32>
      %c240 = arith.constant 240 : index
      %c0_34 = arith.constant 0 : index
      %87 = vector.load %arg6[%c240, %c0_34] : memref<360x256xf32, #tpu.memory_space<vmem>>, vector<40x256xf32>
      tpu.vector_store %arg6[%c240, %c0_34], %86 {strides = array<i32>} : memref<360x256xf32, #tpu.memory_space<vmem>>, vector<40x256xf32>,
      %88 = vector.extract_strided_slice %53 {offsets = [0, 144], sizes = [40, 256], strides = [1, 1]} : vector<40x512xf32> to vector<40x256xf32>
      %c280 = arith.constant 280 : index
      %c0_35 = arith.constant 0 : index
      %89 = vector.load %arg6[%c280, %c0_35] : memref<360x256xf32, #tpu.memory_space<vmem>>, vector<40x256xf32>
      tpu.vector_store %arg6[%c280, %c0_35], %88 {strides = array<i32>} : memref<360x256xf32, #tpu.memory_space<vmem>>, vector<40x256xf32>,
      %90 = vector.extract_strided_slice %53 {offsets = [0, 145], sizes = [40, 256], strides = [1, 1]} : vector<40x512xf32> to vector<40x256xf32>
      %cst_36 = arith.constant 0.000000e+00 : f32
      %91 = vector.shape_cast %35 : vector<1x256xi1> to vector<1x256xi1>
      %92 = vector.broadcast %91 : vector<1x256xi1> to vector<40x256xi1>
      %93 = vector.broadcast %cst_36 : f32 to vector<40x256xf32>
      %94 = arith.select %92, %90, %93 : vector<40x256xi1>, vector<40x256xf32>
      %c320 = arith.constant 320 : index
      %c0_37 = arith.constant 0 : index
      %95 = vector.load %arg6[%c320, %c0_37] : memref<360x256xf32, #tpu.memory_space<vmem>>, vector<40x256xf32>
      tpu.vector_store %arg6[%c320, %c0_37], %94 {strides = array<i32>} : memref<360x256xf32, #tpu.memory_space<vmem>>, vector<40x256xf32>,
      %c0_38 = arith.constant 0 : index
      %c0_39 = arith.constant 0 : index
      %96 = vector.load %arg2[%c0_38, %c0_39] : memref<128x360xf32, #tpu.memory_space<vmem>>, vector<128x360xf32>
      %c0_40 = arith.constant 0 : index
      %c0_41 = arith.constant 0 : index
      %97 = vector.load %arg6[%c0_40, %c0_41] : memref<360x256xf32, #tpu.memory_space<vmem>>, vector<360x256xf32>
      %cst_42 = arith.constant dense<0.000000e+00> : vector<128x256xf32>
      %98 = tpu.matmul %96, %97, %cst_42 {dimension_numbers = #tpu.dot_dimension_numbers<[1], [0], [0], [1], [0, 0, 1, 1], [], []>} : vector<128x360xf32>, vector<360x256xf32>, vector<128x256xf32> -> vector<128x256xf32>
      %c0_43 = arith.constant 0 : index
      %c0_44 = arith.constant 0 : index
      %99 = vector.load %arg3[%c0_43, %c0_44] : memref<128x1xf32, #tpu.memory_space<vmem>>, vector<128x1xf32>
      %100 = vector.broadcast %99 : vector<128x1xf32> to vector<128x256xf32>
      %101 = arith.addf %98, %100 : vector<128x256xf32>
      %102 = vector.broadcast %41 : vector<128x1xf32> to vector<128x256xf32>
      %103 = arith.mulf %101, %102 : vector<128x256xf32>
      %104 = math.tanh %103 : vector<128x256xf32>
      %cst_45 = arith.constant 5.000000e-01 : f32
      %105 = vector.broadcast %cst_45 : f32 to vector<128x256xf32>
      %106 = arith.mulf %105, %104 : vector<128x256xf32>
      %cst_46 = arith.constant 5.000000e-01 : f32
      %107 = vector.broadcast %cst_46 : f32 to vector<128x256xf32>
      %108 = arith.addf %106, %107 : vector<128x256xf32>
      %109 = vector.shape_cast %38 : vector<128x1xi1> to vector<128x1xi1>
      %110 = vector.broadcast %109 : vector<128x1xi1> to vector<128x256xi1>
      %111 = arith.select %110, %108, %104 : vector<128x256xi1>, vector<128x256xf32>
      %112 = vector.extract_strided_slice %111 {offsets = [0, 0], sizes = [32, 256], strides = [1, 1]} : vector<128x256xf32> to vector<32x256xf32>
      %113 = vector.extract_strided_slice %111 {offsets = [32, 0], sizes = [32, 256], strides = [1, 1]} : vector<128x256xf32> to vector<32x256xf32>
      %114 = vector.extract_strided_slice %111 {offsets = [64, 0], sizes = [32, 256], strides = [1, 1]} : vector<128x256xf32> to vector<32x256xf32>
      %115 = vector.extract_strided_slice %111 {offsets = [96, 0], sizes = [32, 256], strides = [1, 1]} : vector<128x256xf32> to vector<32x256xf32>
      %116 = arith.mulf %113, %arg9 : vector<32x256xf32>
      %117 = arith.mulf %112, %115 : vector<32x256xf32>
      %118 = arith.addf %116, %117 : vector<32x256xf32>
      %119 = math.tanh %118 : vector<32x256xf32>
      %120 = arith.mulf %114, %119 : vector<32x256xf32>
      %c0_47 = arith.constant 0 : index
      %121 = arith.index_cast %arg7 : i32 to index
      %c0_48 = arith.constant 0 : index
      %c0_49 = arith.constant 0 : index
      %122 = vector.load %arg4[%c0_47, %121, %c0_48, %c0_49] : memref<1x8x32x256xf32, #tpu.memory_space<vmem>>, vector<1x1x32x256xf32>
      %123 = vector.shape_cast %122 : vector<1x1x32x256xf32> to vector<32x256xf32>
      %124 = vector.shape_cast %120 : vector<32x256xf32> to vector<1x1x32x256xf32>
      tpu.vector_store %arg4[%c0_47, %121, %c0_48, %c0_49], %124 {strides = array<i32>} : memref<1x8x32x256xf32, #tpu.memory_space<vmem>>, vector<1x1x32x256xf32>,
      scf.yield %120, %118 : vector<32x256xf32>, vector<32x256xf32>
    }
    %c8_i32_16 = arith.constant 8 : i32
    %c0 = arith.constant 0 : index
    %c0_17 = arith.constant 0 : index
    %c0_18 = arith.constant 0 : index
    %46 = vector.load %arg5[%c0, %c0_17, %c0_18] : memref<1x32x256xf32, #tpu.memory_space<vmem>>, vector<1x32x256xf32>
    %47 = vector.shape_cast %46 : vector<1x32x256xf32> to vector<32x256xf32>
    %48 = vector.shape_cast %45#1 : vector<32x256xf32> to vector<1x32x256xf32>
    tpu.vector_store %arg5[%c0, %c0_17, %c0_18], %48 {strides = array<i32>} : memref<1x32x256xf32, #tpu.memory_space<vmem>>, vector<1x32x256xf32>,
    return
  }
  func.func @transform_0(%arg0: i32) -> (i32, i32, i32, i32) {
    %c0_i32 = arith.constant 0 : i32
    %c0_i32_0 = arith.constant 0 : i32
    %c0_i32_1 = arith.constant 0 : i32
    %c0_i32_2 = arith.constant 0 : i32
    return %arg0, %c0_i32, %c0_i32_0, %c0_i32_1 : i32, i32, i32, i32
  }
  func.func @transform_1(%arg0: i32) -> (i32, i32) {
    %c0_i32 = arith.constant 0 : i32
    %c0_i32_0 = arith.constant 0 : i32
    %c0_i32_1 = arith.constant 0 : i32
    return %c0_i32, %c0_i32_0 : i32, i32
  }
  func.func @transform_2(%arg0: i32) -> (i32, i32) {
    %c0_i32 = arith.constant 0 : i32
    %c0_i32_0 = arith.constant 0 : i32
    %c0_i32_1 = arith.constant 0 : i32
    return %c0_i32, %c0_i32_0 : i32, i32
  }
  func.func @transform_3(%arg0: i32) -> (i32, i32, i32, i32) {
    %c0_i32 = arith.constant 0 : i32
    %c0_i32_0 = arith.constant 0 : i32
    %c0_i32_1 = arith.constant 0 : i32
    %c0_i32_2 = arith.constant 0 : i32
    return %arg0, %c0_i32, %c0_i32_0, %c0_i32_1 : i32, i32, i32, i32
  }
  func.func @transform_4(%arg0: i32) -> (i32, i32, i32) {
    %c0_i32 = arith.constant 0 : i32
    %c0_i32_0 = arith.constant 0 : i32
    %c0_i32_1 = arith.constant 0 : i32
    return %arg0, %c0_i32, %c0_i32_0 : i32, i32, i32
  }
}

module attributes {stable_mosaic.version = 11 : i64} {
  func.func @_convlstm_layer_kernel(%arg0: i32, %arg1: memref<1x8x32x256xf32, #tpu.memory_space<vmem>>, %arg2: memref<128x576xf32, #tpu.memory_space<vmem>>, %arg3: memref<128x1xf32, #tpu.memory_space<vmem>>, %arg4: memref<1x8x32x256xf32, #tpu.memory_space<vmem>>, %arg5: memref<1x32x256xf32, #tpu.memory_space<vmem>>, %arg6: memref<576x256xf32, #tpu.memory_space<vmem>>) attributes {dimension_semantics = [#tpu.dimension_semantics<parallel>], iteration_bounds = array<i64: 2>, scalar_prefetch = 0 : i64, scratch_operands = 1 : i64, tpu.core_type = #tpu.core_type<tc>, window_params = [{transform_indices = @transform_0, window_bounds = array<i64: 1, 8, 32, 256>}, {pipeline_mode = #tpu.pipeline_mode<synchronous>, transform_indices = @transform_1, window_bounds = array<i64: 128, 576>}, {pipeline_mode = #tpu.pipeline_mode<synchronous>, transform_indices = @transform_2, window_bounds = array<i64: 128, 1>}, {transform_indices = @transform_3, window_bounds = array<i64: 1, 8, 32, 256>}, {transform_indices = @transform_4, window_bounds = array<i64: 1, 32, 256>}]} {
    %cst = arith.constant 0.000000e+00 : f32
    %0 = vector.broadcast %cst : f32 to vector<64x128xf32>
    %1 = tpu.iota {dimensions = array<i32: 1>} : vector<1x256xi32>
    %c16_i32 = arith.constant 16 : i32
    %c0_i32 = arith.constant 0 : i32
    %2 = arith.cmpi eq, %c16_i32, %c0_i32 : i32
    %c1_i32 = arith.constant 1 : i32
    %3 = arith.select %2, %c1_i32, %c16_i32 : i32
    %4 = vector.broadcast %3 : i32 to vector<1x256xi32>
    %5 = arith.remsi %1, %4 : vector<1x256xi32>
    %c0_i32_0 = arith.constant 0 : i32
    %6 = vector.broadcast %c0_i32_0 : i32 to vector<1x256xi32>
    %7 = arith.cmpi ne, %5, %6 : vector<1x256xi32>
    %c0_i32_1 = arith.constant 0 : i32
    %8 = vector.broadcast %c0_i32_1 : i32 to vector<1x256xi32>
    %9 = arith.cmpi slt, %5, %8 : vector<1x256xi32>
    %c0_i32_2 = arith.constant 0 : i32
    %10 = arith.cmpi slt, %3, %c0_i32_2 : i32
    %11 = vector.broadcast %10 : i1 to vector<1x256xi1>
    %12 = vector.broadcast %11 : vector<1x256xi1> to vector<1x256xi1>
    %13 = arith.xori %9, %12 : vector<1x256xi1>
    %14 = arith.andi %13, %7 : vector<1x256xi1>
    %15 = vector.broadcast %3 : i32 to vector<1x256xi32>
    %16 = arith.addi %5, %15 : vector<1x256xi32>
    %17 = arith.select %14, %16, %5 : vector<1x256xi1>, vector<1x256xi32>
    %c-1_i32 = arith.constant -1 : i32
    %18 = vector.broadcast %c-1_i32 : i32 to vector<1x256xi32>
    %19 = arith.addi %17, %18 : vector<1x256xi32>
    %c0_i32_3 = arith.constant 0 : i32
    %20 = vector.broadcast %c0_i32_3 : i32 to vector<1x256xi32>
    %21 = arith.cmpi sge, %19, %20 : vector<1x256xi32>
    %c-1_i32_4 = arith.constant -1 : i32
    %22 = vector.broadcast %c-1_i32_4 : i32 to vector<1x256xi32>
    %23 = arith.addi %17, %22 : vector<1x256xi32>
    %c16_i32_5 = arith.constant 16 : i32
    %24 = vector.broadcast %c16_i32_5 : i32 to vector<1x256xi32>
    %25 = arith.cmpi slt, %23, %24 : vector<1x256xi32>
    %26 = arith.andi %21, %25 : vector<1x256xi1>
    %c1_i32_6 = arith.constant 1 : i32
    %27 = vector.broadcast %c1_i32_6 : i32 to vector<1x256xi32>
    %28 = arith.addi %17, %27 : vector<1x256xi32>
    %c0_i32_7 = arith.constant 0 : i32
    %29 = vector.broadcast %c0_i32_7 : i32 to vector<1x256xi32>
    %30 = arith.cmpi sge, %28, %29 : vector<1x256xi32>
    %c1_i32_8 = arith.constant 1 : i32
    %31 = vector.broadcast %c1_i32_8 : i32 to vector<1x256xi32>
    %32 = arith.addi %17, %31 : vector<1x256xi32>
    %c16_i32_9 = arith.constant 16 : i32
    %33 = vector.broadcast %c16_i32_9 : i32 to vector<1x256xi32>
    %34 = arith.cmpi slt, %32, %33 : vector<1x256xi32>
    %35 = arith.andi %30, %34 : vector<1x256xi1>
    %36 = tpu.iota {dimensions = array<i32: 0>} : vector<128x1xi32>
    %c96_i32 = arith.constant 96 : i32
    %37 = vector.broadcast %c96_i32 : i32 to vector<128x1xi32>
    %38 = arith.cmpi slt, %36, %37 : vector<128x1xi32>
    %cst_10 = arith.constant 5.000000e-01 : f32
    %cst_11 = arith.constant 1.000000e+00 : f32
    %39 = vector.broadcast %cst_10 : f32 to vector<128x1xf32>
    %40 = vector.broadcast %cst_11 : f32 to vector<128x1xf32>
    %41 = arith.select %38, %39, %40 : vector<128x1xi1>, vector<128x1xf32>
    %cst_12 = arith.constant 0.000000e+00 : f32
    %42 = vector.broadcast %cst_12 : f32 to vector<32x256xf32>
    %cst_13 = arith.constant 0.000000e+00 : f32
    %43 = vector.broadcast %cst_13 : f32 to vector<32x256xf32>
    %c0_i32_14 = arith.constant 0 : i32
    %c8_i32 = arith.constant 8 : i32
    %44 = arith.addi %c0_i32_14, %c8_i32 : i32
    %c1_i32_15 = arith.constant 1 : i32
    %45:2 = scf.for %arg7 = %c0_i32_14 to %44 step %c1_i32_15 iter_args(%arg8 = %42, %arg9 = %43) -> (vector<32x256xf32>, vector<32x256xf32>)  : i32 {
      %c0_19 = arith.constant 0 : index
      %49 = arith.index_cast %arg7 : i32 to index
      %c0_20 = arith.constant 0 : index
      %c0_21 = arith.constant 0 : index
      %50 = vector.load %arg1[%c0_19, %49, %c0_20, %c0_21] : memref<1x8x32x256xf32, #tpu.memory_space<vmem>>, vector<1x1x32x256xf32>
      %51 = vector.shape_cast %50 : vector<1x1x32x256xf32> to vector<32x256xf32>
      %52 = tpu.concatenate %51, %arg8 in 0 : vector<32x256xf32>, vector<32x256xf32> -> vector<64x256xf32>
      %53 = tpu.concatenate %0, %52, %0 in 1 : vector<64x128xf32>, vector<64x256xf32>, vector<64x128xf32> -> vector<64x512xf32>
      %54 = vector.extract_strided_slice %53 {offsets = [0, 111], sizes = [64, 256], strides = [1, 1]} : vector<64x512xf32> to vector<64x256xf32>
      %cst_22 = arith.constant 0.000000e+00 : f32
      %55 = vector.shape_cast %26 : vector<1x256xi1> to vector<1x256xi1>
      %56 = vector.broadcast %55 : vector<1x256xi1> to vector<64x256xi1>
      %57 = vector.broadcast %cst_22 : f32 to vector<64x256xf32>
      %58 = arith.select %56, %54, %57 : vector<64x256xi1>, vector<64x256xf32>
      %c0_23 = arith.constant 0 : index
      %c0_24 = arith.constant 0 : index
      %59 = vector.load %arg6[%c0_23, %c0_24] : memref<576x256xf32, #tpu.memory_space<vmem>>, vector<64x256xf32>
      tpu.vector_store %arg6[%c0_23, %c0_24], %58 {strides = array<i32>} : memref<576x256xf32, #tpu.memory_space<vmem>>, vector<64x256xf32>,
      %60 = vector.extract_strided_slice %53 {offsets = [0, 112], sizes = [64, 256], strides = [1, 1]} : vector<64x512xf32> to vector<64x256xf32>
      %c64 = arith.constant 64 : index
      %c0_25 = arith.constant 0 : index
      %61 = vector.load %arg6[%c64, %c0_25] : memref<576x256xf32, #tpu.memory_space<vmem>>, vector<64x256xf32>
      tpu.vector_store %arg6[%c64, %c0_25], %60 {strides = array<i32>} : memref<576x256xf32, #tpu.memory_space<vmem>>, vector<64x256xf32>,
      %62 = vector.extract_strided_slice %53 {offsets = [0, 113], sizes = [64, 256], strides = [1, 1]} : vector<64x512xf32> to vector<64x256xf32>
      %cst_26 = arith.constant 0.000000e+00 : f32
      %63 = vector.shape_cast %35 : vector<1x256xi1> to vector<1x256xi1>
      %64 = vector.broadcast %63 : vector<1x256xi1> to vector<64x256xi1>
      %65 = vector.broadcast %cst_26 : f32 to vector<64x256xf32>
      %66 = arith.select %64, %62, %65 : vector<64x256xi1>, vector<64x256xf32>
      %c128 = arith.constant 128 : index
      %c0_27 = arith.constant 0 : index
      %67 = vector.load %arg6[%c128, %c0_27] : memref<576x256xf32, #tpu.memory_space<vmem>>, vector<64x256xf32>
      tpu.vector_store %arg6[%c128, %c0_27], %66 {strides = array<i32>} : memref<576x256xf32, #tpu.memory_space<vmem>>, vector<64x256xf32>,
      %68 = vector.extract_strided_slice %53 {offsets = [0, 127], sizes = [64, 256], strides = [1, 1]} : vector<64x512xf32> to vector<64x256xf32>
      %cst_28 = arith.constant 0.000000e+00 : f32
      %69 = vector.shape_cast %26 : vector<1x256xi1> to vector<1x256xi1>
      %70 = vector.broadcast %69 : vector<1x256xi1> to vector<64x256xi1>
      %71 = vector.broadcast %cst_28 : f32 to vector<64x256xf32>
      %72 = arith.select %70, %68, %71 : vector<64x256xi1>, vector<64x256xf32>
      %c192 = arith.constant 192 : index
      %c0_29 = arith.constant 0 : index
      %73 = vector.load %arg6[%c192, %c0_29] : memref<576x256xf32, #tpu.memory_space<vmem>>, vector<64x256xf32>
      tpu.vector_store %arg6[%c192, %c0_29], %72 {strides = array<i32>} : memref<576x256xf32, #tpu.memory_space<vmem>>, vector<64x256xf32>,
      %74 = vector.extract_strided_slice %53 {offsets = [0, 128], sizes = [64, 256], strides = [1, 1]} : vector<64x512xf32> to vector<64x256xf32>
      %c256 = arith.constant 256 : index
      %c0_30 = arith.constant 0 : index
      %75 = vector.load %arg6[%c256, %c0_30] : memref<576x256xf32, #tpu.memory_space<vmem>>, vector<64x256xf32>
      tpu.vector_store %arg6[%c256, %c0_30], %74 {strides = array<i32>} : memref<576x256xf32, #tpu.memory_space<vmem>>, vector<64x256xf32>,
      %76 = vector.extract_strided_slice %53 {offsets = [0, 129], sizes = [64, 256], strides = [1, 1]} : vector<64x512xf32> to vector<64x256xf32>
      %cst_31 = arith.constant 0.000000e+00 : f32
      %77 = vector.shape_cast %35 : vector<1x256xi1> to vector<1x256xi1>
      %78 = vector.broadcast %77 : vector<1x256xi1> to vector<64x256xi1>
      %79 = vector.broadcast %cst_31 : f32 to vector<64x256xf32>
      %80 = arith.select %78, %76, %79 : vector<64x256xi1>, vector<64x256xf32>
      %c320 = arith.constant 320 : index
      %c0_32 = arith.constant 0 : index
      %81 = vector.load %arg6[%c320, %c0_32] : memref<576x256xf32, #tpu.memory_space<vmem>>, vector<64x256xf32>
      tpu.vector_store %arg6[%c320, %c0_32], %80 {strides = array<i32>} : memref<576x256xf32, #tpu.memory_space<vmem>>, vector<64x256xf32>,
      %82 = vector.extract_strided_slice %53 {offsets = [0, 143], sizes = [64, 256], strides = [1, 1]} : vector<64x512xf32> to vector<64x256xf32>
      %cst_33 = arith.constant 0.000000e+00 : f32
      %83 = vector.shape_cast %26 : vector<1x256xi1> to vector<1x256xi1>
      %84 = vector.broadcast %83 : vector<1x256xi1> to vector<64x256xi1>
      %85 = vector.broadcast %cst_33 : f32 to vector<64x256xf32>
      %86 = arith.select %84, %82, %85 : vector<64x256xi1>, vector<64x256xf32>
      %c384 = arith.constant 384 : index
      %c0_34 = arith.constant 0 : index
      %87 = vector.load %arg6[%c384, %c0_34] : memref<576x256xf32, #tpu.memory_space<vmem>>, vector<64x256xf32>
      tpu.vector_store %arg6[%c384, %c0_34], %86 {strides = array<i32>} : memref<576x256xf32, #tpu.memory_space<vmem>>, vector<64x256xf32>,
      %88 = vector.extract_strided_slice %53 {offsets = [0, 144], sizes = [64, 256], strides = [1, 1]} : vector<64x512xf32> to vector<64x256xf32>
      %c448 = arith.constant 448 : index
      %c0_35 = arith.constant 0 : index
      %89 = vector.load %arg6[%c448, %c0_35] : memref<576x256xf32, #tpu.memory_space<vmem>>, vector<64x256xf32>
      tpu.vector_store %arg6[%c448, %c0_35], %88 {strides = array<i32>} : memref<576x256xf32, #tpu.memory_space<vmem>>, vector<64x256xf32>,
      %90 = vector.extract_strided_slice %53 {offsets = [0, 145], sizes = [64, 256], strides = [1, 1]} : vector<64x512xf32> to vector<64x256xf32>
      %cst_36 = arith.constant 0.000000e+00 : f32
      %91 = vector.shape_cast %35 : vector<1x256xi1> to vector<1x256xi1>
      %92 = vector.broadcast %91 : vector<1x256xi1> to vector<64x256xi1>
      %93 = vector.broadcast %cst_36 : f32 to vector<64x256xf32>
      %94 = arith.select %92, %90, %93 : vector<64x256xi1>, vector<64x256xf32>
      %c512 = arith.constant 512 : index
      %c0_37 = arith.constant 0 : index
      %95 = vector.load %arg6[%c512, %c0_37] : memref<576x256xf32, #tpu.memory_space<vmem>>, vector<64x256xf32>
      tpu.vector_store %arg6[%c512, %c0_37], %94 {strides = array<i32>} : memref<576x256xf32, #tpu.memory_space<vmem>>, vector<64x256xf32>,
      %c0_38 = arith.constant 0 : index
      %c0_39 = arith.constant 0 : index
      %96 = vector.load %arg2[%c0_38, %c0_39] : memref<128x576xf32, #tpu.memory_space<vmem>>, vector<128x576xf32>
      %c0_40 = arith.constant 0 : index
      %c0_41 = arith.constant 0 : index
      %97 = vector.load %arg6[%c0_40, %c0_41] : memref<576x256xf32, #tpu.memory_space<vmem>>, vector<576x256xf32>
      %cst_42 = arith.constant dense<0.000000e+00> : vector<128x256xf32>
      %98 = tpu.matmul %96, %97, %cst_42 {dimension_numbers = #tpu.dot_dimension_numbers<[1], [0], [0], [1], [0, 0, 1, 1], [], []>} : vector<128x576xf32>, vector<576x256xf32>, vector<128x256xf32> -> vector<128x256xf32>
      %c0_43 = arith.constant 0 : index
      %c0_44 = arith.constant 0 : index
      %99 = vector.load %arg3[%c0_43, %c0_44] : memref<128x1xf32, #tpu.memory_space<vmem>>, vector<128x1xf32>
      %100 = vector.broadcast %99 : vector<128x1xf32> to vector<128x256xf32>
      %101 = arith.addf %98, %100 : vector<128x256xf32>
      %102 = vector.broadcast %41 : vector<128x1xf32> to vector<128x256xf32>
      %103 = arith.mulf %101, %102 : vector<128x256xf32>
      %104 = math.tanh %103 : vector<128x256xf32>
      %cst_45 = arith.constant 5.000000e-01 : f32
      %105 = vector.broadcast %cst_45 : f32 to vector<128x256xf32>
      %106 = arith.mulf %105, %104 : vector<128x256xf32>
      %cst_46 = arith.constant 5.000000e-01 : f32
      %107 = vector.broadcast %cst_46 : f32 to vector<128x256xf32>
      %108 = arith.addf %106, %107 : vector<128x256xf32>
      %109 = vector.shape_cast %38 : vector<128x1xi1> to vector<128x1xi1>
      %110 = vector.broadcast %109 : vector<128x1xi1> to vector<128x256xi1>
      %111 = arith.select %110, %108, %104 : vector<128x256xi1>, vector<128x256xf32>
      %112 = vector.extract_strided_slice %111 {offsets = [0, 0], sizes = [32, 256], strides = [1, 1]} : vector<128x256xf32> to vector<32x256xf32>
      %113 = vector.extract_strided_slice %111 {offsets = [32, 0], sizes = [32, 256], strides = [1, 1]} : vector<128x256xf32> to vector<32x256xf32>
      %114 = vector.extract_strided_slice %111 {offsets = [64, 0], sizes = [32, 256], strides = [1, 1]} : vector<128x256xf32> to vector<32x256xf32>
      %115 = vector.extract_strided_slice %111 {offsets = [96, 0], sizes = [32, 256], strides = [1, 1]} : vector<128x256xf32> to vector<32x256xf32>
      %116 = arith.mulf %113, %arg9 : vector<32x256xf32>
      %117 = arith.mulf %112, %115 : vector<32x256xf32>
      %118 = arith.addf %116, %117 : vector<32x256xf32>
      %119 = math.tanh %118 : vector<32x256xf32>
      %120 = arith.mulf %114, %119 : vector<32x256xf32>
      %c0_47 = arith.constant 0 : index
      %121 = arith.index_cast %arg7 : i32 to index
      %c0_48 = arith.constant 0 : index
      %c0_49 = arith.constant 0 : index
      %122 = vector.load %arg4[%c0_47, %121, %c0_48, %c0_49] : memref<1x8x32x256xf32, #tpu.memory_space<vmem>>, vector<1x1x32x256xf32>
      %123 = vector.shape_cast %122 : vector<1x1x32x256xf32> to vector<32x256xf32>
      %124 = vector.shape_cast %120 : vector<32x256xf32> to vector<1x1x32x256xf32>
      tpu.vector_store %arg4[%c0_47, %121, %c0_48, %c0_49], %124 {strides = array<i32>} : memref<1x8x32x256xf32, #tpu.memory_space<vmem>>, vector<1x1x32x256xf32>,
      scf.yield %120, %118 : vector<32x256xf32>, vector<32x256xf32>
    }
    %c8_i32_16 = arith.constant 8 : i32
    %c0 = arith.constant 0 : index
    %c0_17 = arith.constant 0 : index
    %c0_18 = arith.constant 0 : index
    %46 = vector.load %arg5[%c0, %c0_17, %c0_18] : memref<1x32x256xf32, #tpu.memory_space<vmem>>, vector<1x32x256xf32>
    %47 = vector.shape_cast %46 : vector<1x32x256xf32> to vector<32x256xf32>
    %48 = vector.shape_cast %45#1 : vector<32x256xf32> to vector<1x32x256xf32>
    tpu.vector_store %arg5[%c0, %c0_17, %c0_18], %48 {strides = array<i32>} : memref<1x32x256xf32, #tpu.memory_space<vmem>>, vector<1x32x256xf32>,
    return
  }
  func.func @transform_0(%arg0: i32) -> (i32, i32, i32, i32) {
    %c0_i32 = arith.constant 0 : i32
    %c0_i32_0 = arith.constant 0 : i32
    %c0_i32_1 = arith.constant 0 : i32
    %c0_i32_2 = arith.constant 0 : i32
    return %arg0, %c0_i32, %c0_i32_0, %c0_i32_1 : i32, i32, i32, i32
  }
  func.func @transform_1(%arg0: i32) -> (i32, i32) {
    %c0_i32 = arith.constant 0 : i32
    %c0_i32_0 = arith.constant 0 : i32
    %c0_i32_1 = arith.constant 0 : i32
    return %c0_i32, %c0_i32_0 : i32, i32
  }
  func.func @transform_2(%arg0: i32) -> (i32, i32) {
    %c0_i32 = arith.constant 0 : i32
    %c0_i32_0 = arith.constant 0 : i32
    %c0_i32_1 = arith.constant 0 : i32
    return %c0_i32, %c0_i32_0 : i32, i32
  }
  func.func @transform_3(%arg0: i32) -> (i32, i32, i32, i32) {
    %c0_i32 = arith.constant 0 : i32
    %c0_i32_0 = arith.constant 0 : i32
    %c0_i32_1 = arith.constant 0 : i32
    %c0_i32_2 = arith.constant 0 : i32
    return %arg0, %c0_i32, %c0_i32_0, %c0_i32_1 : i32, i32, i32, i32
  }
  func.func @transform_4(%arg0: i32) -> (i32, i32, i32) {
    %c0_i32 = arith.constant 0 : i32
    %c0_i32_0 = arith.constant 0 : i32
    %c0_i32_1 = arith.constant 0 : i32
    return %arg0, %c0_i32, %c0_i32_0 : i32, i32, i32
  }
}

</mosaic_0001>

<llo_original>
// kernel: convlstm_forward.2
$region0: #{convlstm_forward.2}
  #allocation0 [shape = 'u32[]', space=smem, size = 0x4, offset = 0x4, fixed_abs, tag = 'smem constant byte address 0x4 - core index']
  #allocation1 [shape = 'u32[144,128]{1,0:T(1,128)}', space=vmem, size = 0x12000, scoped, tag = 'internal scratch']
  #allocation2 [shape = 'f32[360,256]{1,0:T(8,128)}', space=vmem, size = 0x5a000, scoped, tag = 'scratch operand']
  %s0 = inlined_call_operand.vmem [shape: f32[2,8,8,256], index: 0, kind: input, shape index: {}]
  %s1 = inlined_call_operand.vmem [shape: f32[128,360], index: 1, kind: input, shape index: {}]
  %s2 = inlined_call_operand.vmem [shape: f32[128,1], index: 2, kind: input, shape index: {}]
  %s3 = inlined_call_operand.vmem [shape: f32[2,8,32,256], index: 3, kind: output, shape index: {0}]
  %s4 = inlined_call_operand.hbm [shape: f32[2,32,256], index: 4, kind: output, shape index: {1}]
  %5 = xla_tuple %s3, %s4
  %s6 = sld [smem:[#allocation0]]
  $region60: #{convlstm_forward.2} parent=0
    _
  %s8 = ssub.s32 1, %s6
  %s9 = scalar_select 0, %s8, %s6
  $region1: #{convlstm_forward.2} parent=0
    #allocation3 [shape = 'u8[65536]{0}', space=vmem, size = 0x10000, scoped, tag = 'output window, operand 1']
    #allocation4 [shape = 's32[2]{0}', space=sflag, size = 0x8, scoped, tag = 'scoped memory for convlstm_forward.2']
    %10 = vsyncpa [#allocation4], 0
    %s11 = scalar_lea.sflag [#allocation4], 1
    %12 = vsyncpa %s11, 0
    loop: start=0, step=1, limit=4
    $region2: #{convlstm_forward.2} parent=1 // loop_pre_header
      _
    $region3: #{convlstm_forward.2} parent=1 // loop_header
      %s14 = sphi 0, %s18
      %p15 = scmp.ge.s32.totalorder %s14, 4
      %s24 = sphi 0, %s26
      %s27 = sphi 0, %s24
      %s28 = sphi 0, %s27
      %s44 = sphi 0, %s28
      %s48 = sphi 0, %s48
      %s50 = sphi 0, %s48
      %s51 = sphi 0, %s50
      %s65 = sphi 0, %s51
      %s69 = sphi 0, %s69
      %s71 = sphi 0, %s69
      %s72 = sphi 0, %s71
      %s86 = sphi 0, %s72
      %s92 = sphi 0, %s94
      %s95 = sphi 0, %s92
      %s96 = sphi 0, %s95
      %s112 = sphi 0, %s96
      %s118 = sphi 0, %s120
      %s121 = sphi 0, %s118
      %s122 = sphi 0, %s121
      %s138 = sphi 0, %s122
    $region4: #{convlstm_forward.2} parent=1 // loop_header_branch
      %17 = sbr.rel (%p15) target = $region8
    $region5: #{convlstm_forward.2} parent=1 // loop_body
      %s19 = ssub.s32 %s14, 1
      %s20 = ssub.s32 %s14, 2
      %s21 = sadd.s32 %s14, 1
      %s22 = ssub.s32 %s14, %s21
      %p23 = scmp.eq.s32.totalorder %s22, 0
      %s25 = sadd.s32 %s24, 1
      %s26 = scalar_select %p23, %s24, %s25
      %p29 = pneg %p23
      %p30 = scmp.eq.s32.totalorder %s14, 1
      %p31 = por %p29, %p30
      %p32 = scmp.ne.s32.totalorder %s24, %s27
      %p33 = scmp.eq.s32.totalorder %s14, 0
      %p34 = por %p32, %p33
      %p35 = scmp.ne.s32.totalorder %s24, %s27
      %p36 = scmp.eq.s32.totalorder %s19, 1
      %p37 = por %p35, %p36
      %p38 = scmp.ne.s32.totalorder %s27, %s28
      %p39 = scmp.eq.s32.totalorder %s19, 0
      %p40 = por %p38, %p39
      %p41 = scmp.ne.s32.totalorder %s27, %s28
      %p42 = scmp.eq.s32.totalorder %s20, 1
      %p43 = por %p41, %p42
      %p45 = scmp.ne.s32.totalorder %s28, %s44
      %p46 = scmp.eq.s32.totalorder %s20, 0
      %p47 = por %p45, %p46
      %s49 = sadd.s32 %s48, 1
      %p52 = scmp.eq.s32.totalorder %s14, 1
      %p53 = scmp.ne.s32.totalorder %s48, %s50
      %p54 = scmp.eq.s32.totalorder %s14, 0
      %p55 = por %p53, %p54
      %p56 = scmp.ne.s32.totalorder %s48, %s50
      %p57 = scmp.eq.s32.totalorder %s19, 1
      %p58 = por %p56, %p57
      %p59 = scmp.ne.s32.totalorder %s50, %s51
      %p60 = scmp.eq.s32.totalorder %s19, 0
      %p61 = por %p59, %p60
      %p62 = scmp.ne.s32.totalorder %s50, %s51
      %p63 = scmp.eq.s32.totalorder %s20, 1
      %p64 = por %p62, %p63
      %p66 = scmp.ne.s32.totalorder %s51, %s65
      %p67 = scmp.eq.s32.totalorder %s20, 0
      %p68 = por %p66, %p67
      %s70 = sadd.s32 %s69, 1
      %p73 = scmp.eq.s32.totalorder %s14, 1
      %p74 = scmp.ne.s32.totalorder %s69, %s71
      %p75 = scmp.eq.s32.totalorder %s14, 0
      %p76 = por %p74, %p75
      %p77 = scmp.ne.s32.totalorder %s69, %s71
      %p78 = scmp.eq.s32.totalorder %s19, 1
      %p79 = por %p77, %p78
      %p80 = scmp.ne.s32.totalorder %s71, %s72
      %p81 = scmp.eq.s32.totalorder %s19, 0
      %p82 = por %p80, %p81
      %p83 = scmp.ne.s32.totalorder %s71, %s72
      %p84 = scmp.eq.s32.totalorder %s20, 1
      %p85 = por %p83, %p84
      %p87 = scmp.ne.s32.totalorder %s72, %s86
      %p88 = scmp.eq.s32.totalorder %s20, 0
      %p89 = por %p87, %p88
      %s90 = ssub.s32 %s14, %s21
      %p91 = scmp.eq.s32.totalorder %s90, 0
      %s93 = sadd.s32 %s92, 1
      %s94 = scalar_select %p91, %s92, %s93
      %p97 = pneg %p91
      %p98 = scmp.eq.s32.totalorder %s14, 1
      %p99 = por %p97, %p98
      %p100 = scmp.ne.s32.totalorder %s92, %s95
      %p101 = scmp.eq.s32.totalorder %s14, 0
      %p102 = por %p100, %p101
      %p103 = scmp.ne.s32.totalorder %s92, %s95
      %p104 = scmp.eq.s32.totalorder %s19, 1
      %p105 = por %p103, %p104
      %p106 = scmp.ne.s32.totalorder %s95, %s96
      %p107 = scmp.eq.s32.totalorder %s19, 0
      %p108 = por %p106, %p107
      %p109 = scmp.ne.s32.totalorder %s95, %s96
      %p110 = scmp.eq.s32.totalorder %s20, 1
      %p111 = por %p109, %p110
      %p113 = scmp.ne.s32.totalorder %s96, %s112
      %p114 = scmp.eq.s32.totalorder %s20, 0
      %p115 = por %p113, %p114
      %s116 = ssub.s32 %s14, %s21
      %p117 = scmp.eq.s32.totalorder %s116, 0
      %s119 = sadd.s32 %s118, 1
      %s120 = scalar_select %p117, %s118, %s119
      %p123 = pneg %p117
      %p124 = scmp.eq.s32.totalorder %s14, 1
      %p125 = por %p123, %p124
      %p126 = scmp.ne.s32.totalorder %s118, %s121
      %p127 = scmp.eq.s32.totalorder %s14, 0
      %p128 = por %p126, %p127
      %p129 = scmp.ne.s32.totalorder %s118, %s121
      %p130 = scmp.eq.s32.totalorder %s19, 1
      %p131 = por %p129, %p130
      %p132 = scmp.ne.s32.totalorder %s121, %s122
      %p133 = scmp.eq.s32.totalorder %s19, 0
      %p134 = por %p132, %p133
      %p135 = scmp.ne.s32.totalorder %s121, %s122
      %p136 = scmp.eq.s32.totalorder %s20, 1
      %p137 = por %p135, %p136
      %p139 = scmp.ne.s32.totalorder %s122, %s138
      %p140 = scmp.eq.s32.totalorder %s20, 0
      %p141 = por %p139, %p140
      %p142 = scmp.le.s32.totalorder 1, %s14
      %p143 = scmp.lt.s32.totalorder %s14, 3
      %p144 = pnand %p142, %p143
      %p145 = pneg %p144
      // Predicated region
      $region9: #{convlstm_forward.2} parent=5 // pred_check
        _
      $region10: #{convlstm_forward.2} parent=5 // pred_check_branch
        %147 = sbr.rel (%p144) target = $region12
      $region11: #{convlstm_forward.2} parent=5 // pred_region
        %s148 = ssub.s32 %s14, 1
        // Predicated region
        $region13: #{convlstm_forward.2} parent=11 // pred_check
          %p149 = pneg %p61
        $region14: #{convlstm_forward.2} parent=11 // pred_check_branch
          %151 = sbr.rel (%p149) target = $region16
        $region15: #{convlstm_forward.2} parent=11 // pred_region
          _
        $region16: #{convlstm_forward.2} parent=11 // pred_fallthru
          _
        // Predicated region
        $region17: #{convlstm_forward.2} parent=11 // pred_check
          %p152 = pneg %p82
        $region18: #{convlstm_forward.2} parent=11 // pred_check_branch
          %154 = sbr.rel (%p152) target = $region20
        $region19: #{convlstm_forward.2} parent=11 // pred_region
          _
        $region20: #{convlstm_forward.2} parent=11 // pred_fallthru
          _
      $region12: #{convlstm_forward.2} parent=5 // pred_fallthru
        _
      %p155 = scmp.lt.s32.totalorder %s14, 2
      // Predicated region
      $region21: #{convlstm_forward.2} parent=5 // pred_check
        %p156 = pneg %p155
      $region22: #{convlstm_forward.2} parent=5 // pred_check_branch
        %158 = sbr.rel (%p156) target = $region24
      $region23: #{convlstm_forward.2} parent=5 // pred_region
        // Predicated region
        $region25: #{convlstm_forward.2} parent=23 // pred_check
          %p159 = pneg %p34
        $region26: #{convlstm_forward.2} parent=23 // pred_check_branch
          %161 = sbr.rel (%p159) target = $region28
        $region27: #{convlstm_forward.2} parent=23 // pred_region
          %p162 = scmp.lt.s32.totalorder %s14, 1
          %s163 = scalar_select %p162, %s14, 1
          %s164 = smul.addr %s163, 16
          %s165 = smul.addr %s164, 8
          %s166 = scalar_lea.vmem %s0, %s165
        $region28: #{convlstm_forward.2} parent=23 // pred_fallthru
          _
      $region24: #{convlstm_forward.2} parent=5 // pred_fallthru
        _
      %p167 = scmp.le.s32.totalorder 1, %s14
      %p168 = scmp.lt.s32.totalorder %s14, 3
      %p169 = pnand %p167, %p168
      %p170 = pneg %p169
      // Predicated region
      $region29: #{convlstm_forward.2} parent=5 // pred_check
        _
      $region30: #{convlstm_forward.2} parent=5 // pred_check_branch
        %172 = sbr.rel (%p169) target = $region32
      $region31: #{convlstm_forward.2} parent=5 // pred_region
        %s173 = ssub.s32 %s14, 1
        %p174 = scmp.lt.s32.totalorder %s19, 1
        %s175 = scalar_select %p174, %s19, 1
        %s176 = smul.addr %s175, 16
        %s177 = smul.addr %s176, 8
        %s178 = scalar_lea.vmem %s0, %s177
        %p179 = pneg %p40
        %p180 = pneg %p37
        %p181 = pneg %p61
        %p182 = pneg %p58
        %p183 = pneg %p82
        %p184 = pneg %p79
        %p185 = pneg %p108
        %p186 = pneg %p105
        %p187 = scmp.lt.s32.totalorder %s19, 1
        %s188 = scalar_select %p187, %s19, 1
        %s189 = smul.addr %s188, 64
        %s190 = smul.addr %s189, 8
        %s191 = scalar_lea.vmem %s3, %s190
        %p192 = pneg %p134
        %p193 = pneg %p131
        %s194 = sand.u32 %s121, 1
        %s195 = scalar_lea.sflag [#allocation4], %s194
        %s196 = sand.u32 %s121, 1
        %s197 = smul.addr %s196, 64
        %s198 = scalar_lea.vmem [#allocation3], %s197
        %p199 = scmp.lt.s32.totalorder %s19, 1
        %s200 = scalar_select %p199, %s19, 1
        %s201 = smul.addr %s200, 16
        %s202 = smul.addr %s201, 8
        %s203 = scalar_lea.vmem %s0, %s202
        %p204 = scmp.lt.s32.totalorder %s19, 1
        %s205 = scalar_select %p204, %s19, 1
        %s206 = smul.addr %s205, 64
        %s207 = smul.addr %s206, 8
        %s208 = scalar_lea.vmem %s3, %s207
        %v209 = vlaneseq
        %v210 = vand.u32 %v209, 127
        %v211 = vadd.s32 %v210, 128
        %vm212 = vcmp.lt.s32.totalorder %v210, 0
        %v213 = vsub.s32 0, %v210
        %v214 = vsel %vm212, %v213, %v210
        %v215 = vshrl.u32 %v214, 4
        %v216 = vand.u32 %v214, 15
        %v217 = vsub.s32 0, %v216
        %v218 = vsel %vm212, %v217, %v216
        %vm219 = vcmp.lt.s32.totalorder %v211, 0
        %v220 = vsub.s32 0, %v211
        %v221 = vsel %vm219, %v220, %v211
        %v222 = vshrl.u32 %v221, 4
        %v223 = vand.u32 %v221, 15
        %v224 = vsub.s32 0, %v223
        %v225 = vsel %vm219, %v224, %v223
        %vm226 = vcmp.ne.s32.totalorder %v218, 0
        %vm227 = vcmp.ne.s32.totalorder %v225, 0
        %vm228 = vcmp.lt.s32.totalorder %v218, 0
        %vm229 = vcmp.lt.s32.totalorder %v225, 0
        %vm230 = vmand %vm228, %vm226
        %vm231 = vmand %vm229, %vm227
        %v232 = vadd.s32 %v218, 16
        %v233 = vadd.s32 %v225, 16
        %v234 = vsel %vm230, %v232, %v218
        %v235 = vsel %vm231, %v233, %v225
        %v236 = vadd.s32 %v234, 4294967295
        %v237 = vadd.s32 %v235, 4294967295
        %vm238 = vcmp.ge.s32.totalorder %v236, 0
        %vm239 = vcmp.ge.s32.totalorder %v237, 0
        %vm240 = vcmp.lt.s32.totalorder %v236, 16
        %vm241 = vcmp.lt.s32.totalorder %v237, 16
        %vm242 = vmand %vm238, %vm240
        %vm243 = vmand %vm239, %vm241
        %v244 = vadd.s32 %v234, 1
        %v245 = vadd.s32 %v235, 1
        %vm246 = vcmp.ge.s32.totalorder %v244, 0
        %vm247 = vcmp.ge.s32.totalorder %v245, 0
        %vm248 = vcmp.lt.s32.totalorder %v244, 16
        %vm249 = vcmp.lt.s32.totalorder %v245, 16
        %vm250 = vmand %vm246, %vm248
        %vm251 = vmand %vm247, %vm249
        %v252 = vlaneseq
        %v253 = vshrl.u32 %v252, 7
        %v254 = vadd.s32 %v253, 8
        %v255 = vadd.s32 %v253, 16
        %v256 = vadd.s32 %v253, 24
        %v257 = vadd.s32 %v253, 32
        %v258 = vadd.s32 %v253, 40
        %v259 = vadd.s32 %v253, 48
        %v260 = vadd.s32 %v253, 56
        %v261 = vadd.s32 %v253, 64
        %v262 = vadd.s32 %v253, 72
        %v263 = vadd.s32 %v253, 80
        %v264 = vadd.s32 %v253, 88
        %v265 = vadd.s32 %v253, 96
        %v266 = vadd.s32 %v253, 104
        %v267 = vadd.s32 %v253, 112
        %v268 = vadd.s32 %v253, 120
        %vm269 = vcmp.lt.s32.totalorder %v253, 96
        %vm270 = vcmp.lt.s32.totalorder %v254, 96
        %vm271 = vcmp.lt.s32.totalorder %v255, 96
        %vm272 = vcmp.lt.s32.totalorder %v256, 96
        %vm273 = vcmp.lt.s32.totalorder %v257, 96
        %vm274 = vcmp.lt.s32.totalorder %v258, 96
        %vm275 = vcmp.lt.s32.totalorder %v259, 96
        %vm276 = vcmp.lt.s32.totalorder %v260, 96
        %vm277 = vcmp.lt.s32.totalorder %v261, 96
        %vm278 = vcmp.lt.s32.totalorder %v262, 96
        %vm279 = vcmp.lt.s32.totalorder %v263, 96
        %vm280 = vcmp.lt.s32.totalorder %v264, 96
        %vm281 = vcmp.lt.s32.totalorder %v265, 96
        %vm282 = vcmp.lt.s32.totalorder %v266, 96
        %vm283 = vcmp.lt.s32.totalorder %v267, 96
        %vm284 = vcmp.lt.s32.totalorder %v268, 96
        %v285 = vsel %vm269, 0.5, 1.0
        %v286 = vsel %vm270, 0.5, 1.0
        %v287 = vsel %vm271, 0.5, 1.0
        %v288 = vsel %vm272, 0.5, 1.0
        %v289 = vsel %vm273, 0.5, 1.0
        %v290 = vsel %vm274, 0.5, 1.0
        %v291 = vsel %vm275, 0.5, 1.0
        %v292 = vsel %vm276, 0.5, 1.0
        %v293 = vsel %vm277, 0.5, 1.0
        %v294 = vsel %vm278, 0.5, 1.0
        %v295 = vsel %vm279, 0.5, 1.0
        %v296 = vsel %vm280, 0.5, 1.0
        %v297 = vsel %vm281, 0.5, 1.0
        %v298 = vsel %vm282, 0.5, 1.0
        %v299 = vsel %vm283, 0.5, 1.0
        %v300 = vsel %vm284, 0.5, 1.0
        loop: start=0, step=1, limit=8
        $region33: #{convlstm_forward.2} parent=31 // loop_pre_header
          _
        $region34: #{convlstm_forward.2} parent=31 // loop_header
          %s302 = sphi 0, %s306
          %p303 = scmp.ge.s32.totalorder %s302, 8
          %v307 = vphi 0.0, %v1670
          %v308 = vphi 0.0, %v1671
          %v309 = vphi 0.0, %v1672
          %v310 = vphi 0.0, %v1673
          %v311 = vphi 0.0, %v1674
          %v312 = vphi 0.0, %v1675
          %v313 = vphi 0.0, %v1676
          %v314 = vphi 0.0, %v1677
          %v315 = vphi 0.0, %v1654
          %v316 = vphi 0.0, %v1655
          %v317 = vphi 0.0, %v1656
          %v318 = vphi 0.0, %v1657
          %v319 = vphi 0.0, %v1658
          %v320 = vphi 0.0, %v1659
          %v321 = vphi 0.0, %v1660
          %v322 = vphi 0.0, %v1661
        $region35: #{convlstm_forward.2} parent=31 // loop_header_branch
          %305 = sbr.rel (%p303) target = $region39
        $region36: #{convlstm_forward.2} parent=31 // loop_body
          %s323 = smul.u32 %s302, 2
          %s324 = smul.addr %s323, 8
          %s325 = scalar_lea.vmem %s203, %s324
          %v326 = vld [vmem:[%s325] sm:$0xff]
          %v327 = vld [vmem:[%s325 + $0x8] sm:$0xff]
          %v328 = vsel %vm242, 1, 0
          %v329 = vsel %vm243, 1, 0
          %vm330 = vcmp.eq.s32.totalorder %v328, 1
          %vm331 = vcmp.eq.s32.totalorder %v329, 1
          %343 = vrot.lane.b32.xlu0 0.0, 17
          %v344 = vpop.permute.xlu0 %343
          %345 = vrot.lane.b32.xlu0 %v326, 17
          %v346 = vpop.permute.xlu0 %345
          %347 = vrot.lane.b32.xlu0 %v327, 17
          %v348 = vpop.permute.xlu0 %347
          %349 = vrot.lane.b32.xlu0 %v307, 17
          %v350 = vpop.permute.xlu0 %349
          %351 = vrot.lane.b32.xlu0 %v308, 17
          %v352 = vpop.permute.xlu0 %351
          %353 = vrot.lane.b32.xlu0 %v309, 17
          %v354 = vpop.permute.xlu0 %353
          %355 = vrot.lane.b32.xlu0 %v310, 17
          %v356 = vpop.permute.xlu0 %355
          %357 = vrot.lane.b32.xlu0 %v311, 17
          %v358 = vpop.permute.xlu0 %357
          %359 = vrot.lane.b32.xlu0 %v312, 17
          %v360 = vpop.permute.xlu0 %359
          %361 = vrot.lane.b32.xlu0 %v313, 17
          %v362 = vpop.permute.xlu0 %361
          %363 = vrot.lane.b32.xlu0 %v314, 17
          %v364 = vpop.permute.xlu0 %363
          %vm365 = vcmask 138240
          %v366 = vsel %vm365, %v344, %v346
          %v367 = vsel %vm365, %v346, %v348
          %v368 = vsel %vm365, %v344, %v350
          %v369 = vsel %vm365, %v350, %v352
          %v370 = vsel %vm365, %v344, %v354
          %v371 = vsel %vm365, %v354, %v356
          %v372 = vsel %vm365, %v344, %v358
          %v373 = vsel %vm365, %v358, %v360
          %v374 = vsel %vm365, %v344, %v362
          %v375 = vsel %vm365, %v362, %v364
          %v386 = vsel %vm330, %v366, 0.0
          %v387 = vsel %vm331, %v367, 0.0
          %v388 = vsel %vm330, %v368, 0.0
          %v389 = vsel %vm331, %v369, 0.0
          %v390 = vsel %vm330, %v370, 0.0
          %v391 = vsel %vm331, %v371, 0.0
          %v392 = vsel %vm330, %v372, 0.0
          %v393 = vsel %vm331, %v373, 0.0
          %v394 = vsel %vm330, %v374, 0.0
          %v395 = vsel %vm331, %v375, 0.0
          %396 = vst [vmem:[#allocation2] sm:$0xff] %v386
          %397 = vst [vmem:[#allocation2 + $0x8] sm:$0xff] %v387
          %398 = vst [vmem:[#allocation2 + $0x10] sm:$0xff] %v388
          %399 = vst [vmem:[#allocation2 + $0x18] sm:$0xff] %v389
          %400 = vst [vmem:[#allocation2 + $0x20] sm:$0xff] %v390
          %401 = vst [vmem:[#allocation2 + $0x28] sm:$0xff] %v391
          %402 = vst [vmem:[#allocation2 + $0x30] sm:$0xff] %v392
          %403 = vst [vmem:[#allocation2 + $0x38] sm:$0xff] %v393
          %404 = vst [vmem:[#allocation2 + $0x40] sm:$0xff] %v394
          %405 = vst [vmem:[#allocation2 + $0x48] sm:$0xff] %v395
          %406 = vrot.lane.b32.xlu0 0.0, 16
          %v407 = vpop.permute.xlu0 %406
          %408 = vrot.lane.b32.xlu0 %v326, 16
          %v409 = vpop.permute.xlu0 %408
          %410 = vrot.lane.b32.xlu0 %v327, 16
          %v411 = vpop.permute.xlu0 %410
          %412 = vrot.lane.b32.xlu0 %v307, 16
          %v413 = vpop.permute.xlu0 %412
          %414 = vrot.lane.b32.xlu0 %v308, 16
          %v415 = vpop.permute.xlu0 %414
          %416 = vrot.lane.b32.xlu0 %v309, 16
          %v417 = vpop.permute.xlu0 %416
          %418 = vrot.lane.b32.xlu0 %v310, 16
          %v419 = vpop.permute.xlu0 %418
          %420 = vrot.lane.b32.xlu0 %v311, 16
          %v421 = vpop.permute.xlu0 %420
          %422 = vrot.lane.b32.xlu0 %v312, 16
          %v423 = vpop.permute.xlu0 %422
          %424 = vrot.lane.b32.xlu0 %v313, 16
          %v425 = vpop.permute.xlu0 %424
          %426 = vrot.lane.b32.xlu0 %v314, 16
          %v427 = vpop.permute.xlu0 %426
          %vm428 = vcmask 130048
          %v429 = vsel %vm428, %v407, %v409
          %v430 = vsel %vm428, %v409, %v411
          %v431 = vsel %vm428, %v407, %v413
          %v432 = vsel %vm428, %v413, %v415
          %v433 = vsel %vm428, %v407, %v417
          %v434 = vsel %vm428, %v417, %v419
          %v435 = vsel %vm428, %v407, %v421
          %v436 = vsel %vm428, %v421, %v423
          %v437 = vsel %vm428, %v407, %v425
          %v438 = vsel %vm428, %v425, %v427
          %449 = vst [vmem:[#allocation2 + $0x50] sm:$0xff] %v429
          %450 = vst [vmem:[#allocation2 + $0x58] sm:$0xff] %v430
          %451 = vst [vmem:[#allocation2 + $0x60] sm:$0xff] %v431
          %452 = vst [vmem:[#allocation2 + $0x68] sm:$0xff] %v432
          %453 = vst [vmem:[#allocation2 + $0x70] sm:$0xff] %v433
          %454 = vst [vmem:[#allocation2 + $0x78] sm:$0xff] %v434
          %455 = vst [vmem:[#allocation2 + $0x80] sm:$0xff] %v435
          %456 = vst [vmem:[#allocation2 + $0x88] sm:$0xff] %v436
          %457 = vst [vmem:[#allocation2 + $0x90] sm:$0xff] %v437
          %458 = vst [vmem:[#allocation2 + $0x98] sm:$0xff] %v438
          %v459 = vsel %vm250, 1, 0
          %v460 = vsel %vm251, 1, 0
          %vm461 = vcmp.eq.s32.totalorder %v459, 1
          %vm462 = vcmp.eq.s32.totalorder %v460, 1
          %463 = vrot.lane.b32.xlu0 0.0, 15
          %v464 = vpop.permute.xlu0 %463
          %465 = vrot.lane.b32.xlu0 %v326, 15
          %v466 = vpop.permute.xlu0 %465
          %467 = vrot.lane.b32.xlu0 %v327, 15
          %v468 = vpop.permute.xlu0 %467
          %469 = vrot.lane.b32.xlu0 %v307, 15
          %v470 = vpop.permute.xlu0 %469
          %471 = vrot.lane.b32.xlu0 %v308, 15
          %v472 = vpop.permute.xlu0 %471
          %473 = vrot.lane.b32.xlu0 %v309, 15
          %v474 = vpop.permute.xlu0 %473
          %475 = vrot.lane.b32.xlu0 %v310, 15
          %v476 = vpop.permute.xlu0 %475
          %477 = vrot.lane.b32.xlu0 %v311, 15
          %v478 = vpop.permute.xlu0 %477
          %479 = vrot.lane.b32.xlu0 %v312, 15
          %v480 = vpop.permute.xlu0 %479
          %481 = vrot.lane.b32.xlu0 %v313, 15
          %v482 = vpop.permute.xlu0 %481
          %483 = vrot.lane.b32.xlu0 %v314, 15
          %v484 = vpop.permute.xlu0 %483
          %vm485 = vcmask 121856
          %v486 = vsel %vm485, %v464, %v466
          %v487 = vsel %vm485, %v466, %v468
          %v488 = vsel %vm485, %v464, %v470
          %v489 = vsel %vm485, %v470, %v472
          %v490 = vsel %vm485, %v464, %v474
          %v491 = vsel %vm485, %v474, %v476
          %v492 = vsel %vm485, %v464, %v478
          %v493 = vsel %vm485, %v478, %v480
          %v494 = vsel %vm485, %v464, %v482
          %v495 = vsel %vm485, %v482, %v484
          %v506 = vsel %vm461, %v486, 0.0
          %v507 = vsel %vm462, %v487, 0.0
          %v508 = vsel %vm461, %v488, 0.0
          %v509 = vsel %vm462, %v489, 0.0
          %v510 = vsel %vm461, %v490, 0.0
          %v511 = vsel %vm462, %v491, 0.0
          %v512 = vsel %vm461, %v492, 0.0
          %v513 = vsel %vm462, %v493, 0.0
          %v514 = vsel %vm461, %v494, 0.0
          %v515 = vsel %vm462, %v495, 0.0
          %516 = vst [vmem:[#allocation2 + $0xa0] sm:$0xff] %v506
          %517 = vst [vmem:[#allocation2 + $0xa8] sm:$0xff] %v507
          %518 = vst [vmem:[#allocation2 + $0xb0] sm:$0xff] %v508
          %519 = vst [vmem:[#allocation2 + $0xb8] sm:$0xff] %v509
          %520 = vst [vmem:[#allocation2 + $0xc0] sm:$0xff] %v510
          %521 = vst [vmem:[#allocation2 + $0xc8] sm:$0xff] %v511
          %522 = vst [vmem:[#allocation2 + $0xd0] sm:$0xff] %v512
          %523 = vst [vmem:[#allocation2 + $0xd8] sm:$0xff] %v513
          %524 = vst [vmem:[#allocation2 + $0xe0] sm:$0xff] %v514
          %525 = vst [vmem:[#allocation2 + $0xe8] sm:$0xff] %v515
          %526 = vrot.lane.b32.xlu0 0.0, 1
          %v527 = vpop.permute.xlu0 %526
          %528 = vrot.lane.b32.xlu0 %v326, 1
          %v529 = vpop.permute.xlu0 %528
          %530 = vrot.lane.b32.xlu0 %v327, 1
          %v531 = vpop.permute.xlu0 %530
          %532 = vrot.lane.b32.xlu0 %v307, 1
          %v533 = vpop.permute.xlu0 %532
          %534 = vrot.lane.b32.xlu0 %v308, 1
          %v535 = vpop.permute.xlu0 %534
          %536 = vrot.lane.b32.xlu0 %v309, 1
          %v537 = vpop.permute.xlu0 %536
          %538 = vrot.lane.b32.xlu0 %v310, 1
          %v539 = vpop.permute.xlu0 %538
          %540 = vrot.lane.b32.xlu0 %v311, 1
          %v541 = vpop.permute.xlu0 %540
          %542 = vrot.lane.b32.xlu0 %v312, 1
          %v543 = vpop.permute.xlu0 %542
          %544 = vrot.lane.b32.xlu0 %v313, 1
          %v545 = vpop.permute.xlu0 %544
          %546 = vrot.lane.b32.xlu0 %v314, 1
          %v547 = vpop.permute.xlu0 %546
          %vm548 = vcmask 7168
          %v549 = vsel %vm548, %v527, %v529
          %v550 = vsel %vm548, %v529, %v531
          %v551 = vsel %vm548, %v527, %v533
          %v552 = vsel %vm548, %v533, %v535
          %v553 = vsel %vm548, %v527, %v537
          %v554 = vsel %vm548, %v537, %v539
          %v555 = vsel %vm548, %v527, %v541
          %v556 = vsel %vm548, %v541, %v543
          %v557 = vsel %vm548, %v527, %v545
          %v558 = vsel %vm548, %v545, %v547
          %v569 = vsel %vm330, %v549, 0.0
          %v570 = vsel %vm331, %v550, 0.0
          %v571 = vsel %vm330, %v551, 0.0
          %v572 = vsel %vm331, %v552, 0.0
          %v573 = vsel %vm330, %v553, 0.0
          %v574 = vsel %vm331, %v554, 0.0
          %v575 = vsel %vm330, %v555, 0.0
          %v576 = vsel %vm331, %v556, 0.0
          %v577 = vsel %vm330, %v557, 0.0
          %v578 = vsel %vm331, %v558, 0.0
          %579 = vst [vmem:[#allocation2 + $0xf0] sm:$0xff] %v569
          %580 = vst [vmem:[#allocation2 + $0xf8] sm:$0xff] %v570
          %581 = vst [vmem:[#allocation2 + $0x100] sm:$0xff] %v571
          %582 = vst [vmem:[#allocation2 + $0x108] sm:$0xff] %v572
          %583 = vst [vmem:[#allocation2 + $0x110] sm:$0xff] %v573
          %584 = vst [vmem:[#allocation2 + $0x118] sm:$0xff] %v574
          %585 = vst [vmem:[#allocation2 + $0x120] sm:$0xff] %v575
          %586 = vst [vmem:[#allocation2 + $0x128] sm:$0xff] %v576
          %587 = vst [vmem:[#allocation2 + $0x130] sm:$0xff] %v577
          %588 = vst [vmem:[#allocation2 + $0x138] sm:$0xff] %v578
          %589 = vst [vmem:[#allocation2 + $0x140] sm:$0xff] %v326
          %590 = vst [vmem:[#allocation2 + $0x148] sm:$0xff] %v327
          %591 = vst [vmem:[#allocation2 + $0x150] sm:$0xff] %v307
          %592 = vst [vmem:[#allocation2 + $0x158] sm:$0xff] %v308
          %593 = vst [vmem:[#allocation2 + $0x160] sm:$0xff] %v309
          %594 = vst [vmem:[#allocation2 + $0x168] sm:$0xff] %v310
          %595 = vst [vmem:[#allocation2 + $0x170] sm:$0xff] %v311
          %596 = vst [vmem:[#allocation2 + $0x178] sm:$0xff] %v312
          %597 = vst [vmem:[#allocation2 + $0x180] sm:$0xff] %v313
          %598 = vst [vmem:[#allocation2 + $0x188] sm:$0xff] %v314
          %599 = vrot.lane.b32.xlu0 %v326, 127
          %v600 = vpop.permute.xlu0 %599
          %601 = vrot.lane.b32.xlu0 %v327, 127
          %v602 = vpop.permute.xlu0 %601
          %603 = vrot.lane.b32.xlu0 0.0, 127
          %v604 = vpop.permute.xlu0 %603
          %605 = vrot.lane.b32.xlu0 %v307, 127
          %v606 = vpop.permute.xlu0 %605
          %607 = vrot.lane.b32.xlu0 %v308, 127
          %v608 = vpop.permute.xlu0 %607
          %609 = vrot.lane.b32.xlu0 %v309, 127
          %v610 = vpop.permute.xlu0 %609
          %611 = vrot.lane.b32.xlu0 %v310, 127
          %v612 = vpop.permute.xlu0 %611
          %613 = vrot.lane.b32.xlu0 %v311, 127
          %v614 = vpop.permute.xlu0 %613
          %615 = vrot.lane.b32.xlu0 %v312, 127
          %v616 = vpop.permute.xlu0 %615
          %617 = vrot.lane.b32.xlu0 %v313, 127
          %v618 = vpop.permute.xlu0 %617
          %619 = vrot.lane.b32.xlu0 %v314, 127
          %v620 = vpop.permute.xlu0 %619
          %vm621 = vcmask 1039360
          %v622 = vsel %vm621, %v600, %v602
          %v623 = vsel %vm621, %v602, %v604
          %v624 = vsel %vm621, %v606, %v608
          %v625 = vsel %vm621, %v608, %v604
          %v626 = vsel %vm621, %v610, %v612
          %v627 = vsel %vm621, %v612, %v604
          %v628 = vsel %vm621, %v614, %v616
          %v629 = vsel %vm621, %v616, %v604
          %v630 = vsel %vm621, %v618, %v620
          %v631 = vsel %vm621, %v620, %v604
          %v642 = vsel %vm461, %v622, 0.0
          %v643 = vsel %vm462, %v623, 0.0
          %v644 = vsel %vm461, %v624, 0.0
          %v645 = vsel %vm462, %v625, 0.0
          %v646 = vsel %vm461, %v626, 0.0
          %v647 = vsel %vm462, %v627, 0.0
          %v648 = vsel %vm461, %v628, 0.0
          %v649 = vsel %vm462, %v629, 0.0
          %v650 = vsel %vm461, %v630, 0.0
          %v651 = vsel %vm462, %v631, 0.0
          %652 = vst [vmem:[#allocation2 + $0x190] sm:$0xff] %v642
          %653 = vst [vmem:[#allocation2 + $0x198] sm:$0xff] %v643
          %654 = vst [vmem:[#allocation2 + $0x1a0] sm:$0xff] %v644
          %655 = vst [vmem:[#allocation2 + $0x1a8] sm:$0xff] %v645
          %656 = vst [vmem:[#allocation2 + $0x1b0] sm:$0xff] %v646
          %657 = vst [vmem:[#allocation2 + $0x1b8] sm:$0xff] %v647
          %658 = vst [vmem:[#allocation2 + $0x1c0] sm:$0xff] %v648
          %659 = vst [vmem:[#allocation2 + $0x1c8] sm:$0xff] %v649
          %660 = vst [vmem:[#allocation2 + $0x1d0] sm:$0xff] %v650
          %661 = vst [vmem:[#allocation2 + $0x1d8] sm:$0xff] %v651
          %662 = vrot.lane.b32.xlu0 %v326, 113
          %v663 = vpop.permute.xlu0 %662
          %664 = vrot.lane.b32.xlu0 %v327, 113
          %v665 = vpop.permute.xlu0 %664
          %666 = vrot.lane.b32.xlu0 0.0, 113
          %v667 = vpop.permute.xlu0 %666
          %668 = vrot.lane.b32.xlu0 %v307, 113
          %v669 = vpop.permute.xlu0 %668
          %670 = vrot.lane.b32.xlu0 %v308, 113
          %v671 = vpop.permute.xlu0 %670
          %672 = vrot.lane.b32.xlu0 %v309, 113
          %v673 = vpop.permute.xlu0 %672
          %674 = vrot.lane.b32.xlu0 %v310, 113
          %v675 = vpop.permute.xlu0 %674
          %676 = vrot.lane.b32.xlu0 %v311, 113
          %v677 = vpop.permute.xlu0 %676
          %678 = vrot.lane.b32.xlu0 %v312, 113
          %v679 = vpop.permute.xlu0 %678
          %680 = vrot.lane.b32.xlu0 %v313, 113
          %v681 = vpop.permute.xlu0 %680
          %682 = vrot.lane.b32.xlu0 %v314, 113
          %v683 = vpop.permute.xlu0 %682
          %vm684 = vcmask 924672
          %v685 = vsel %vm684, %v663, %v665
          %v686 = vsel %vm684, %v665, %v667
          %v687 = vsel %vm684, %v669, %v671
          %v688 = vsel %vm684, %v671, %v667
          %v689 = vsel %vm684, %v673, %v675
          %v690 = vsel %vm684, %v675, %v667
          %v691 = vsel %vm684, %v677, %v679
          %v692 = vsel %vm684, %v679, %v667
          %v693 = vsel %vm684, %v681, %v683
          %v694 = vsel %vm684, %v683, %v667
          %v705 = vsel %vm330, %v685, 0.0
          %v706 = vsel %vm331, %v686, 0.0
          %v707 = vsel %vm330, %v687, 0.0
          %v708 = vsel %vm331, %v688, 0.0
          %v709 = vsel %vm330, %v689, 0.0
          %v710 = vsel %vm331, %v690, 0.0
          %v711 = vsel %vm330, %v691, 0.0
          %v712 = vsel %vm331, %v692, 0.0
          %v713 = vsel %vm330, %v693, 0.0
          %v714 = vsel %vm331, %v694, 0.0
          %715 = vst [vmem:[#allocation2 + $0x1e0] sm:$0xff] %v705
          %716 = vst [vmem:[#allocation2 + $0x1e8] sm:$0xff] %v706
          %717 = vst [vmem:[#allocation2 + $0x1f0] sm:$0xff] %v707
          %718 = vst [vmem:[#allocation2 + $0x1f8] sm:$0xff] %v708
          %719 = vst [vmem:[#allocation2 + $0x200] sm:$0xff] %v709
          %720 = vst [vmem:[#allocation2 + $0x208] sm:$0xff] %v710
          %721 = vst [vmem:[#allocation2 + $0x210] sm:$0xff] %v711
          %722 = vst [vmem:[#allocation2 + $0x218] sm:$0xff] %v712
          %723 = vst [vmem:[#allocation2 + $0x220] sm:$0xff] %v713
          %724 = vst [vmem:[#allocation2 + $0x228] sm:$0xff] %v714
          %725 = vrot.lane.b32.xlu0 %v326, 112
          %v726 = vpop.permute.xlu0 %725
          %727 = vrot.lane.b32.xlu0 %v327, 112
          %v728 = vpop.permute.xlu0 %727
          %729 = vrot.lane.b32.xlu0 0.0, 112
          %v730 = vpop.permute.xlu0 %729
          %731 = vrot.lane.b32.xlu0 %v307, 112
          %v732 = vpop.permute.xlu0 %731
          %733 = vrot.lane.b32.xlu0 %v308, 112
          %v734 = vpop.permute.xlu0 %733
          %735 = vrot.lane.b32.xlu0 %v309, 112
          %v736 = vpop.permute.xlu0 %735
          %737 = vrot.lane.b32.xlu0 %v310, 112
          %v738 = vpop.permute.xlu0 %737
          %739 = vrot.lane.b32.xlu0 %v311, 112
          %v740 = vpop.permute.xlu0 %739
          %741 = vrot.lane.b32.xlu0 %v312, 112
          %v742 = vpop.permute.xlu0 %741
          %743 = vrot.lane.b32.xlu0 %v313, 112
          %v744 = vpop.permute.xlu0 %743
          %745 = vrot.lane.b32.xlu0 %v314, 112
          %v746 = vpop.permute.xlu0 %745
          %vm747 = vcmask 916480
          %v748 = vsel %vm747, %v726, %v728
          %v749 = vsel %vm747, %v728, %v730
          %v750 = vsel %vm747, %v732, %v734
          %v751 = vsel %vm747, %v734, %v730
          %v752 = vsel %vm747, %v736, %v738
          %v753 = vsel %vm747, %v738, %v730
          %v754 = vsel %vm747, %v740, %v742
          %v755 = vsel %vm747, %v742, %v730
          %v756 = vsel %vm747, %v744, %v746
          %v757 = vsel %vm747, %v746, %v730
          %768 = vst [vmem:[#allocation2 + $0x230] sm:$0xff] %v748
          %769 = vst [vmem:[#allocation2 + $0x238] sm:$0xff] %v749
          %770 = vst [vmem:[#allocation2 + $0x240] sm:$0xff] %v750
          %771 = vst [vmem:[#allocation2 + $0x248] sm:$0xff] %v751
          %772 = vst [vmem:[#allocation2 + $0x250] sm:$0xff] %v752
          %773 = vst [vmem:[#allocation2 + $0x258] sm:$0xff] %v753
          %774 = vst [vmem:[#allocation2 + $0x260] sm:$0xff] %v754
          %775 = vst [vmem:[#allocation2 + $0x268] sm:$0xff] %v755
          %776 = vst [vmem:[#allocation2 + $0x270] sm:$0xff] %v756
          %777 = vst [vmem:[#allocation2 + $0x278] sm:$0xff] %v757
          %778 = vrot.lane.b32.xlu0 %v326, 111
          %v779 = vpop.permute.xlu0 %778
          %780 = vrot.lane.b32.xlu0 %v327, 111
          %v781 = vpop.permute.xlu0 %780
          %782 = vrot.lane.b32.xlu0 0.0, 111
          %v783 = vpop.permute.xlu0 %782
          %784 = vrot.lane.b32.xlu0 %v307, 111
          %v785 = vpop.permute.xlu0 %784
          %786 = vrot.lane.b32.xlu0 %v308, 111
          %v787 = vpop.permute.xlu0 %786
          %788 = vrot.lane.b32.xlu0 %v309, 111
          %v789 = vpop.permute.xlu0 %788
          %790 = vrot.lane.b32.xlu0 %v310, 111
          %v791 = vpop.permute.xlu0 %790
          %792 = vrot.lane.b32.xlu0 %v311, 111
          %v793 = vpop.permute.xlu0 %792
          %794 = vrot.lane.b32.xlu0 %v312, 111
          %v795 = vpop.permute.xlu0 %794
          %796 = vrot.lane.b32.xlu0 %v313, 111
          %v797 = vpop.permute.xlu0 %796
          %798 = vrot.lane.b32.xlu0 %v314, 111
          %v799 = vpop.permute.xlu0 %798
          %vm800 = vcmask 908288
          %v801 = vsel %vm800, %v779, %v781
          %v802 = vsel %vm800, %v781, %v783
          %v803 = vsel %vm800, %v785, %v787
          %v804 = vsel %vm800, %v787, %v783
          %v805 = vsel %vm800, %v789, %v791
          %v806 = vsel %vm800, %v791, %v783
          %v807 = vsel %vm800, %v793, %v795
          %v808 = vsel %vm800, %v795, %v783
          %v809 = vsel %vm800, %v797, %v799
          %v810 = vsel %vm800, %v799, %v783
          %v821 = vsel %vm461, %v801, 0.0
          %v822 = vsel %vm462, %v802, 0.0
          %v823 = vsel %vm461, %v803, 0.0
          %v824 = vsel %vm462, %v804, 0.0
          %v825 = vsel %vm461, %v805, 0.0
          %v826 = vsel %vm462, %v806, 0.0
          %v827 = vsel %vm461, %v807, 0.0
          %v828 = vsel %vm462, %v808, 0.0
          %v829 = vsel %vm461, %v809, 0.0
          %v830 = vsel %vm462, %v810, 0.0
          %831 = vst [vmem:[#allocation2 + $0x280] sm:$0xff] %v821
          %832 = vst [vmem:[#allocation2 + $0x288] sm:$0xff] %v822
          %833 = vst [vmem:[#allocation2 + $0x290] sm:$0xff] %v823
          %834 = vst [vmem:[#allocation2 + $0x298] sm:$0xff] %v824
          %835 = vst [vmem:[#allocation2 + $0x2a0] sm:$0xff] %v825
          %836 = vst [vmem:[#allocation2 + $0x2a8] sm:$0xff] %v826
          %837 = vst [vmem:[#allocation2 + $0x2b0] sm:$0xff] %v827
          %838 = vst [vmem:[#allocation2 + $0x2b8] sm:$0xff] %v828
          %839 = vst [vmem:[#allocation2 + $0x2c0] sm:$0xff] %v829
          %840 = vst [vmem:[#allocation2 + $0x2c8] sm:$0xff] %v830
          %v841 = vld [vmem:[%s1] sm:$0xff]
          %v842 = vld [vmem:[%s1 + $0x8] sm:$0xff]
          %v843 = vld [vmem:[%s1 + $0x10] sm:$0xff]
          %v844 = vld [vmem:[%s1 + $0x18] sm:$0xff]
          %v845 = vld [vmem:[%s1 + $0x20] sm:$0xff]
          %v846 = vld [vmem:[%s1 + $0x28] sm:$0xff]
          %v847 = vld [vmem:[%s1 + $0x30] sm:$0xff]
          %v848 = vld [vmem:[%s1 + $0x38] sm:$0xff]
          %v849 = vld [vmem:[%s1 + $0x40] sm:$0xff]
          %v850 = vld [vmem:[%s1 + $0x48] sm:$0xff]
          %v851 = vld [vmem:[%s1 + $0x50] sm:$0xff]
          %v852 = vld [vmem:[%s1 + $0x58] sm:$0xff]
          %v853 = vld [vmem:[%s1 + $0x60] sm:$0xff]
          %v854 = vld [vmem:[%s1 + $0x68] sm:$0xff]
          %v855 = vld [vmem:[%s1 + $0x70] sm:$0xff]
          %v856 = vld [vmem:[%s1 + $0x78] sm:$0xff]
          %v857 = vld [vmem:[%s1 + $0x80] sm:$0xff]
          %v858 = vld [vmem:[%s1 + $0x88] sm:$0xff]
          %v859 = vld [vmem:[%s1 + $0x90] sm:$0xff]
          %v860 = vld [vmem:[%s1 + $0x98] sm:$0xff]
          %v861 = vld [vmem:[%s1 + $0xa0] sm:$0xff]
          %v862 = vld [vmem:[%s1 + $0xa8] sm:$0xff]
          %v863 = vld [vmem:[%s1 + $0xb0] sm:$0xff]
          %v864 = vld [vmem:[%s1 + $0xb8] sm:$0xff]
          %v865 = vld [vmem:[%s1 + $0xc0] sm:$0xff]
          %v866 = vld [vmem:[%s1 + $0xc8] sm:$0xff]
          %v867 = vld [vmem:[%s1 + $0xd0] sm:$0xff]
          %v868 = vld [vmem:[%s1 + $0xd8] sm:$0xff]
          %v869 = vld [vmem:[%s1 + $0xe0] sm:$0xff]
          %v870 = vld [vmem:[%s1 + $0xe8] sm:$0xff]
          %v871 = vld [vmem:[%s1 + $0xf0] sm:$0xff]
          %v872 = vld [vmem:[%s1 + $0xf8] sm:$0xff]
          %v873 = vld [vmem:[%s1 + $0x100] sm:$0xff]
          %v874 = vld [vmem:[%s1 + $0x108] sm:$0xff]
          %v875 = vld [vmem:[%s1 + $0x110] sm:$0xff]
          %v876 = vld [vmem:[%s1 + $0x118] sm:$0xff]
          %v877 = vld [vmem:[%s1 + $0x120] sm:$0xff]
          %v878 = vld [vmem:[%s1 + $0x128] sm:$0xff]
          %v879 = vld [vmem:[%s1 + $0x130] sm:$0xff]
          %v880 = vld [vmem:[%s1 + $0x138] sm:$0xff]
          %v881 = vld [vmem:[%s1 + $0x140] sm:$0xff]
          %v882 = vld [vmem:[%s1 + $0x148] sm:$0xff]
          %v883 = vld [vmem:[%s1 + $0x150] sm:$0xff]
          %v884 = vld [vmem:[%s1 + $0x158] sm:$0xff]
          %v885 = vld [vmem:[%s1 + $0x160] sm:$0xff]
          %v886 = vld [vmem:[%s1 + $0x168] sm:$0xff]
          %v887 = vld [vmem:[%s1 + $0x170] sm:$0xff]
          %v888 = vld [vmem:[%s1 + $0x178] sm:$0xff]
          %v889 = vld [vmem:[#allocation2] sm:$0xff]
          %v890 = vld [vmem:[#allocation2 + $0x8] sm:$0xff]
          %v891 = vld [vmem:[#allocation2 + $0x10] sm:$0xff]
          %v892 = vld [vmem:[#allocation2 + $0x18] sm:$0xff]
          %v893 = vld [vmem:[#allocation2 + $0x20] sm:$0xff]
          %v894 = vld [vmem:[#allocation2 + $0x28] sm:$0xff]
          %v895 = vld [vmem:[#allocation2 + $0x30] sm:$0xff]
          %v896 = vld [vmem:[#allocation2 + $0x38] sm:$0xff]
          %v897 = vld [vmem:[#allocation2 + $0x40] sm:$0xff]
          %v898 = vld [vmem:[#allocation2 + $0x48] sm:$0xff]
          %v899 = vld [vmem:[#allocation2 + $0x50] sm:$0xff]
          %v900 = vld [vmem:[#allocation2 + $0x58] sm:$0xff]
          %v901 = vld [vmem:[#allocation2 + $0x60] sm:$0xff]
          %v902 = vld [vmem:[#allocation2 + $0x68] sm:$0xff]
          %v903 = vld [vmem:[#allocation2 + $0x70] sm:$0xff]
          %v904 = vld [vmem:[#allocation2 + $0x78] sm:$0xff]
          %v905 = vld [vmem:[#allocation2 + $0x80] sm:$0xff]
          %v906 = vld [vmem:[#allocation2 + $0x88] sm:$0xff]
          %v907 = vld [vmem:[#allocation2 + $0x90] sm:$0xff]
          %v908 = vld [vmem:[#allocation2 + $0x98] sm:$0xff]
          %v909 = vld [vmem:[#allocation2 + $0xa0] sm:$0xff]
          %v910 = vld [vmem:[#allocation2 + $0xa8] sm:$0xff]
          %v911 = vld [vmem:[#allocation2 + $0xb0] sm:$0xff]
          %v912 = vld [vmem:[#allocation2 + $0xb8] sm:$0xff]
          %v913 = vld [vmem:[#allocation2 + $0xc0] sm:$0xff]
          %v914 = vld [vmem:[#allocation2 + $0xc8] sm:$0xff]
          %v915 = vld [vmem:[#allocation2 + $0xd0] sm:$0xff]
          %v916 = vld [vmem:[#allocation2 + $0xd8] sm:$0xff]
          %v917 = vld [vmem:[#allocation2 + $0xe0] sm:$0xff]
          %v918 = vld [vmem:[#allocation2 + $0xe8] sm:$0xff]
          %v919 = vld [vmem:[#allocation2 + $0xf0] sm:$0xff]
          %v920 = vld [vmem:[#allocation2 + $0xf8] sm:$0xff]
          %v921 = vld [vmem:[#allocation2 + $0x100] sm:$0xff]
          %v922 = vld [vmem:[#allocation2 + $0x108] sm:$0xff]
          %v923 = vld [vmem:[#allocation2 + $0x110] sm:$0xff]
          %v924 = vld [vmem:[#allocation2 + $0x118] sm:$0xff]
          %v925 = vld [vmem:[#allocation2 + $0x120] sm:$0xff]
          %v926 = vld [vmem:[#allocation2 + $0x128] sm:$0xff]
          %v927 = vld [vmem:[#allocation2 + $0x130] sm:$0xff]
          %v928 = vld [vmem:[#allocation2 + $0x138] sm:$0xff]
          %v929 = vld [vmem:[#allocation2 + $0x140] sm:$0xff]
          %v930 = vld [vmem:[#allocation2 + $0x148] sm:$0xff]
          %v931 = vld [vmem:[#allocation2 + $0x150] sm:$0xff]
          %v932 = vld [vmem:[#allocation2 + $0x158] sm:$0xff]
          %v933 = vld [vmem:[#allocation2 + $0x160] sm:$0xff]
          %v934 = vld [vmem:[#allocation2 + $0x168] sm:$0xff]
          %v935 = vld [vmem:[#allocation2 + $0x170] sm:$0xff]
          %v936 = vld [vmem:[#allocation2 + $0x178] sm:$0xff]
          %v937 = vld [vmem:[#allocation2 + $0x180] sm:$0xff]
          %v938 = vld [vmem:[#allocation2 + $0x188] sm:$0xff]
          %v939 = vld [vmem:[#allocation2 + $0x190] sm:$0xff]
          %v940 = vld [vmem:[#allocation2 + $0x198] sm:$0xff]
          %v941 = vld [vmem:[#allocation2 + $0x1a0] sm:$0xff]
          %v942 = vld [vmem:[#allocation2 + $0x1a8] sm:$0xff]
          %v943 = vld [vmem:[#allocation2 + $0x1b0] sm:$0xff]
          %v944 = vld [vmem:[#allocation2 + $0x1b8] sm:$0xff]
          %v945 = vld [vmem:[#allocation2 + $0x1c0] sm:$0xff]
          %v946 = vld [vmem:[#allocation2 + $0x1c8] sm:$0xff]
          %v947 = vld [vmem:[#allocation2 + $0x1d0] sm:$0xff]
          %v948 = vld [vmem:[#allocation2 + $0x1d8] sm:$0xff]
          %v949 = vld [vmem:[#allocation2 + $0x1e0] sm:$0xff]
          %v950 = vld [vmem:[#allocation2 + $0x1e8] sm:$0xff]
          %v951 = vld [vmem:[#allocation2 + $0x1f0] sm:$0xff]
          %v952 = vld [vmem:[#allocation2 + $0x1f8] sm:$0xff]
          %v953 = vld [vmem:[#allocation2 + $0x200] sm:$0xff]
          %v954 = vld [vmem:[#allocation2 + $0x208] sm:$0xff]
          %v955 = vld [vmem:[#allocation2 + $0x210] sm:$0xff]
          %v956 = vld [vmem:[#allocation2 + $0x218] sm:$0xff]
          %v957 = vld [vmem:[#allocation2 + $0x220] sm:$0xff]
          %v958 = vld [vmem:[#allocation2 + $0x228] sm:$0xff]
          %v959 = vld [vmem:[#allocation2 + $0x230] sm:$0xff]
          %v960 = vld [vmem:[#allocation2 + $0x238] sm:$0xff]
          %v961 = vld [vmem:[#allocation2 + $0x240] sm:$0xff]
          %v962 = vld [vmem:[#allocation2 + $0x248] sm:$0xff]
          %v963 = vld [vmem:[#allocation2 + $0x250] sm:$0xff]
          %v964 = vld [vmem:[#allocation2 + $0x258] sm:$0xff]
          %v965 = vld [vmem:[#allocation2 + $0x260] sm:$0xff]
          %v966 = vld [vmem:[#allocation2 + $0x268] sm:$0xff]
          %v967 = vld [vmem:[#allocation2 + $0x270] sm:$0xff]
          %v968 = vld [vmem:[#allocation2 + $0x278] sm:$0xff]
          %v969 = vld [vmem:[#allocation2 + $0x280] sm:$0xff]
          %v970 = vld [vmem:[#allocation2 + $0x288] sm:$0xff]
          %v971 = vld [vmem:[#allocation2 + $0x290] sm:$0xff]
          %v972 = vld [vmem:[#allocation2 + $0x298] sm:$0xff]
          %v973 = vld [vmem:[#allocation2 + $0x2a0] sm:$0xff]
          %v974 = vld [vmem:[#allocation2 + $0x2a8] sm:$0xff]
          %v975 = vld [vmem:[#allocation2 + $0x2b0] sm:$0xff]
          %v976 = vld [vmem:[#allocation2 + $0x2b8] sm:$0xff]
          %v977 = vld [vmem:[#allocation2 + $0x2c0] sm:$0xff]
          %v978 = vld [vmem:[#allocation2 + $0x2c8] sm:$0xff]
          %v979 = vld [vmem:[%s2] sm:$0xff]
          %v980 = vld [vmem:[%s2 + $0x8] sm:$0xff]
          %v981 = vld [vmem:[%s2 + $0x10] sm:$0xff]
          %v982 = vld [vmem:[%s2 + $0x18] sm:$0xff]
          %v983 = vld [vmem:[%s2 + $0x20] sm:$0xff]
          %v984 = vld [vmem:[%s2 + $0x28] sm:$0xff]
          %v985 = vld [vmem:[%s2 + $0x30] sm:$0xff]
          %v986 = vld [vmem:[%s2 + $0x38] sm:$0xff]
          %v987 = vld [vmem:[%s2 + $0x40] sm:$0xff]
          %v988 = vld [vmem:[%s2 + $0x48] sm:$0xff]
          %v989 = vld [vmem:[%s2 + $0x50] sm:$0xff]
          %v990 = vld [vmem:[%s2 + $0x58] sm:$0xff]
          %v991 = vld [vmem:[%s2 + $0x60] sm:$0xff]
          %v992 = vld [vmem:[%s2 + $0x68] sm:$0xff]
          %v993 = vld [vmem:[%s2 + $0x70] sm:$0xff]
          %v994 = vld [vmem:[%s2 + $0x78] sm:$0xff]
          %996 = vset.pattern.permute.xlu0 0
          %997 = vperm.xlu0 %996, %v979
          %v998 = vpop.permute.xlu0 %997
          %1001 = vset.pattern.permute.xlu0 0
          %1002 = vperm.xlu0 %1001, %v980
          %v1003 = vpop.permute.xlu0 %1002
          %1006 = vset.pattern.permute.xlu0 0
          %1007 = vperm.xlu0 %1006, %v981
          %v1008 = vpop.permute.xlu0 %1007
          %1011 = vset.pattern.permute.xlu0 0
          %1012 = vperm.xlu0 %1011, %v982
          %v1013 = vpop.permute.xlu0 %1012
          %1016 = vset.pattern.permute.xlu0 0
          %1017 = vperm.xlu0 %1016, %v983
          %v1018 = vpop.permute.xlu0 %1017
          %1021 = vset.pattern.permute.xlu0 0
          %1022 = vperm.xlu0 %1021, %v984
          %v1023 = vpop.permute.xlu0 %1022
          %1026 = vset.pattern.permute.xlu0 0
          %1027 = vperm.xlu0 %1026, %v985
          %v1028 = vpop.permute.xlu0 %1027
          %1031 = vset.pattern.permute.xlu0 0
          %1032 = vperm.xlu0 %1031, %v986
          %v1033 = vpop.permute.xlu0 %1032
          %1036 = vset.pattern.permute.xlu0 0
          %1037 = vperm.xlu0 %1036, %v987
          %v1038 = vpop.permute.xlu0 %1037
          %1041 = vset.pattern.permute.xlu0 0
          %1042 = vperm.xlu0 %1041, %v988
          %v1043 = vpop.permute.xlu0 %1042
          %1046 = vset.pattern.permute.xlu0 0
          %1047 = vperm.xlu0 %1046, %v989
          %v1048 = vpop.permute.xlu0 %1047
          %1051 = vset.pattern.permute.xlu0 0
          %1052 = vperm.xlu0 %1051, %v990
          %v1053 = vpop.permute.xlu0 %1052
          %1056 = vset.pattern.permute.xlu0 0
          %1057 = vperm.xlu0 %1056, %v991
          %v1058 = vpop.permute.xlu0 %1057
          %1061 = vset.pattern.permute.xlu0 0
          %1062 = vperm.xlu0 %1061, %v992
          %v1063 = vpop.permute.xlu0 %1062
          %1066 = vset.pattern.permute.xlu0 0
          %1067 = vperm.xlu0 %1066, %v993
          %v1068 = vpop.permute.xlu0 %1067
          %1071 = vset.pattern.permute.xlu0 0
          %1072 = vperm.xlu0 %1071, %v994
          %v1073 = vpop.permute.xlu0 %1072
          %vm1075 = vcmask 850944
          %v1077 = vsel %vm1075, %v843, 0
          %v1080 = vsel %vm1075, %v846, 0
          %v1083 = vsel %vm1075, %v849, 0
          %v1086 = vsel %vm1075, %v852, 0
          %v1089 = vsel %vm1075, %v855, 0
          %v1092 = vsel %vm1075, %v858, 0
          %v1095 = vsel %vm1075, %v861, 0
          %v1098 = vsel %vm1075, %v864, 0
          %v1101 = vsel %vm1075, %v867, 0
          %v1104 = vsel %vm1075, %v870, 0
          %v1107 = vsel %vm1075, %v873, 0
          %v1110 = vsel %vm1075, %v876, 0
          %v1113 = vsel %vm1075, %v879, 0
          %v1116 = vsel %vm1075, %v882, 0
          %v1119 = vsel %vm1075, %v885, 0
          %v1122 = vsel %vm1075, %v888, 0
          %1124 = vmatprep.subr.mxu0 %v890
          %1125 = vmatpush1.msra.mxu0 %v889
          %1126 = vmatprep.subr.mxu0 %v892
          %1127 = vmatpush1.msra.mxu0 %v891
          %1128 = vmatprep.subr.mxu0 %v894
          %1129 = vmatpush1.msra.mxu0 %v893
          %1130 = vmatprep.subr.mxu0 %v896
          %1131 = vmatpush1.msra.mxu0 %v895
          %1132 = vmatprep.subr.mxu0 %v898
          %1133 = vmatpush1.msra.mxu0 %v897
          %1134 = vmatprep.subr.mxu0 %v900
          %1135 = vmatpush1.msra.mxu0 %v899
          %1136 = vmatprep.subr.mxu0 %v902
          %1137 = vmatpush1.msra.mxu0 %v901
          %1138 = vmatprep.subr.mxu0 %v904
          %1139 = vmatpush1.msra.mxu0 %v903
          %1140 = vmatprep.subr.mxu0 %v906
          %1141 = vmatpush1.msra.mxu0 %v905
          %1142 = vmatprep.subr.mxu0 %v908
          %1143 = vmatpush1.msra.mxu0 %v907
          %1144 = vmatprep.subr.mxu0 %v910
          %1145 = vmatpush1.msra.mxu0 %v909
          %1146 = vmatprep.subr.mxu0 %v912
          %1147 = vmatpush1.msra.mxu0 %v911
          %1148 = vmatprep.subr.mxu0 %v914
          %1149 = vmatpush1.msra.mxu0 %v913
          %1150 = vmatprep.subr.mxu0 %v916
          %1151 = vmatpush1.msra.mxu0 %v915
          %1152 = vmatprep.subr.mxu0 %v918
          %1153 = vmatpush1.msra.mxu0 %v917
          %1154 = vmatprep.subr.mxu0 %v920
          %1155 = vmatpush1.msra.mxu0 %v919
          %1156 = vmatprep.subr.mxu0 %v922
          %1157 = vmatpush1.msra.mxu0 %v921
          %1158 = vmatprep.subr.mxu0 %v924
          %1159 = vmatpush1.msra.mxu0 %v923
          %1160 = vmatprep.subr.mxu0 %v926
          %1161 = vmatpush1.msra.mxu0 %v925
          %1162 = vmatprep.subr.mxu0 %v928
          %1163 = vmatpush1.msra.mxu0 %v927
          %1164 = vmatprep.subr.mxu0 %v930
          %1165 = vmatpush1.msra.mxu0 %v929
          %1166 = vmatprep.subr.mxu0 %v932
          %1167 = vmatpush1.msra.mxu0 %v931
          %1168 = vmatprep.subr.mxu0 %v934
          %1169 = vmatpush1.msra.mxu0 %v933
          %1170 = vmatprep.subr.mxu0 %v936
          %1171 = vmatpush1.msra.mxu0 %v935
          %1172 = vmatprep.subr.mxu0 %v938
          %1173 = vmatpush1.msra.mxu0 %v937
          %1174 = vmatprep.subr.mxu0 %v940
          %1175 = vmatpush1.msra.mxu0 %v939
          %1176 = vmatprep.subr.mxu0 %v942
          %1177 = vmatpush1.msra.mxu0 %v941
          %1178 = vmatprep.subr.mxu0 %v944
          %1179 = vmatpush1.msra.mxu0 %v943
          %1180 = vmatprep.subr.mxu0 %v946
          %1181 = vmatpush1.msra.mxu0 %v945
          %1182 = vmatprep.subr.mxu0 %v948
          %1183 = vmatpush1.msra.mxu0 %v947
          %1184 = vmatprep.subr.mxu0 %v950
          %1185 = vmatpush1.msra.mxu0 %v949
          %1186 = vmatprep.subr.mxu0 %v952
          %1187 = vmatpush1.msra.mxu0 %v951
          %1188 = vmatprep.mubr.f32.mxu0 %v842
          %1189 = vmatmul.mubr.f32.gmra.mrb[0].mxu0 %v841
          %v1190 = vpop.f32.mrb[0].mxu0
          %v1191 = vadd.f32 %v998, %v1190
          %v1192 = vpop.f32.mrb[0].mxu0
          %v1193 = vadd.f32 %v998, %v1192
          %1194 = vmatprep.mubr.f32.mxu0 %v845
          %1195 = vmatmul.mubr.f32.gmra.mrb[0].mxu0 %v844
          %v1196 = vpop.f32.mrb[0].mxu0
          %v1197 = vadd.f32 %v1003, %v1196
          %v1198 = vpop.f32.mrb[0].mxu0
          %v1199 = vadd.f32 %v1003, %v1198
          %1200 = vmatprep.mubr.f32.mxu0 %v848
          %1201 = vmatmul.mubr.f32.gmra.mrb[0].mxu0 %v847
          %v1202 = vpop.f32.mrb[0].mxu0
          %v1203 = vadd.f32 %v1008, %v1202
          %v1204 = vpop.f32.mrb[0].mxu0
          %v1205 = vadd.f32 %v1008, %v1204
          %1206 = vmatprep.mubr.f32.mxu0 %v851
          %1207 = vmatmul.mubr.f32.gmra.mrb[0].mxu0 %v850
          %v1208 = vpop.f32.mrb[0].mxu0
          %v1209 = vadd.f32 %v1013, %v1208
          %v1210 = vpop.f32.mrb[0].mxu0
          %v1211 = vadd.f32 %v1013, %v1210
          %1212 = vmatprep.mubr.f32.mxu0 %v854
          %1213 = vmatmul.mubr.f32.gmra.mrb[0].mxu0 %v853
          %v1214 = vpop.f32.mrb[0].mxu0
          %v1215 = vadd.f32 %v1018, %v1214
          %v1216 = vpop.f32.mrb[0].mxu0
          %v1217 = vadd.f32 %v1018, %v1216
          %1218 = vmatprep.mubr.f32.mxu0 %v857
          %1219 = vmatmul.mubr.f32.gmra.mrb[0].mxu0 %v856
          %v1220 = vpop.f32.mrb[0].mxu0
          %v1221 = vadd.f32 %v1023, %v1220
          %v1222 = vpop.f32.mrb[0].mxu0
          %v1223 = vadd.f32 %v1023, %v1222
          %1224 = vmatprep.mubr.f32.mxu0 %v860
          %1225 = vmatmul.mubr.f32.gmra.mrb[0].mxu0 %v859
          %v1226 = vpop.f32.mrb[0].mxu0
          %v1227 = vadd.f32 %v1028, %v1226
          %v1228 = vpop.f32.mrb[0].mxu0
          %v1229 = vadd.f32 %v1028, %v1228
          %1230 = vmatprep.mubr.f32.mxu0 %v863
          %1231 = vmatmul.mubr.f32.gmra.mrb[0].mxu0 %v862
          %v1232 = vpop.f32.mrb[0].mxu0
          %v1233 = vadd.f32 %v1033, %v1232
          %v1234 = vpop.f32.mrb[0].mxu0
          %v1235 = vadd.f32 %v1033, %v1234
          %1236 = vmatprep.mubr.f32.mxu0 %v866
          %1237 = vmatmul.mubr.f32.gmra.mrb[0].mxu0 %v865
          %v1238 = vpop.f32.mrb[0].mxu0
          %v1239 = vadd.f32 %v1038, %v1238
          %v1240 = vpop.f32.mrb[0].mxu0
          %v1241 = vadd.f32 %v1038, %v1240
          %1242 = vmatprep.mubr.f32.mxu0 %v869
          %1243 = vmatmul.mubr.f32.gmra.mrb[0].mxu0 %v868
          %v1244 = vpop.f32.mrb[0].mxu0
          %v1245 = vadd.f32 %v1043, %v1244
          %v1246 = vpop.f32.mrb[0].mxu0
          %v1247 = vadd.f32 %v1043, %v1246
          %1248 = vmatprep.mubr.f32.mxu0 %v872
          %1249 = vmatmul.mubr.f32.gmra.mrb[0].mxu0 %v871
          %v1250 = vpop.f32.mrb[0].mxu0
          %v1251 = vadd.f32 %v1048, %v1250
          %v1252 = vpop.f32.mrb[0].mxu0
          %v1253 = vadd.f32 %v1048, %v1252
          %1254 = vmatprep.mubr.f32.mxu0 %v875
          %1255 = vmatmul.mubr.f32.gmra.mrb[0].mxu0 %v874
          %v1256 = vpop.f32.mrb[0].mxu0
          %v1257 = vadd.f32 %v1053, %v1256
          %v1258 = vpop.f32.mrb[0].mxu0
          %v1259 = vadd.f32 %v1053, %v1258
          %1260 = vmatprep.mubr.f32.mxu0 %v878
          %1261 = vmatmul.mubr.f32.gmra.mrb[0].mxu0 %v877
          %v1262 = vpop.f32.mrb[0].mxu0
          %v1263 = vadd.f32 %v1058, %v1262
          %v1264 = vpop.f32.mrb[0].mxu0
          %v1265 = vadd.f32 %v1058, %v1264
          %1266 = vmatprep.mubr.f32.mxu0 %v881
          %1267 = vmatmul.mubr.f32.gmra.mrb[0].mxu0 %v880
          %v1268 = vpop.f32.mrb[0].mxu0
          %v1269 = vadd.f32 %v1063, %v1268
          %v1270 = vpop.f32.mrb[0].mxu0
          %v1271 = vadd.f32 %v1063, %v1270
          %1272 = vmatprep.mubr.f32.mxu0 %v884
          %1273 = vmatmul.mubr.f32.gmra.mrb[0].mxu0 %v883
          %v1274 = vpop.f32.mrb[0].mxu0
          %v1275 = vadd.f32 %v1068, %v1274
          %v1276 = vpop.f32.mrb[0].mxu0
          %v1277 = vadd.f32 %v1068, %v1276
          %1278 = vmatprep.mubr.f32.mxu0 %v887
          %1279 = vmatmul.mubr.f32.gmra.mrb[0].mxu0 %v886
          %v1280 = vpop.f32.mrb[0].mxu0
          %v1281 = vadd.f32 %v1073, %v1280
          %v1282 = vpop.f32.mrb[0].mxu0
          %v1283 = vadd.f32 %v1073, %v1282
          %1284 = vdwg.mxu0
          %1285 = vmatprep.subr.mxu0 %v954
          %1286 = vmatpush1.msra.mxu0 %v953
          %1287 = vmatprep.subr.mxu0 %v956
          %1288 = vmatpush1.msra.mxu0 %v955
          %1289 = vmatprep.subr.mxu0 %v958
          %1290 = vmatpush1.msra.mxu0 %v957
          %1291 = vmatprep.subr.mxu0 %v960
          %1292 = vmatpush1.msra.mxu0 %v959
          %1293 = vmatprep.subr.mxu0 %v962
          %1294 = vmatpush1.msra.mxu0 %v961
          %1295 = vmatprep.subr.mxu0 %v964
          %1296 = vmatpush1.msra.mxu0 %v963
          %1297 = vmatprep.subr.mxu0 %v966
          %1298 = vmatpush1.msra.mxu0 %v965
          %1299 = vmatprep.subr.mxu0 %v968
          %1300 = vmatpush1.msra.mxu0 %v967
          %1301 = vmatprep.subr.mxu0 %v970
          %1302 = vmatpush1.msra.mxu0 %v969
          %1303 = vmatprep.subr.mxu0 %v972
          %1304 = vmatpush1.msra.mxu0 %v971
          %1305 = vmatprep.subr.mxu0 %v974
          %1306 = vmatpush1.msra.mxu0 %v973
          %1307 = vmatprep.subr.mxu0 %v976
          %1308 = vmatpush1.msra.mxu0 %v975
          %1309 = vmatprep.subr.mxu0 %v978
          %1310 = vmatpush1.msra.mxu0 %v977
          %1311 = vmatprep.subr.mxu0 0.0
          %1312 = vmatpush1.msra.mxu0 0.0
          %1313 = vmatprep.subr.mxu0 0.0
          %1314 = vmatpush1.msra.mxu0 0.0
          %1315 = vmatprep.subr.mxu0 0.0
          %1316 = vmatpush1.msra.mxu0 0.0
          %1317 = vmatprep.subr.mxu0 0.0
          %1318 = vmatpush1.msra.mxu0 0.0
          %1319 = vmatprep.subr.mxu0 0.0
          %1320 = vmatpush1.msra.mxu0 0.0
          %1321 = vmatprep.subr.mxu0 0.0
          %1322 = vmatpush1.msra.mxu0 0.0
          %1323 = vmatprep.subr.mxu0 0.0
          %1324 = vmatpush1.msra.mxu0 0.0
          %1325 = vmatprep.subr.mxu0 0.0
          %1326 = vmatpush1.msra.mxu0 0.0
          %1327 = vmatprep.subr.mxu0 0.0
          %1328 = vmatpush1.msra.mxu0 0.0
          %1329 = vmatprep.subr.mxu0 0.0
          %1330 = vmatpush1.msra.mxu0 0.0
          %1331 = vmatprep.subr.mxu0 0.0
          %1332 = vmatpush1.msra.mxu0 0.0
          %1333 = vmatprep.subr.mxu0 0.0
          %1334 = vmatpush1.msra.mxu0 0.0
          %1335 = vmatprep.subr.mxu0 0.0
          %1336 = vmatpush1.msra.mxu0 0.0
          %1337 = vmatprep.subr.mxu0 0.0
          %1338 = vmatpush1.msra.mxu0 0.0
          %1339 = vmatprep.subr.mxu0 0.0
          %1340 = vmatpush1.msra.mxu0 0.0
          %1341 = vmatprep.subr.mxu0 0.0
          %1342 = vmatpush1.msra.mxu0 0.0
          %1343 = vmatprep.subr.mxu0 0.0
          %1344 = vmatpush1.msra.mxu0 0.0
          %1345 = vmatprep.subr.mxu0 0.0
          %1346 = vmatpush1.msra.mxu0 0.0
          %1347 = vmatprep.subr.mxu0 0.0
          %1348 = vmatpush1.msra.mxu0 0.0
          %1349 = vmatprep.mubr.f32.mxu0 0.0
          %1350 = vmatmul.mubr.f32.gmra.mrb[0].mxu0 %v1077
          %v1351 = vpop.f32.mrb[0].mxu0
          %v1352 = vadd.f32 %v1191, %v1351
          %v1353 = vpop.f32.mrb[0].mxu0
          %v1354 = vadd.f32 %v1193, %v1353
          %1355 = vmatprep.mubr.f32.mxu0 0.0
          %1356 = vmatmul.mubr.f32.gmra.mrb[0].mxu0 %v1080
          %v1357 = vpop.f32.mrb[0].mxu0
          %v1358 = vadd.f32 %v1197, %v1357
          %v1359 = vpop.f32.mrb[0].mxu0
          %v1360 = vadd.f32 %v1199, %v1359
          %1361 = vmatprep.mubr.f32.mxu0 0.0
          %1362 = vmatmul.mubr.f32.gmra.mrb[0].mxu0 %v1083
          %v1363 = vpop.f32.mrb[0].mxu0
          %v1364 = vadd.f32 %v1203, %v1363
          %v1365 = vpop.f32.mrb[0].mxu0
          %v1366 = vadd.f32 %v1205, %v1365
          %1367 = vmatprep.mubr.f32.mxu0 0.0
          %1368 = vmatmul.mubr.f32.gmra.mrb[0].mxu0 %v1086
          %v1369 = vpop.f32.mrb[0].mxu0
          %v1370 = vadd.f32 %v1209, %v1369
          %v1371 = vpop.f32.mrb[0].mxu0
          %v1372 = vadd.f32 %v1211, %v1371
          %1373 = vmatprep.mubr.f32.mxu0 0.0
          %1374 = vmatmul.mubr.f32.gmra.mrb[0].mxu0 %v1089
          %v1375 = vpop.f32.mrb[0].mxu0
          %v1376 = vadd.f32 %v1215, %v1375
          %v1377 = vpop.f32.mrb[0].mxu0
          %v1378 = vadd.f32 %v1217, %v1377
          %1379 = vmatprep.mubr.f32.mxu0 0.0
          %1380 = vmatmul.mubr.f32.gmra.mrb[0].mxu0 %v1092
          %v1381 = vpop.f32.mrb[0].mxu0
          %v1382 = vadd.f32 %v1221, %v1381
          %v1383 = vpop.f32.mrb[0].mxu0
          %v1384 = vadd.f32 %v1223, %v1383
          %1385 = vmatprep.mubr.f32.mxu0 0.0
          %1386 = vmatmul.mubr.f32.gmra.mrb[0].mxu0 %v1095
          %v1387 = vpop.f32.mrb[0].mxu0
          %v1388 = vadd.f32 %v1227, %v1387
          %v1389 = vpop.f32.mrb[0].mxu0
          %v1390 = vadd.f32 %v1229, %v1389
          %1391 = vmatprep.mubr.f32.mxu0 0.0
          %1392 = vmatmul.mubr.f32.gmra.mrb[0].mxu0 %v1098
          %v1393 = vpop.f32.mrb[0].mxu0
          %v1394 = vadd.f32 %v1233, %v1393
          %v1395 = vpop.f32.mrb[0].mxu0
          %v1396 = vadd.f32 %v1235, %v1395
          %1397 = vmatprep.mubr.f32.mxu0 0.0
          %1398 = vmatmul.mubr.f32.gmra.mrb[0].mxu0 %v1101
          %v1399 = vpop.f32.mrb[0].mxu0
          %v1400 = vadd.f32 %v1239, %v1399
          %v1401 = vpop.f32.mrb[0].mxu0
          %v1402 = vadd.f32 %v1241, %v1401
          %1403 = vmatprep.mubr.f32.mxu0 0.0
          %1404 = vmatmul.mubr.f32.gmra.mrb[0].mxu0 %v1104
          %v1405 = vpop.f32.mrb[0].mxu0
          %v1406 = vadd.f32 %v1245, %v1405
          %v1407 = vpop.f32.mrb[0].mxu0
          %v1408 = vadd.f32 %v1247, %v1407
          %1409 = vmatprep.mubr.f32.mxu0 0.0
          %1410 = vmatmul.mubr.f32.gmra.mrb[0].mxu0 %v1107
          %v1411 = vpop.f32.mrb[0].mxu0
          %v1412 = vadd.f32 %v1251, %v1411
          %v1413 = vpop.f32.mrb[0].mxu0
          %v1414 = vadd.f32 %v1253, %v1413
          %1415 = vmatprep.mubr.f32.mxu0 0.0
          %1416 = vmatmul.mubr.f32.gmra.mrb[0].mxu0 %v1110
          %v1417 = vpop.f32.mrb[0].mxu0
          %v1418 = vadd.f32 %v1257, %v1417
          %v1419 = vpop.f32.mrb[0].mxu0
          %v1420 = vadd.f32 %v1259, %v1419
          %1421 = vmatprep.mubr.f32.mxu0 0.0
          %1422 = vmatmul.mubr.f32.gmra.mrb[0].mxu0 %v1113
          %v1423 = vpop.f32.mrb[0].mxu0
          %v1424 = vadd.f32 %v1263, %v1423
          %v1425 = vpop.f32.mrb[0].mxu0
          %v1426 = vadd.f32 %v1265, %v1425
          %1427 = vmatprep.mubr.f32.mxu0 0.0
          %1428 = vmatmul.mubr.f32.gmra.mrb[0].mxu0 %v1116
          %v1429 = vpop.f32.mrb[0].mxu0
          %v1430 = vadd.f32 %v1269, %v1429
          %v1431 = vpop.f32.mrb[0].mxu0
          %v1432 = vadd.f32 %v1271, %v1431
          %1433 = vmatprep.mubr.f32.mxu0 0.0
          %1434 = vmatmul.mubr.f32.gmra.mrb[0].mxu0 %v1119
          %v1435 = vpop.f32.mrb[0].mxu0
          %v1436 = vadd.f32 %v1275, %v1435
          %v1437 = vpop.f32.mrb[0].mxu0
          %v1438 = vadd.f32 %v1277, %v1437
          %1439 = vmatprep.mubr.f32.mxu0 0.0
          %1440 = vmatmul.mubr.f32.gmra.mrb[0].mxu0 %v1122
          %v1441 = vpop.f32.mrb[0].mxu0
          %v1442 = vadd.f32 %v1281, %v1441
          %v1443 = vpop.f32.mrb[0].mxu0
          %v1444 = vadd.f32 %v1283, %v1443
          %1445 = vdwg.mxu0
          %v1446 = vmul.f32 %v1352, %v285
          %v1447 = vmul.f32 %v1354, %v285
          %v1448 = vmul.f32 %v1358, %v286
          %v1449 = vmul.f32 %v1360, %v286
          %v1450 = vmul.f32 %v1364, %v287
          %v1451 = vmul.f32 %v1366, %v287
          %v1452 = vmul.f32 %v1370, %v288
          %v1453 = vmul.f32 %v1372, %v288
          %v1454 = vmul.f32 %v1376, %v289
          %v1455 = vmul.f32 %v1378, %v289
          %v1456 = vmul.f32 %v1382, %v290
          %v1457 = vmul.f32 %v1384, %v290
          %v1458 = vmul.f32 %v1388, %v291
          %v1459 = vmul.f32 %v1390, %v291
          %v1460 = vmul.f32 %v1394, %v292
          %v1461 = vmul.f32 %v1396, %v292
          %v1462 = vmul.f32 %v1400, %v293
          %v1463 = vmul.f32 %v1402, %v293
          %v1464 = vmul.f32 %v1406, %v294
          %v1465 = vmul.f32 %v1408, %v294
          %v1466 = vmul.f32 %v1412, %v295
          %v1467 = vmul.f32 %v1414, %v295
          %v1468 = vmul.f32 %v1418, %v296
          %v1469 = vmul.f32 %v1420, %v296
          %v1470 = vmul.f32 %v1424, %v297
          %v1471 = vmul.f32 %v1426, %v297
          %v1472 = vmul.f32 %v1430, %v298
          %v1473 = vmul.f32 %v1432, %v298
          %v1474 = vmul.f32 %v1436, %v299
          %v1475 = vmul.f32 %v1438, %v299
          %v1476 = vmul.f32 %v1442, %v300
          %v1477 = vmul.f32 %v1444, %v300
          %v1478 = vtanh.pop %v1446
          %v1479 = vtanh.pop %v1447
          %v1480 = vtanh.pop %v1448
          %v1481 = vtanh.pop %v1449
          %v1482 = vtanh.pop %v1450
          %v1483 = vtanh.pop %v1451
          %v1484 = vtanh.pop %v1452
          %v1485 = vtanh.pop %v1453
          %v1486 = vtanh.pop %v1454
          %v1487 = vtanh.pop %v1455
          %v1488 = vtanh.pop %v1456
          %v1489 = vtanh.pop %v1457
          %v1490 = vtanh.pop %v1458
          %v1491 = vtanh.pop %v1459
          %v1492 = vtanh.pop %v1460
          %v1493 = vtanh.pop %v1461
          %v1494 = vtanh.pop %v1462
          %v1495 = vtanh.pop %v1463
          %v1496 = vtanh.pop %v1464
          %v1497 = vtanh.pop %v1465
          %v1498 = vtanh.pop %v1466
          %v1499 = vtanh.pop %v1467
          %v1500 = vtanh.pop %v1468
          %v1501 = vtanh.pop %v1469
          %v1502 = vtanh.pop %v1470
          %v1503 = vtanh.pop %v1471
          %v1504 = vtanh.pop %v1472
          %v1505 = vtanh.pop %v1473
          %v1506 = vtanh.pop %v1474
          %v1507 = vtanh.pop %v1475
          %v1508 = vtanh.pop %v1476
          %v1509 = vtanh.pop %v1477
          %v1510 = vmul.f32 %v1478, 0.5
          %v1511 = vmul.f32 %v1479, 0.5
          %v1512 = vmul.f32 %v1480, 0.5
          %v1513 = vmul.f32 %v1481, 0.5
          %v1514 = vmul.f32 %v1482, 0.5
          %v1515 = vmul.f32 %v1483, 0.5
          %v1516 = vmul.f32 %v1484, 0.5
          %v1517 = vmul.f32 %v1485, 0.5
          %v1518 = vmul.f32 %v1486, 0.5
          %v1519 = vmul.f32 %v1487, 0.5
          %v1520 = vmul.f32 %v1488, 0.5
          %v1521 = vmul.f32 %v1489, 0.5
          %v1522 = vmul.f32 %v1490, 0.5
          %v1523 = vmul.f32 %v1491, 0.5
          %v1524 = vmul.f32 %v1492, 0.5
          %v1525 = vmul.f32 %v1493, 0.5
          %v1526 = vmul.f32 %v1494, 0.5
          %v1527 = vmul.f32 %v1495, 0.5
          %v1528 = vmul.f32 %v1496, 0.5
          %v1529 = vmul.f32 %v1497, 0.5
          %v1530 = vmul.f32 %v1498, 0.5
          %v1531 = vmul.f32 %v1499, 0.5
          %v1532 = vmul.f32 %v1500, 0.5
          %v1533 = vmul.f32 %v1501, 0.5
          %v1534 = vmul.f32 %v1502, 0.5
          %v1535 = vmul.f32 %v1503, 0.5
          %v1536 = vmul.f32 %v1504, 0.5
          %v1537 = vmul.f32 %v1505, 0.5
          %v1538 = vmul.f32 %v1506, 0.5
          %v1539 = vmul.f32 %v1507, 0.5
          %v1540 = vmul.f32 %v1508, 0.5
          %v1541 = vmul.f32 %v1509, 0.5
          %v1542 = vadd.f32 %v1510, 0.5
          %v1543 = vadd.f32 %v1511, 0.5
          %v1544 = vadd.f32 %v1512, 0.5
          %v1545 = vadd.f32 %v1513, 0.5
          %v1546 = vadd.f32 %v1514, 0.5
          %v1547 = vadd.f32 %v1515, 0.5
          %v1548 = vadd.f32 %v1516, 0.5
          %v1549 = vadd.f32 %v1517, 0.5
          %v1550 = vadd.f32 %v1518, 0.5
          %v1551 = vadd.f32 %v1519, 0.5
          %v1552 = vadd.f32 %v1520, 0.5
          %v1553 = vadd.f32 %v1521, 0.5
          %v1554 = vadd.f32 %v1522, 0.5
          %v1555 = vadd.f32 %v1523, 0.5
          %v1556 = vadd.f32 %v1524, 0.5
          %v1557 = vadd.f32 %v1525, 0.5
          %v1558 = vadd.f32 %v1526, 0.5
          %v1559 = vadd.f32 %v1527, 0.5
          %v1560 = vadd.f32 %v1528, 0.5
          %v1561 = vadd.f32 %v1529, 0.5
          %v1562 = vadd.f32 %v1530, 0.5
          %v1563 = vadd.f32 %v1531, 0.5
          %v1564 = vadd.f32 %v1532, 0.5
          %v1565 = vadd.f32 %v1533, 0.5
          %v1566 = vadd.f32 %v1534, 0.5
          %v1567 = vadd.f32 %v1535, 0.5
          %v1568 = vadd.f32 %v1536, 0.5
          %v1569 = vadd.f32 %v1537, 0.5
          %v1570 = vadd.f32 %v1538, 0.5
          %v1571 = vadd.f32 %v1539, 0.5
          %v1572 = vadd.f32 %v1540, 0.5
          %v1573 = vadd.f32 %v1541, 0.5
          %v1574 = vsel %vm269, 1, 0
          %v1575 = vsel %vm270, 1, 0
          %v1576 = vsel %vm271, 1, 0
          %v1577 = vsel %vm272, 1, 0
          %v1578 = vsel %vm273, 1, 0
          %v1579 = vsel %vm274, 1, 0
          %v1580 = vsel %vm275, 1, 0
          %v1581 = vsel %vm276, 1, 0
          %v1582 = vsel %vm277, 1, 0
          %v1583 = vsel %vm278, 1, 0
          %v1584 = vsel %vm279, 1, 0
          %v1585 = vsel %vm280, 1, 0
          %v1586 = vsel %vm281, 1, 0
          %v1587 = vsel %vm282, 1, 0
          %v1588 = vsel %vm283, 1, 0
          %v1589 = vsel %vm284, 1, 0
          %vm1590 = vcmp.eq.s32.totalorder %v1574, 1
          %vm1591 = vcmp.eq.s32.totalorder %v1575, 1
          %vm1592 = vcmp.eq.s32.totalorder %v1576, 1
          %vm1593 = vcmp.eq.s32.totalorder %v1577, 1
          %vm1594 = vcmp.eq.s32.totalorder %v1578, 1
          %vm1595 = vcmp.eq.s32.totalorder %v1579, 1
          %vm1596 = vcmp.eq.s32.totalorder %v1580, 1
          %vm1597 = vcmp.eq.s32.totalorder %v1581, 1
          %vm1598 = vcmp.eq.s32.totalorder %v1582, 1
          %vm1599 = vcmp.eq.s32.totalorder %v1583, 1
          %vm1600 = vcmp.eq.s32.totalorder %v1584, 1
          %vm1601 = vcmp.eq.s32.totalorder %v1585, 1
          %vm1602 = vcmp.eq.s32.totalorder %v1586, 1
          %vm1603 = vcmp.eq.s32.totalorder %v1587, 1
          %vm1604 = vcmp.eq.s32.totalorder %v1588, 1
          %vm1605 = vcmp.eq.s32.totalorder %v1589, 1
          %v1606 = vsel %vm1590, %v1542, %v1478
          %v1607 = vsel %vm1590, %v1543, %v1479
          %v1608 = vsel %vm1591, %v1544, %v1480
          %v1609 = vsel %vm1591, %v1545, %v1481
          %v1610 = vsel %vm1592, %v1546, %v1482
          %v1611 = vsel %vm1592, %v1547, %v1483
          %v1612 = vsel %vm1593, %v1548, %v1484
          %v1613 = vsel %vm1593, %v1549, %v1485
          %v1614 = vsel %vm1594, %v1550, %v1486
          %v1615 = vsel %vm1594, %v1551, %v1487
          %v1616 = vsel %vm1595, %v1552, %v1488
          %v1617 = vsel %vm1595, %v1553, %v1489
          %v1618 = vsel %vm1596, %v1554, %v1490
          %v1619 = vsel %vm1596, %v1555, %v1491
          %v1620 = vsel %vm1597, %v1556, %v1492
          %v1621 = vsel %vm1597, %v1557, %v1493
          %v1622 = vsel %vm1598, %v1558, %v1494
          %v1623 = vsel %vm1598, %v1559, %v1495
          %v1624 = vsel %vm1599, %v1560, %v1496
          %v1625 = vsel %vm1599, %v1561, %v1497
          %v1626 = vsel %vm1600, %v1562, %v1498
          %v1627 = vsel %vm1600, %v1563, %v1499
          %v1628 = vsel %vm1601, %v1564, %v1500
          %v1629 = vsel %vm1601, %v1565, %v1501
          %v1630 = vsel %vm1602, %v1566, %v1502
          %v1631 = vsel %vm1602, %v1567, %v1503
          %v1632 = vsel %vm1603, %v1568, %v1504
          %v1633 = vsel %vm1603, %v1569, %v1505
          %v1634 = vsel %vm1604, %v1570, %v1506
          %v1635 = vsel %vm1604, %v1571, %v1507
          %v1636 = vsel %vm1605, %v1572, %v1508
          %v1637 = vsel %vm1605, %v1573, %v1509
          %v1638 = vmul.f32 %v1614, %v315
          %v1639 = vmul.f32 %v1615, %v316
          %v1640 = vmul.f32 %v1616, %v317
          %v1641 = vmul.f32 %v1617, %v318
          %v1642 = vmul.f32 %v1618, %v319
          %v1643 = vmul.f32 %v1619, %v320
          %v1644 = vmul.f32 %v1620, %v321
          %v1645 = vmul.f32 %v1621, %v322
          %v1646 = vmul.f32 %v1606, %v1630
          %v1647 = vmul.f32 %v1607, %v1631
          %v1648 = vmul.f32 %v1608, %v1632
          %v1649 = vmul.f32 %v1609, %v1633
          %v1650 = vmul.f32 %v1610, %v1634
          %v1651 = vmul.f32 %v1611, %v1635
          %v1652 = vmul.f32 %v1612, %v1636
          %v1653 = vmul.f32 %v1613, %v1637
          %v1654 = vadd.f32 %v1638, %v1646
          %v1655 = vadd.f32 %v1639, %v1647
          %v1656 = vadd.f32 %v1640, %v1648
          %v1657 = vadd.f32 %v1641, %v1649
          %v1658 = vadd.f32 %v1642, %v1650
          %v1659 = vadd.f32 %v1643, %v1651
          %v1660 = vadd.f32 %v1644, %v1652
          %v1661 = vadd.f32 %v1645, %v1653
          %v1662 = vtanh.pop %v1654
          %v1663 = vtanh.pop %v1655
          %v1664 = vtanh.pop %v1656
          %v1665 = vtanh.pop %v1657
          %v1666 = vtanh.pop %v1658
          %v1667 = vtanh.pop %v1659
          %v1668 = vtanh.pop %v1660
          %v1669 = vtanh.pop %v1661
          %v1670 = vmul.f32 %v1622, %v1662
          %v1671 = vmul.f32 %v1623, %v1663
          %v1672 = vmul.f32 %v1624, %v1664
          %v1673 = vmul.f32 %v1625, %v1665
          %v1674 = vmul.f32 %v1626, %v1666
          %v1675 = vmul.f32 %v1627, %v1667
          %v1676 = vmul.f32 %v1628, %v1668
          %v1677 = vmul.f32 %v1629, %v1669
          %s1678 = smul.u32 %s302, 8
          %s1679 = smul.addr %s1678, 8
          %s1680 = scalar_lea.vmem %s208, %s1679
          %1681 = vst [vmem:[%s1680] sm:$0xff] %v1670
          %1682 = vst [vmem:[%s1680 + $0x8] sm:$0xff] %v1671
          %1683 = vst [vmem:[%s1680 + $0x10] sm:$0xff] %v1672
          %1684 = vst [vmem:[%s1680 + $0x18] sm:$0xff] %v1673
          %1685 = vst [vmem:[%s1680 + $0x20] sm:$0xff] %v1674
          %1686 = vst [vmem:[%s1680 + $0x28] sm:$0xff] %v1675
          %1687 = vst [vmem:[%s1680 + $0x30] sm:$0xff] %v1676
          %1688 = vst [vmem:[%s1680 + $0x38] sm:$0xff] %v1677
        $region37: #{convlstm_forward.2} parent=31 // loop_footer
          %s306 = sadd.s32 1, %s302
        $region38: #{convlstm_forward.2} parent=31 // loop_footer_branch
          %301 = sbr.rel target = $region34
        $region39: #{convlstm_forward.2} parent=31 // loop_exit
          _
        %1689 = vst [vmem:[%s198] sm:$0xff] %v315
        %1690 = vst [vmem:[%s198 + $0x8] sm:$0xff] %v316
        %1691 = vst [vmem:[%s198 + $0x10] sm:$0xff] %v317
        %1692 = vst [vmem:[%s198 + $0x18] sm:$0xff] %v318
        %1693 = vst [vmem:[%s198 + $0x20] sm:$0xff] %v319
        %1694 = vst [vmem:[%s198 + $0x28] sm:$0xff] %v320
        %1695 = vst [vmem:[%s198 + $0x30] sm:$0xff] %v321
        %1696 = vst [vmem:[%s198 + $0x38] sm:$0xff] %v322
        %p1697 = scmp.lt.s32.totalorder %s19, 1
        %s1698 = scalar_select %p1697, %s19, 1
        %s1699 = smul.addr %s1698, 64
        %s1700 = smul.addr %s1699, 8
        %s1701 = scalar_lea.vmem %s3, %s1700
        %s1702 = sand.u32 %s121, 1
        %s1703 = scalar_lea.sflag [#allocation4], %s1702
        %s1704 = sand.u32 %s121, 1
        %s1705 = smul.addr %s1704, 64
        %s1706 = scalar_lea.vmem [#allocation3], %s1705
        // Predicated region
        $region40: #{convlstm_forward.2} parent=31 // pred_check
          %p1707 = pneg %p105
        $region41: #{convlstm_forward.2} parent=31 // pred_check_branch
          %1709 = sbr.rel (%p1707) target = $region43
        $region42: #{convlstm_forward.2} parent=31 // pred_region
          _
        $region43: #{convlstm_forward.2} parent=31 // pred_fallthru
          _
        // Predicated region
        $region44: #{convlstm_forward.2} parent=31 // pred_check
          %p1710 = pneg %p131
        $region45: #{convlstm_forward.2} parent=31 // pred_check_branch
          %1712 = sbr.rel (%p1710) target = $region47
        $region46: #{convlstm_forward.2} parent=31 // pred_region
          %s1714 = ssub.s32 1024, 1024
          %1715 = vsyncadd %s1703, %s1714
          %s1716 = smul.addr %s19, 8
          %s1717 = smul.addr %s1716, 128
          %s1718 = scalar_lea.hbm %s4, %s1717
          %s1719 = sshll.u32 %s1706, 4
          %s1720 = int_to_ptr.vmem [resolvable:$true] %s1719
          %1725 = dma.vmem_to_hbm [thread:$0]  %s1720, 1024, %s1718, %s1703, 256, 256, 16
        $region47: #{convlstm_forward.2} parent=31 // pred_fallthru
          _
      $region32: #{convlstm_forward.2} parent=5 // pred_fallthru
        _
      %p1726 = scmp.le.s32.totalorder 2, %s14
      // Predicated region
      $region48: #{convlstm_forward.2} parent=5 // pred_check
        %p1727 = pneg %p1726
      $region49: #{convlstm_forward.2} parent=5 // pred_check_branch
        %1729 = sbr.rel (%p1727) target = $region51
      $region50: #{convlstm_forward.2} parent=5 // pred_region
        %s1730 = ssub.s32 %s14, 2
        // Predicated region
        $region52: #{convlstm_forward.2} parent=50 // pred_check
          %p1731 = pneg %p111
        $region53: #{convlstm_forward.2} parent=50 // pred_check_branch
          %1733 = sbr.rel (%p1731) target = $region55
        $region54: #{convlstm_forward.2} parent=50 // pred_region
          %p1734 = scmp.lt.s32.totalorder %s20, 1
          %s1735 = scalar_select %p1734, %s20, 1
          %s1736 = smul.addr %s1735, 64
          %s1737 = smul.addr %s1736, 8
          %s1738 = scalar_lea.vmem %s3, %s1737
        $region55: #{convlstm_forward.2} parent=50 // pred_fallthru
          _
        // Predicated region
        $region56: #{convlstm_forward.2} parent=50 // pred_check
          %p1739 = pneg %p137
        $region57: #{convlstm_forward.2} parent=50 // pred_check_branch
          %1741 = sbr.rel (%p1739) target = $region59
        $region58: #{convlstm_forward.2} parent=50 // pred_region
          %s1742 = sand.u32 %s122, 1
          %s1743 = scalar_lea.sflag [#allocation4], %s1742
          %s1744 = sand.u32 %s122, 1
          %s1745 = smul.addr %s1744, 64
          %s1746 = scalar_lea.vmem [#allocation3], %s1745
          %1747 = dma.done %s1743, 1024
        $region59: #{convlstm_forward.2} parent=50 // pred_fallthru
          _
      $region51: #{convlstm_forward.2} parent=5 // pred_fallthru
        _
    $region6: #{convlstm_forward.2} parent=1 // loop_footer
      %s18 = sadd.s32 1, %s14
    $region7: #{convlstm_forward.2} parent=1 // loop_footer_branch
      %13 = sbr.rel target = $region3
    $region8: #{convlstm_forward.2} parent=1 // loop_exit
      _
    %1748 = vsyncpa [#allocation4], 1
    %s1749 = scalar_lea.sflag [#allocation4], 1
    %1750 = vsyncpa %s1749, 1

// kernel: convlstm_forward.3
$region0: #{convlstm_forward.3}
  #allocation0 [shape = 'u32[]', space=smem, size = 0x4, offset = 0x4, fixed_abs, tag = 'smem constant byte address 0x4 - core index']
  #allocation1 [shape = 'u32[144,128]{1,0:T(1,128)}', space=vmem, size = 0x12000, scoped, tag = 'internal scratch']
  #allocation2 [shape = 'f32[576,256]{1,0:T(8,128)}', space=vmem, size = 0x90000, scoped, tag = 'scratch operand']
  %s0 = inlined_call_operand.vmem [shape: f32[2,8,32,256], index: 0, kind: input, shape index: {}]
  %s1 = inlined_call_operand.vmem [shape: f32[128,576], index: 1, kind: input, shape index: {}]
  %s2 = inlined_call_operand.vmem [shape: f32[128,1], index: 2, kind: input, shape index: {}]
  %s3 = inlined_call_operand.vmem [shape: f32[2,8,32,256], index: 3, kind: output, shape index: {0}]
  %s4 = inlined_call_operand.vmem [shape: f32[2,32,256], index: 4, kind: output, shape index: {1}]
  %5 = xla_tuple %s3, %s4
  %s6 = sld [smem:[#allocation0]]
  $region60: #{convlstm_forward.3} parent=0
    _
  %s8 = ssub.s32 1, %s6
  %s9 = scalar_select 0, %s8, %s6
  loop: start=0, step=1, limit=4
  $region2: #{convlstm_forward.3} parent=0 // loop_pre_header
    _
  $region3: #{convlstm_forward.3} parent=0 // loop_header
    %s11 = sphi 0, %s15
    %p12 = scmp.ge.s32.totalorder %s11, 4
    %s21 = sphi 0, %s23
    %s24 = sphi 0, %s21
    %s25 = sphi 0, %s24
    %s41 = sphi 0, %s25
    %s45 = sphi 0, %s45
    %s47 = sphi 0, %s45
    %s48 = sphi 0, %s47
    %s62 = sphi 0, %s48
    %s66 = sphi 0, %s66
    %s68 = sphi 0, %s66
    %s69 = sphi 0, %s68
    %s83 = sphi 0, %s69
    %s89 = sphi 0, %s91
    %s92 = sphi 0, %s89
    %s93 = sphi 0, %s92
    %s109 = sphi 0, %s93
    %s115 = sphi 0, %s117
    %s118 = sphi 0, %s115
    %s119 = sphi 0, %s118
    %s135 = sphi 0, %s119
  $region4: #{convlstm_forward.3} parent=0 // loop_header_branch
    %14 = sbr.rel (%p12) target = $region8
  $region5: #{convlstm_forward.3} parent=0 // loop_body
    %s16 = ssub.s32 %s11, 1
    %s17 = ssub.s32 %s11, 2
    %s18 = sadd.s32 %s11, 1
    %s19 = ssub.s32 %s11, %s18
    %p20 = scmp.eq.s32.totalorder %s19, 0
    %s22 = sadd.s32 %s21, 1
    %s23 = scalar_select %p20, %s21, %s22
    %p26 = pneg %p20
    %p27 = scmp.eq.s32.totalorder %s11, 1
    %p28 = por %p26, %p27
    %p29 = scmp.ne.s32.totalorder %s21, %s24
    %p30 = scmp.eq.s32.totalorder %s11, 0
    %p31 = por %p29, %p30
    %p32 = scmp.ne.s32.totalorder %s21, %s24
    %p33 = scmp.eq.s32.totalorder %s16, 1
    %p34 = por %p32, %p33
    %p35 = scmp.ne.s32.totalorder %s24, %s25
    %p36 = scmp.eq.s32.totalorder %s16, 0
    %p37 = por %p35, %p36
    %p38 = scmp.ne.s32.totalorder %s24, %s25
    %p39 = scmp.eq.s32.totalorder %s17, 1
    %p40 = por %p38, %p39
    %p42 = scmp.ne.s32.totalorder %s25, %s41
    %p43 = scmp.eq.s32.totalorder %s17, 0
    %p44 = por %p42, %p43
    %s46 = sadd.s32 %s45, 1
    %p49 = scmp.eq.s32.totalorder %s11, 1
    %p50 = scmp.ne.s32.totalorder %s45, %s47
    %p51 = scmp.eq.s32.totalorder %s11, 0
    %p52 = por %p50, %p51
    %p53 = scmp.ne.s32.totalorder %s45, %s47
    %p54 = scmp.eq.s32.totalorder %s16, 1
    %p55 = por %p53, %p54
    %p56 = scmp.ne.s32.totalorder %s47, %s48
    %p57 = scmp.eq.s32.totalorder %s16, 0
    %p58 = por %p56, %p57
    %p59 = scmp.ne.s32.totalorder %s47, %s48
    %p60 = scmp.eq.s32.totalorder %s17, 1
    %p61 = por %p59, %p60
    %p63 = scmp.ne.s32.totalorder %s48, %s62
    %p64 = scmp.eq.s32.totalorder %s17, 0
    %p65 = por %p63, %p64
    %s67 = sadd.s32 %s66, 1
    %p70 = scmp.eq.s32.totalorder %s11, 1
    %p71 = scmp.ne.s32.totalorder %s66, %s68
    %p72 = scmp.eq.s32.totalorder %s11, 0
    %p73 = por %p71, %p72
    %p74 = scmp.ne.s32.totalorder %s66, %s68
    %p75 = scmp.eq.s32.totalorder %s16, 1
    %p76 = por %p74, %p75
    %p77 = scmp.ne.s32.totalorder %s68, %s69
    %p78 = scmp.eq.s32.totalorder %s16, 0
    %p79 = por %p77, %p78
    %p80 = scmp.ne.s32.totalorder %s68, %s69
    %p81 = scmp.eq.s32.totalorder %s17, 1
    %p82 = por %p80, %p81
    %p84 = scmp.ne.s32.totalorder %s69, %s83
    %p85 = scmp.eq.s32.totalorder %s17, 0
    %p86 = por %p84, %p85
    %s87 = ssub.s32 %s11, %s18
    %p88 = scmp.eq.s32.totalorder %s87, 0
    %s90 = sadd.s32 %s89, 1
    %s91 = scalar_select %p88, %s89, %s90
    %p94 = pneg %p88
    %p95 = scmp.eq.s32.totalorder %s11, 1
    %p96 = por %p94, %p95
    %p97 = scmp.ne.s32.totalorder %s89, %s92
    %p98 = scmp.eq.s32.totalorder %s11, 0
    %p99 = por %p97, %p98
    %p100 = scmp.ne.s32.totalorder %s89, %s92
    %p101 = scmp.eq.s32.totalorder %s16, 1
    %p102 = por %p100, %p101
    %p103 = scmp.ne.s32.totalorder %s92, %s93
    %p104 = scmp.eq.s32.totalorder %s16, 0
    %p105 = por %p103, %p104
    %p106 = scmp.ne.s32.totalorder %s92, %s93
    %p107 = scmp.eq.s32.totalorder %s17, 1
    %p108 = por %p106, %p107
    %p110 = scmp.ne.s32.totalorder %s93, %s109
    %p111 = scmp.eq.s32.totalorder %s17, 0
    %p112 = por %p110, %p111
    %s113 = ssub.s32 %s11, %s18
    %p114 = scmp.eq.s32.totalorder %s113, 0
    %s116 = sadd.s32 %s115, 1
    %s117 = scalar_select %p114, %s115, %s116
    %p120 = pneg %p114
    %p121 = scmp.eq.s32.totalorder %s11, 1
    %p122 = por %p120, %p121
    %p123 = scmp.ne.s32.totalorder %s115, %s118
    %p124 = scmp.eq.s32.totalorder %s11, 0
    %p125 = por %p123, %p124
    %p126 = scmp.ne.s32.totalorder %s115, %s118
    %p127 = scmp.eq.s32.totalorder %s16, 1
    %p128 = por %p126, %p127
    %p129 = scmp.ne.s32.totalorder %s118, %s119
    %p130 = scmp.eq.s32.totalorder %s16, 0
    %p131 = por %p129, %p130
    %p132 = scmp.ne.s32.totalorder %s118, %s119
    %p133 = scmp.eq.s32.totalorder %s17, 1
    %p134 = por %p132, %p133
    %p136 = scmp.ne.s32.totalorder %s119, %s135
    %p137 = scmp.eq.s32.totalorder %s17, 0
    %p138 = por %p136, %p137
    %p139 = scmp.le.s32.totalorder 1, %s11
    %p140 = scmp.lt.s32.totalorder %s11, 3
    %p141 = pnand %p139, %p140
    %p142 = pneg %p141
    // Predicated region
    $region9: #{convlstm_forward.3} parent=5 // pred_check
      _
    $region10: #{convlstm_forward.3} parent=5 // pred_check_branch
      %144 = sbr.rel (%p141) target = $region12
    $region11: #{convlstm_forward.3} parent=5 // pred_region
      %s145 = ssub.s32 %s11, 1
      // Predicated region
      $region13: #{convlstm_forward.3} parent=11 // pred_check
        %p146 = pneg %p58
      $region14: #{convlstm_forward.3} parent=11 // pred_check_branch
        %148 = sbr.rel (%p146) target = $region16
      $region15: #{convlstm_forward.3} parent=11 // pred_region
        _
      $region16: #{convlstm_forward.3} parent=11 // pred_fallthru
        _
      // Predicated region
      $region17: #{convlstm_forward.3} parent=11 // pred_check
        %p149 = pneg %p79
      $region18: #{convlstm_forward.3} parent=11 // pred_check_branch
        %151 = sbr.rel (%p149) target = $region20
      $region19: #{convlstm_forward.3} parent=11 // pred_region
        _
      $region20: #{convlstm_forward.3} parent=11 // pred_fallthru
        _
    $region12: #{convlstm_forward.3} parent=5 // pred_fallthru
      _
    %p152 = scmp.lt.s32.totalorder %s11, 2
    // Predicated region
    $region21: #{convlstm_forward.3} parent=5 // pred_check
      %p153 = pneg %p152
    $region22: #{convlstm_forward.3} parent=5 // pred_check_branch
      %155 = sbr.rel (%p153) target = $region24
    $region23: #{convlstm_forward.3} parent=5 // pred_region
      // Predicated region
      $region25: #{convlstm_forward.3} parent=23 // pred_check
        %p156 = pneg %p31
      $region26: #{convlstm_forward.3} parent=23 // pred_check_branch
        %158 = sbr.rel (%p156) target = $region28
      $region27: #{convlstm_forward.3} parent=23 // pred_region
        %p159 = scmp.lt.s32.totalorder %s11, 1
        %s160 = scalar_select %p159, %s11, 1
        %s161 = smul.addr %s160, 64
        %s162 = smul.addr %s161, 8
        %s163 = scalar_lea.vmem %s0, %s162
      $region28: #{convlstm_forward.3} parent=23 // pred_fallthru
        _
    $region24: #{convlstm_forward.3} parent=5 // pred_fallthru
      _
    %p164 = scmp.le.s32.totalorder 1, %s11
    %p165 = scmp.lt.s32.totalorder %s11, 3
    %p166 = pnand %p164, %p165
    %p167 = pneg %p166
    // Predicated region
    $region29: #{convlstm_forward.3} parent=5 // pred_check
      _
    $region30: #{convlstm_forward.3} parent=5 // pred_check_branch
      %169 = sbr.rel (%p166) target = $region32
    $region31: #{convlstm_forward.3} parent=5 // pred_region
      %s170 = ssub.s32 %s11, 1
      %p171 = scmp.lt.s32.totalorder %s16, 1
      %s172 = scalar_select %p171, %s16, 1
      %s173 = smul.addr %s172, 64
      %s174 = smul.addr %s173, 8
      %s175 = scalar_lea.vmem %s0, %s174
      %p176 = pneg %p37
      %p177 = pneg %p34
      %p178 = pneg %p58
      %p179 = pneg %p55
      %p180 = pneg %p79
      %p181 = pneg %p76
      %p182 = pneg %p105
      %p183 = pneg %p102
      %p184 = scmp.lt.s32.totalorder %s16, 1
      %s185 = scalar_select %p184, %s16, 1
      %s186 = smul.addr %s185, 64
      %s187 = smul.addr %s186, 8
      %s188 = scalar_lea.vmem %s3, %s187
      %p189 = pneg %p131
      %p190 = pneg %p128
      %p191 = scmp.lt.s32.totalorder %s16, 1
      %s192 = scalar_select %p191, %s16, 1
      %s193 = smul.addr %s192, 8
      %s194 = smul.addr %s193, 8
      %s195 = scalar_lea.vmem %s4, %s194
      %p196 = scmp.lt.s32.totalorder %s16, 1
      %s197 = scalar_select %p196, %s16, 1
      %s198 = smul.addr %s197, 64
      %s199 = smul.addr %s198, 8
      %s200 = scalar_lea.vmem %s0, %s199
      %p201 = scmp.lt.s32.totalorder %s16, 1
      %s202 = scalar_select %p201, %s16, 1
      %s203 = smul.addr %s202, 64
      %s204 = smul.addr %s203, 8
      %s205 = scalar_lea.vmem %s3, %s204
      %p206 = scmp.lt.s32.totalorder %s16, 1
      %s207 = scalar_select %p206, %s16, 1
      %s208 = smul.addr %s207, 8
      %s209 = smul.addr %s208, 8
      %s210 = scalar_lea.vmem %s4, %s209
      %v211 = vlaneseq
      %v212 = vand.u32 %v211, 127
      %v213 = vadd.s32 %v212, 128
      %vm214 = vcmp.lt.s32.totalorder %v212, 0
      %v215 = vsub.s32 0, %v212
      %v216 = vsel %vm214, %v215, %v212
      %v217 = vshrl.u32 %v216, 4
      %v218 = vand.u32 %v216, 15
      %v219 = vsub.s32 0, %v218
      %v220 = vsel %vm214, %v219, %v218
      %vm221 = vcmp.lt.s32.totalorder %v213, 0
      %v222 = vsub.s32 0, %v213
      %v223 = vsel %vm221, %v222, %v213
      %v224 = vshrl.u32 %v223, 4
      %v225 = vand.u32 %v223, 15
      %v226 = vsub.s32 0, %v225
      %v227 = vsel %vm221, %v226, %v225
      %vm228 = vcmp.ne.s32.totalorder %v220, 0
      %vm229 = vcmp.ne.s32.totalorder %v227, 0
      %vm230 = vcmp.lt.s32.totalorder %v220, 0
      %vm231 = vcmp.lt.s32.totalorder %v227, 0
      %vm232 = vmand %vm230, %vm228
      %vm233 = vmand %vm231, %vm229
      %v234 = vadd.s32 %v220, 16
      %v235 = vadd.s32 %v227, 16
      %v236 = vsel %vm232, %v234, %v220
      %v237 = vsel %vm233, %v235, %v227
      %v238 = vadd.s32 %v236, 4294967295
      %v239 = vadd.s32 %v237, 4294967295
      %vm240 = vcmp.ge.s32.totalorder %v238, 0
      %vm241 = vcmp.ge.s32.totalorder %v239, 0
      %vm242 = vcmp.lt.s32.totalorder %v238, 16
      %vm243 = vcmp.lt.s32.totalorder %v239, 16
      %vm244 = vmand %vm240, %vm242
      %vm245 = vmand %vm241, %vm243
      %v246 = vadd.s32 %v236, 1
      %v247 = vadd.s32 %v237, 1
      %vm248 = vcmp.ge.s32.totalorder %v246, 0
      %vm249 = vcmp.ge.s32.totalorder %v247, 0
      %vm250 = vcmp.lt.s32.totalorder %v246, 16
      %vm251 = vcmp.lt.s32.totalorder %v247, 16
      %vm252 = vmand %vm248, %vm250
      %vm253 = vmand %vm249, %vm251
      %v254 = vlaneseq
      %v255 = vshrl.u32 %v254, 7
      %v256 = vadd.s32 %v255, 8
      %v257 = vadd.s32 %v255, 16
      %v258 = vadd.s32 %v255, 24
      %v259 = vadd.s32 %v255, 32
      %v260 = vadd.s32 %v255, 40
      %v261 = vadd.s32 %v255, 48
      %v262 = vadd.s32 %v255, 56
      %v263 = vadd.s32 %v255, 64
      %v264 = vadd.s32 %v255, 72
      %v265 = vadd.s32 %v255, 80
      %v266 = vadd.s32 %v255, 88
      %v267 = vadd.s32 %v255, 96
      %v268 = vadd.s32 %v255, 104
      %v269 = vadd.s32 %v255, 112
      %v270 = vadd.s32 %v255, 120
      %vm271 = vcmp.lt.s32.totalorder %v255, 96
      %vm272 = vcmp.lt.s32.totalorder %v256, 96
      %vm273 = vcmp.lt.s32.totalorder %v257, 96
      %vm274 = vcmp.lt.s32.totalorder %v258, 96
      %vm275 = vcmp.lt.s32.totalorder %v259, 96
      %vm276 = vcmp.lt.s32.totalorder %v260, 96
      %vm277 = vcmp.lt.s32.totalorder %v261, 96
      %vm278 = vcmp.lt.s32.totalorder %v262, 96
      %vm279 = vcmp.lt.s32.totalorder %v263, 96
      %vm280 = vcmp.lt.s32.totalorder %v264, 96
      %vm281 = vcmp.lt.s32.totalorder %v265, 96
      %vm282 = vcmp.lt.s32.totalorder %v266, 96
      %vm283 = vcmp.lt.s32.totalorder %v267, 96
      %vm284 = vcmp.lt.s32.totalorder %v268, 96
      %vm285 = vcmp.lt.s32.totalorder %v269, 96
      %vm286 = vcmp.lt.s32.totalorder %v270, 96
      %v287 = vsel %vm271, 0.5, 1.0
      %v288 = vsel %vm272, 0.5, 1.0
      %v289 = vsel %vm273, 0.5, 1.0
      %v290 = vsel %vm274, 0.5, 1.0
      %v291 = vsel %vm275, 0.5, 1.0
      %v292 = vsel %vm276, 0.5, 1.0
      %v293 = vsel %vm277, 0.5, 1.0
      %v294 = vsel %vm278, 0.5, 1.0
      %v295 = vsel %vm279, 0.5, 1.0
      %v296 = vsel %vm280, 0.5, 1.0
      %v297 = vsel %vm281, 0.5, 1.0
      %v298 = vsel %vm282, 0.5, 1.0
      %v299 = vsel %vm283, 0.5, 1.0
      %v300 = vsel %vm284, 0.5, 1.0
      %v301 = vsel %vm285, 0.5, 1.0
      %v302 = vsel %vm286, 0.5, 1.0
      loop: start=0, step=1, limit=8
      $region33: #{convlstm_forward.3} parent=31 // loop_pre_header
        _
      $region34: #{convlstm_forward.3} parent=31 // loop_header
        %s304 = sphi 0, %s308
        %p305 = scmp.ge.s32.totalorder %s304, 8
        %v309 = vphi 0.0, %v2213
        %v310 = vphi 0.0, %v2214
        %v311 = vphi 0.0, %v2215
        %v312 = vphi 0.0, %v2216
        %v313 = vphi 0.0, %v2217
        %v314 = vphi 0.0, %v2218
        %v315 = vphi 0.0, %v2219
        %v316 = vphi 0.0, %v2220
        %v317 = vphi 0.0, %v2197
        %v318 = vphi 0.0, %v2198
        %v319 = vphi 0.0, %v2199
        %v320 = vphi 0.0, %v2200
        %v321 = vphi 0.0, %v2201
        %v322 = vphi 0.0, %v2202
        %v323 = vphi 0.0, %v2203
        %v324 = vphi 0.0, %v2204
      $region35: #{convlstm_forward.3} parent=31 // loop_header_branch
        %307 = sbr.rel (%p305) target = $region39
      $region36: #{convlstm_forward.3} parent=31 // loop_body
        %s325 = smul.u32 %s304, 8
        %s326 = smul.addr %s325, 8
        %s327 = scalar_lea.vmem %s200, %s326
        %v328 = vld [vmem:[%s327] sm:$0xff]
        %v329 = vld [vmem:[%s327 + $0x8] sm:$0xff]
        %v330 = vld [vmem:[%s327 + $0x10] sm:$0xff]
        %v331 = vld [vmem:[%s327 + $0x18] sm:$0xff]
        %v332 = vld [vmem:[%s327 + $0x20] sm:$0xff]
        %v333 = vld [vmem:[%s327 + $0x28] sm:$0xff]
        %v334 = vld [vmem:[%s327 + $0x30] sm:$0xff]
        %v335 = vld [vmem:[%s327 + $0x38] sm:$0xff]
        %v336 = vsel %vm244, 1, 0
        %v337 = vsel %vm245, 1, 0
        %vm338 = vcmp.eq.s32.totalorder %v336, 1
        %vm339 = vcmp.eq.s32.totalorder %v337, 1
        %357 = vrot.lane.b32.xlu0 0.0, 17
        %v358 = vpop.permute.xlu0 %357
        %359 = vrot.lane.b32.xlu0 %v328, 17
        %v360 = vpop.permute.xlu0 %359
        %361 = vrot.lane.b32.xlu0 %v329, 17
        %v362 = vpop.permute.xlu0 %361
        %363 = vrot.lane.b32.xlu0 %v330, 17
        %v364 = vpop.permute.xlu0 %363
        %365 = vrot.lane.b32.xlu0 %v331, 17
        %v366 = vpop.permute.xlu0 %365
        %367 = vrot.lane.b32.xlu0 %v332, 17
        %v368 = vpop.permute.xlu0 %367
        %369 = vrot.lane.b32.xlu0 %v333, 17
        %v370 = vpop.permute.xlu0 %369
        %371 = vrot.lane.b32.xlu0 %v334, 17
        %v372 = vpop.permute.xlu0 %371
        %373 = vrot.lane.b32.xlu0 %v335, 17
        %v374 = vpop.permute.xlu0 %373
        %375 = vrot.lane.b32.xlu0 %v309, 17
        %v376 = vpop.permute.xlu0 %375
        %377 = vrot.lane.b32.xlu0 %v310, 17
        %v378 = vpop.permute.xlu0 %377
        %379 = vrot.lane.b32.xlu0 %v311, 17
        %v380 = vpop.permute.xlu0 %379
        %381 = vrot.lane.b32.xlu0 %v312, 17
        %v382 = vpop.permute.xlu0 %381
        %383 = vrot.lane.b32.xlu0 %v313, 17
        %v384 = vpop.permute.xlu0 %383
        %385 = vrot.lane.b32.xlu0 %v314, 17
        %v386 = vpop.permute.xlu0 %385
        %387 = vrot.lane.b32.xlu0 %v315, 17
        %v388 = vpop.permute.xlu0 %387
        %389 = vrot.lane.b32.xlu0 %v316, 17
        %v390 = vpop.permute.xlu0 %389
        %vm391 = vcmask 138240
        %v392 = vsel %vm391, %v358, %v360
        %v393 = vsel %vm391, %v360, %v362
        %v394 = vsel %vm391, %v358, %v364
        %v395 = vsel %vm391, %v364, %v366
        %v396 = vsel %vm391, %v358, %v368
        %v397 = vsel %vm391, %v368, %v370
        %v398 = vsel %vm391, %v358, %v372
        %v399 = vsel %vm391, %v372, %v374
        %v400 = vsel %vm391, %v358, %v376
        %v401 = vsel %vm391, %v376, %v378
        %v402 = vsel %vm391, %v358, %v380
        %v403 = vsel %vm391, %v380, %v382
        %v404 = vsel %vm391, %v358, %v384
        %v405 = vsel %vm391, %v384, %v386
        %v406 = vsel %vm391, %v358, %v388
        %v407 = vsel %vm391, %v388, %v390
        %v424 = vsel %vm338, %v392, 0.0
        %v425 = vsel %vm339, %v393, 0.0
        %v426 = vsel %vm338, %v394, 0.0
        %v427 = vsel %vm339, %v395, 0.0
        %v428 = vsel %vm338, %v396, 0.0
        %v429 = vsel %vm339, %v397, 0.0
        %v430 = vsel %vm338, %v398, 0.0
        %v431 = vsel %vm339, %v399, 0.0
        %v432 = vsel %vm338, %v400, 0.0
        %v433 = vsel %vm339, %v401, 0.0
        %v434 = vsel %vm338, %v402, 0.0
        %v435 = vsel %vm339, %v403, 0.0
        %v436 = vsel %vm338, %v404, 0.0
        %v437 = vsel %vm339, %v405, 0.0
        %v438 = vsel %vm338, %v406, 0.0
        %v439 = vsel %vm339, %v407, 0.0
        %440 = vst [vmem:[#allocation2] sm:$0xff] %v424
        %441 = vst [vmem:[#allocation2 + $0x8] sm:$0xff] %v425
        %442 = vst [vmem:[#allocation2 + $0x10] sm:$0xff] %v426
        %443 = vst [vmem:[#allocation2 + $0x18] sm:$0xff] %v427
        %444 = vst [vmem:[#allocation2 + $0x20] sm:$0xff] %v428
        %445 = vst [vmem:[#allocation2 + $0x28] sm:$0xff] %v429
        %446 = vst [vmem:[#allocation2 + $0x30] sm:$0xff] %v430
        %447 = vst [vmem:[#allocation2 + $0x38] sm:$0xff] %v431
        %448 = vst [vmem:[#allocation2 + $0x40] sm:$0xff] %v432
        %449 = vst [vmem:[#allocation2 + $0x48] sm:$0xff] %v433
        %450 = vst [vmem:[#allocation2 + $0x50] sm:$0xff] %v434
        %451 = vst [vmem:[#allocation2 + $0x58] sm:$0xff] %v435
        %452 = vst [vmem:[#allocation2 + $0x60] sm:$0xff] %v436
        %453 = vst [vmem:[#allocation2 + $0x68] sm:$0xff] %v437
        %454 = vst [vmem:[#allocation2 + $0x70] sm:$0xff] %v438
        %455 = vst [vmem:[#allocation2 + $0x78] sm:$0xff] %v439
        %456 = vrot.lane.b32.xlu0 0.0, 16
        %v457 = vpop.permute.xlu0 %456
        %458 = vrot.lane.b32.xlu0 %v328, 16
        %v459 = vpop.permute.xlu0 %458
        %460 = vrot.lane.b32.xlu0 %v329, 16
        %v461 = vpop.permute.xlu0 %460
        %462 = vrot.lane.b32.xlu0 %v330, 16
        %v463 = vpop.permute.xlu0 %462
        %464 = vrot.lane.b32.xlu0 %v331, 16
        %v465 = vpop.permute.xlu0 %464
        %466 = vrot.lane.b32.xlu0 %v332, 16
        %v467 = vpop.permute.xlu0 %466
        %468 = vrot.lane.b32.xlu0 %v333, 16
        %v469 = vpop.permute.xlu0 %468
        %470 = vrot.lane.b32.xlu0 %v334, 16
        %v471 = vpop.permute.xlu0 %470
        %472 = vrot.lane.b32.xlu0 %v335, 16
        %v473 = vpop.permute.xlu0 %472
        %474 = vrot.lane.b32.xlu0 %v309, 16
        %v475 = vpop.permute.xlu0 %474
        %476 = vrot.lane.b32.xlu0 %v310, 16
        %v477 = vpop.permute.xlu0 %476
        %478 = vrot.lane.b32.xlu0 %v311, 16
        %v479 = vpop.permute.xlu0 %478
        %480 = vrot.lane.b32.xlu0 %v312, 16
        %v481 = vpop.permute.xlu0 %480
        %482 = vrot.lane.b32.xlu0 %v313, 16
        %v483 = vpop.permute.xlu0 %482
        %484 = vrot.lane.b32.xlu0 %v314, 16
        %v485 = vpop.permute.xlu0 %484
        %486 = vrot.lane.b32.xlu0 %v315, 16
        %v487 = vpop.permute.xlu0 %486
        %488 = vrot.lane.b32.xlu0 %v316, 16
        %v489 = vpop.permute.xlu0 %488
        %vm490 = vcmask 130048
        %v491 = vsel %vm490, %v457, %v459
        %v492 = vsel %vm490, %v459, %v461
        %v493 = vsel %vm490, %v457, %v463
        %v494 = vsel %vm490, %v463, %v465
        %v495 = vsel %vm490, %v457, %v467
        %v496 = vsel %vm490, %v467, %v469
        %v497 = vsel %vm490, %v457, %v471
        %v498 = vsel %vm490, %v471, %v473
        %v499 = vsel %vm490, %v457, %v475
        %v500 = vsel %vm490, %v475, %v477
        %v501 = vsel %vm490, %v457, %v479
        %v502 = vsel %vm490, %v479, %v481
        %v503 = vsel %vm490, %v457, %v483
        %v504 = vsel %vm490, %v483, %v485
        %v505 = vsel %vm490, %v457, %v487
        %v506 = vsel %vm490, %v487, %v489
        %523 = vst [vmem:[#allocation2 + $0x80] sm:$0xff] %v491
        %524 = vst [vmem:[#allocation2 + $0x88] sm:$0xff] %v492
        %525 = vst [vmem:[#allocation2 + $0x90] sm:$0xff] %v493
        %526 = vst [vmem:[#allocation2 + $0x98] sm:$0xff] %v494
        %527 = vst [vmem:[#allocation2 + $0xa0] sm:$0xff] %v495
        %528 = vst [vmem:[#allocation2 + $0xa8] sm:$0xff] %v496
        %529 = vst [vmem:[#allocation2 + $0xb0] sm:$0xff] %v497
        %530 = vst [vmem:[#allocation2 + $0xb8] sm:$0xff] %v498
        %531 = vst [vmem:[#allocation2 + $0xc0] sm:$0xff] %v499
        %532 = vst [vmem:[#allocation2 + $0xc8] sm:$0xff] %v500
        %533 = vst [vmem:[#allocation2 + $0xd0] sm:$0xff] %v501
        %534 = vst [vmem:[#allocation2 + $0xd8] sm:$0xff] %v502
        %535 = vst [vmem:[#allocation2 + $0xe0] sm:$0xff] %v503
        %536 = vst [vmem:[#allocation2 + $0xe8] sm:$0xff] %v504
        %537 = vst [vmem:[#allocation2 + $0xf0] sm:$0xff] %v505
        %538 = vst [vmem:[#allocation2 + $0xf8] sm:$0xff] %v506
        %v539 = vsel %vm252, 1, 0
        %v540 = vsel %vm253, 1, 0
        %vm541 = vcmp.eq.s32.totalorder %v539, 1
        %vm542 = vcmp.eq.s32.totalorder %v540, 1
        %543 = vrot.lane.b32.xlu0 0.0, 15
        %v544 = vpop.permute.xlu0 %543
        %545 = vrot.lane.b32.xlu0 %v328, 15
        %v546 = vpop.permute.xlu0 %545
        %547 = vrot.lane.b32.xlu0 %v329, 15
        %v548 = vpop.permute.xlu0 %547
        %549 = vrot.lane.b32.xlu0 %v330, 15
        %v550 = vpop.permute.xlu0 %549
        %551 = vrot.lane.b32.xlu0 %v331, 15
        %v552 = vpop.permute.xlu0 %551
        %553 = vrot.lane.b32.xlu0 %v332, 15
        %v554 = vpop.permute.xlu0 %553
        %555 = vrot.lane.b32.xlu0 %v333, 15
        %v556 = vpop.permute.xlu0 %555
        %557 = vrot.lane.b32.xlu0 %v334, 15
        %v558 = vpop.permute.xlu0 %557
        %559 = vrot.lane.b32.xlu0 %v335, 15
        %v560 = vpop.permute.xlu0 %559
        %561 = vrot.lane.b32.xlu0 %v309, 15
        %v562 = vpop.permute.xlu0 %561
        %563 = vrot.lane.b32.xlu0 %v310, 15
        %v564 = vpop.permute.xlu0 %563
        %565 = vrot.lane.b32.xlu0 %v311, 15
        %v566 = vpop.permute.xlu0 %565
        %567 = vrot.lane.b32.xlu0 %v312, 15
        %v568 = vpop.permute.xlu0 %567
        %569 = vrot.lane.b32.xlu0 %v313, 15
        %v570 = vpop.permute.xlu0 %569
        %571 = vrot.lane.b32.xlu0 %v314, 15
        %v572 = vpop.permute.xlu0 %571
        %573 = vrot.lane.b32.xlu0 %v315, 15
        %v574 = vpop.permute.xlu0 %573
        %575 = vrot.lane.b32.xlu0 %v316, 15
        %v576 = vpop.permute.xlu0 %575
        %vm577 = vcmask 121856
        %v578 = vsel %vm577, %v544, %v546
        %v579 = vsel %vm577, %v546, %v548
        %v580 = vsel %vm577, %v544, %v550
        %v581 = vsel %vm577, %v550, %v552
        %v582 = vsel %vm577, %v544, %v554
        %v583 = vsel %vm577, %v554, %v556
        %v584 = vsel %vm577, %v544, %v558
        %v585 = vsel %vm577, %v558, %v560
        %v586 = vsel %vm577, %v544, %v562
        %v587 = vsel %vm577, %v562, %v564
        %v588 = vsel %vm577, %v544, %v566
        %v589 = vsel %vm577, %v566, %v568
        %v590 = vsel %vm577, %v544, %v570
        %v591 = vsel %vm577, %v570, %v572
        %v592 = vsel %vm577, %v544, %v574
        %v593 = vsel %vm577, %v574, %v576
        %v610 = vsel %vm541, %v578, 0.0
        %v611 = vsel %vm542, %v579, 0.0
        %v612 = vsel %vm541, %v580, 0.0
        %v613 = vsel %vm542, %v581, 0.0
        %v614 = vsel %vm541, %v582, 0.0
        %v615 = vsel %vm542, %v583, 0.0
        %v616 = vsel %vm541, %v584, 0.0
        %v617 = vsel %vm542, %v585, 0.0
        %v618 = vsel %vm541, %v586, 0.0
        %v619 = vsel %vm542, %v587, 0.0
        %v620 = vsel %vm541, %v588, 0.0
        %v621 = vsel %vm542, %v589, 0.0
        %v622 = vsel %vm541, %v590, 0.0
        %v623 = vsel %vm542, %v591, 0.0
        %v624 = vsel %vm541, %v592, 0.0
        %v625 = vsel %vm542, %v593, 0.0
        %626 = vst [vmem:[#allocation2 + $0x100] sm:$0xff] %v610
        %627 = vst [vmem:[#allocation2 + $0x108] sm:$0xff] %v611
        %628 = vst [vmem:[#allocation2 + $0x110] sm:$0xff] %v612
        %629 = vst [vmem:[#allocation2 + $0x118] sm:$0xff] %v613
        %630 = vst [vmem:[#allocation2 + $0x120] sm:$0xff] %v614
        %631 = vst [vmem:[#allocation2 + $0x128] sm:$0xff] %v615
        %632 = vst [vmem:[#allocation2 + $0x130] sm:$0xff] %v616
        %633 = vst [vmem:[#allocation2 + $0x138] sm:$0xff] %v617
        %634 = vst [vmem:[#allocation2 + $0x140] sm:$0xff] %v618
        %635 = vst [vmem:[#allocation2 + $0x148] sm:$0xff] %v619
        %636 = vst [vmem:[#allocation2 + $0x150] sm:$0xff] %v620
        %637 = vst [vmem:[#allocation2 + $0x158] sm:$0xff] %v621
        %638 = vst [vmem:[#allocation2 + $0x160] sm:$0xff] %v622
        %639 = vst [vmem:[#allocation2 + $0x168] sm:$0xff] %v623
        %640 = vst [vmem:[#allocation2 + $0x170] sm:$0xff] %v624
        %641 = vst [vmem:[#allocation2 + $0x178] sm:$0xff] %v625
        %642 = vrot.lane.b32.xlu0 0.0, 1
        %v643 = vpop.permute.xlu0 %642
        %644 = vrot.lane.b32.xlu0 %v328, 1
        %v645 = vpop.permute.xlu0 %644
        %646 = vrot.lane.b32.xlu0 %v329, 1
        %v647 = vpop.permute.xlu0 %646
        %648 = vrot.lane.b32.xlu0 %v330, 1
        %v649 = vpop.permute.xlu0 %648
        %650 = vrot.lane.b32.xlu0 %v331, 1
        %v651 = vpop.permute.xlu0 %650
        %652 = vrot.lane.b32.xlu0 %v332, 1
        %v653 = vpop.permute.xlu0 %652
        %654 = vrot.lane.b32.xlu0 %v333, 1
        %v655 = vpop.permute.xlu0 %654
        %656 = vrot.lane.b32.xlu0 %v334, 1
        %v657 = vpop.permute.xlu0 %656
        %658 = vrot.lane.b32.xlu0 %v335, 1
        %v659 = vpop.permute.xlu0 %658
        %660 = vrot.lane.b32.xlu0 %v309, 1
        %v661 = vpop.permute.xlu0 %660
        %662 = vrot.lane.b32.xlu0 %v310, 1
        %v663 = vpop.permute.xlu0 %662
        %664 = vrot.lane.b32.xlu0 %v311, 1
        %v665 = vpop.permute.xlu0 %664
        %666 = vrot.lane.b32.xlu0 %v312, 1
        %v667 = vpop.permute.xlu0 %666
        %668 = vrot.lane.b32.xlu0 %v313, 1
        %v669 = vpop.permute.xlu0 %668
        %670 = vrot.lane.b32.xlu0 %v314, 1
        %v671 = vpop.permute.xlu0 %670
        %672 = vrot.lane.b32.xlu0 %v315, 1
        %v673 = vpop.permute.xlu0 %672
        %674 = vrot.lane.b32.xlu0 %v316, 1
        %v675 = vpop.permute.xlu0 %674
        %vm676 = vcmask 7168
        %v677 = vsel %vm676, %v643, %v645
        %v678 = vsel %vm676, %v645, %v647
        %v679 = vsel %vm676, %v643, %v649
        %v680 = vsel %vm676, %v649, %v651
        %v681 = vsel %vm676, %v643, %v653
        %v682 = vsel %vm676, %v653, %v655
        %v683 = vsel %vm676, %v643, %v657
        %v684 = vsel %vm676, %v657, %v659
        %v685 = vsel %vm676, %v643, %v661
        %v686 = vsel %vm676, %v661, %v663
        %v687 = vsel %vm676, %v643, %v665
        %v688 = vsel %vm676, %v665, %v667
        %v689 = vsel %vm676, %v643, %v669
        %v690 = vsel %vm676, %v669, %v671
        %v691 = vsel %vm676, %v643, %v673
        %v692 = vsel %vm676, %v673, %v675
        %v709 = vsel %vm338, %v677, 0.0
        %v710 = vsel %vm339, %v678, 0.0
        %v711 = vsel %vm338, %v679, 0.0
        %v712 = vsel %vm339, %v680, 0.0
        %v713 = vsel %vm338, %v681, 0.0
        %v714 = vsel %vm339, %v682, 0.0
        %v715 = vsel %vm338, %v683, 0.0
        %v716 = vsel %vm339, %v684, 0.0
        %v717 = vsel %vm338, %v685, 0.0
        %v718 = vsel %vm339, %v686, 0.0
        %v719 = vsel %vm338, %v687, 0.0
        %v720 = vsel %vm339, %v688, 0.0
        %v721 = vsel %vm338, %v689, 0.0
        %v722 = vsel %vm339, %v690, 0.0
        %v723 = vsel %vm338, %v691, 0.0
        %v724 = vsel %vm339, %v692, 0.0
        %725 = vst [vmem:[#allocation2 + $0x180] sm:$0xff] %v709
        %726 = vst [vmem:[#allocation2 + $0x188] sm:$0xff] %v710
        %727 = vst [vmem:[#allocation2 + $0x190] sm:$0xff] %v711
        %728 = vst [vmem:[#allocation2 + $0x198] sm:$0xff] %v712
        %729 = vst [vmem:[#allocation2 + $0x1a0] sm:$0xff] %v713
        %730 = vst [vmem:[#allocation2 + $0x1a8] sm:$0xff] %v714
        %731 = vst [vmem:[#allocation2 + $0x1b0] sm:$0xff] %v715
        %732 = vst [vmem:[#allocation2 + $0x1b8] sm:$0xff] %v716
        %733 = vst [vmem:[#allocation2 + $0x1c0] sm:$0xff] %v717
        %734 = vst [vmem:[#allocation2 + $0x1c8] sm:$0xff] %v718
        %735 = vst [vmem:[#allocation2 + $0x1d0] sm:$0xff] %v719
        %736 = vst [vmem:[#allocation2 + $0x1d8] sm:$0xff] %v720
        %737 = vst [vmem:[#allocation2 + $0x1e0] sm:$0xff] %v721
        %738 = vst [vmem:[#allocation2 + $0x1e8] sm:$0xff] %v722
        %739 = vst [vmem:[#allocation2 + $0x1f0] sm:$0xff] %v723
        %740 = vst [vmem:[#allocation2 + $0x1f8] sm:$0xff] %v724
        %741 = vst [vmem:[#allocation2 + $0x200] sm:$0xff] %v328
        %742 = vst [vmem:[#allocation2 + $0x208] sm:$0xff] %v329
        %743 = vst [vmem:[#allocation2 + $0x210] sm:$0xff] %v330
        %744 = vst [vmem:[#allocation2 + $0x218] sm:$0xff] %v331
        %745 = vst [vmem:[#allocation2 + $0x220] sm:$0xff] %v332
        %746 = vst [vmem:[#allocation2 + $0x228] sm:$0xff] %v333
        %747 = vst [vmem:[#allocation2 + $0x230] sm:$0xff] %v334
        %748 = vst [vmem:[#allocation2 + $0x238] sm:$0xff] %v335
        %749 = vst [vmem:[#allocation2 + $0x240] sm:$0xff] %v309
        %750 = vst [vmem:[#allocation2 + $0x248] sm:$0xff] %v310
        %751 = vst [vmem:[#allocation2 + $0x250] sm:$0xff] %v311
        %752 = vst [vmem:[#allocation2 + $0x258] sm:$0xff] %v312
        %753 = vst [vmem:[#allocation2 + $0x260] sm:$0xff] %v313
        %754 = vst [vmem:[#allocation2 + $0x268] sm:$0xff] %v314
        %755 = vst [vmem:[#allocation2 + $0x270] sm:$0xff] %v315
        %756 = vst [vmem:[#allocation2 + $0x278] sm:$0xff] %v316
        %757 = vrot.lane.b32.xlu0 %v328, 127
        %v758 = vpop.permute.xlu0 %757
        %759 = vrot.lane.b32.xlu0 %v329, 127
        %v760 = vpop.permute.xlu0 %759
        %761 = vrot.lane.b32.xlu0 0.0, 127
        %v762 = vpop.permute.xlu0 %761
        %763 = vrot.lane.b32.xlu0 %v330, 127
        %v764 = vpop.permute.xlu0 %763
        %765 = vrot.lane.b32.xlu0 %v331, 127
        %v766 = vpop.permute.xlu0 %765
        %767 = vrot.lane.b32.xlu0 %v332, 127
        %v768 = vpop.permute.xlu0 %767
        %769 = vrot.lane.b32.xlu0 %v333, 127
        %v770 = vpop.permute.xlu0 %769
        %771 = vrot.lane.b32.xlu0 %v334, 127
        %v772 = vpop.permute.xlu0 %771
        %773 = vrot.lane.b32.xlu0 %v335, 127
        %v774 = vpop.permute.xlu0 %773
        %775 = vrot.lane.b32.xlu0 %v309, 127
        %v776 = vpop.permute.xlu0 %775
        %777 = vrot.lane.b32.xlu0 %v310, 127
        %v778 = vpop.permute.xlu0 %777
        %779 = vrot.lane.b32.xlu0 %v311, 127
        %v780 = vpop.permute.xlu0 %779
        %781 = vrot.lane.b32.xlu0 %v312, 127
        %v782 = vpop.permute.xlu0 %781
        %783 = vrot.lane.b32.xlu0 %v313, 127
        %v784 = vpop.permute.xlu0 %783
        %785 = vrot.lane.b32.xlu0 %v314, 127
        %v786 = vpop.permute.xlu0 %785
        %787 = vrot.lane.b32.xlu0 %v315, 127
        %v788 = vpop.permute.xlu0 %787
        %789 = vrot.lane.b32.xlu0 %v316, 127
        %v790 = vpop.permute.xlu0 %789
        %vm791 = vcmask 1039360
        %v792 = vsel %vm791, %v758, %v760
        %v793 = vsel %vm791, %v760, %v762
        %v794 = vsel %vm791, %v764, %v766
        %v795 = vsel %vm791, %v766, %v762
        %v796 = vsel %vm791, %v768, %v770
        %v797 = vsel %vm791, %v770, %v762
        %v798 = vsel %vm791, %v772, %v774
        %v799 = vsel %vm791, %v774, %v762
        %v800 = vsel %vm791, %v776, %v778
        %v801 = vsel %vm791, %v778, %v762
        %v802 = vsel %vm791, %v780, %v782
        %v803 = vsel %vm791, %v782, %v762
        %v804 = vsel %vm791, %v784, %v786
        %v805 = vsel %vm791, %v786, %v762
        %v806 = vsel %vm791, %v788, %v790
        %v807 = vsel %vm791, %v790, %v762
        %v824 = vsel %vm541, %v792, 0.0
        %v825 = vsel %vm542, %v793, 0.0
        %v826 = vsel %vm541, %v794, 0.0
        %v827 = vsel %vm542, %v795, 0.0
        %v828 = vsel %vm541, %v796, 0.0
        %v829 = vsel %vm542, %v797, 0.0
        %v830 = vsel %vm541, %v798, 0.0
        %v831 = vsel %vm542, %v799, 0.0
        %v832 = vsel %vm541, %v800, 0.0
        %v833 = vsel %vm542, %v801, 0.0
        %v834 = vsel %vm541, %v802, 0.0
        %v835 = vsel %vm542, %v803, 0.0
        %v836 = vsel %vm541, %v804, 0.0
        %v837 = vsel %vm542, %v805, 0.0
        %v838 = vsel %vm541, %v806, 0.0
        %v839 = vsel %vm542, %v807, 0.0
        %840 = vst [vmem:[#allocation2 + $0x280] sm:$0xff] %v824
        %841 = vst [vmem:[#allocation2 + $0x288] sm:$0xff] %v825
        %842 = vst [vmem:[#allocation2 + $0x290] sm:$0xff] %v826
        %843 = vst [vmem:[#allocation2 + $0x298] sm:$0xff] %v827
        %844 = vst [vmem:[#allocation2 + $0x2a0] sm:$0xff] %v828
        %845 = vst [vmem:[#allocation2 + $0x2a8] sm:$0xff] %v829
        %846 = vst [vmem:[#allocation2 + $0x2b0] sm:$0xff] %v830
        %847 = vst [vmem:[#allocation2 + $0x2b8] sm:$0xff] %v831
        %848 = vst [vmem:[#allocation2 + $0x2c0] sm:$0xff] %v832
        %849 = vst [vmem:[#allocation2 + $0x2c8] sm:$0xff] %v833
        %850 = vst [vmem:[#allocation2 + $0x2d0] sm:$0xff] %v834
        %851 = vst [vmem:[#allocation2 + $0x2d8] sm:$0xff] %v835
        %852 = vst [vmem:[#allocation2 + $0x2e0] sm:$0xff] %v836
        %853 = vst [vmem:[#allocation2 + $0x2e8] sm:$0xff] %v837
        %854 = vst [vmem:[#allocation2 + $0x2f0] sm:$0xff] %v838
        %855 = vst [vmem:[#allocation2 + $0x2f8] sm:$0xff] %v839
        %856 = vrot.lane.b32.xlu0 %v328, 113
        %v857 = vpop.permute.xlu0 %856
        %858 = vrot.lane.b32.xlu0 %v329, 113
        %v859 = vpop.permute.xlu0 %858
        %860 = vrot.lane.b32.xlu0 0.0, 113
        %v861 = vpop.permute.xlu0 %860
        %862 = vrot.lane.b32.xlu0 %v330, 113
        %v863 = vpop.permute.xlu0 %862
        %864 = vrot.lane.b32.xlu0 %v331, 113
        %v865 = vpop.permute.xlu0 %864
        %866 = vrot.lane.b32.xlu0 %v332, 113
        %v867 = vpop.permute.xlu0 %866
        %868 = vrot.lane.b32.xlu0 %v333, 113
        %v869 = vpop.permute.xlu0 %868
        %870 = vrot.lane.b32.xlu0 %v334, 113
        %v871 = vpop.permute.xlu0 %870
        %872 = vrot.lane.b32.xlu0 %v335, 113
        %v873 = vpop.permute.xlu0 %872
        %874 = vrot.lane.b32.xlu0 %v309, 113
        %v875 = vpop.permute.xlu0 %874
        %876 = vrot.lane.b32.xlu0 %v310, 113
        %v877 = vpop.permute.xlu0 %876
        %878 = vrot.lane.b32.xlu0 %v311, 113
        %v879 = vpop.permute.xlu0 %878
        %880 = vrot.lane.b32.xlu0 %v312, 113
        %v881 = vpop.permute.xlu0 %880
        %882 = vrot.lane.b32.xlu0 %v313, 113
        %v883 = vpop.permute.xlu0 %882
        %884 = vrot.lane.b32.xlu0 %v314, 113
        %v885 = vpop.permute.xlu0 %884
        %886 = vrot.lane.b32.xlu0 %v315, 113
        %v887 = vpop.permute.xlu0 %886
        %888 = vrot.lane.b32.xlu0 %v316, 113
        %v889 = vpop.permute.xlu0 %888
        %vm890 = vcmask 924672
        %v891 = vsel %vm890, %v857, %v859
        %v892 = vsel %vm890, %v859, %v861
        %v893 = vsel %vm890, %v863, %v865
        %v894 = vsel %vm890, %v865, %v861
        %v895 = vsel %vm890, %v867, %v869
        %v896 = vsel %vm890, %v869, %v861
        %v897 = vsel %vm890, %v871, %v873
        %v898 = vsel %vm890, %v873, %v861
        %v899 = vsel %vm890, %v875, %v877
        %v900 = vsel %vm890, %v877, %v861
        %v901 = vsel %vm890, %v879, %v881
        %v902 = vsel %vm890, %v881, %v861
        %v903 = vsel %vm890, %v883, %v885
        %v904 = vsel %vm890, %v885, %v861
        %v905 = vsel %vm890, %v887, %v889
        %v906 = vsel %vm890, %v889, %v861
        %v923 = vsel %vm338, %v891, 0.0
        %v924 = vsel %vm339, %v892, 0.0
        %v925 = vsel %vm338, %v893, 0.0
        %v926 = vsel %vm339, %v894, 0.0
        %v927 = vsel %vm338, %v895, 0.0
        %v928 = vsel %vm339, %v896, 0.0
        %v929 = vsel %vm338, %v897, 0.0
        %v930 = vsel %vm339, %v898, 0.0
        %v931 = vsel %vm338, %v899, 0.0
        %v932 = vsel %vm339, %v900, 0.0
        %v933 = vsel %vm338, %v901, 0.0
        %v934 = vsel %vm339, %v902, 0.0
        %v935 = vsel %vm338, %v903, 0.0
        %v936 = vsel %vm339, %v904, 0.0
        %v937 = vsel %vm338, %v905, 0.0
        %v938 = vsel %vm339, %v906, 0.0
        %939 = vst [vmem:[#allocation2 + $0x300] sm:$0xff] %v923
        %940 = vst [vmem:[#allocation2 + $0x308] sm:$0xff] %v924
        %941 = vst [vmem:[#allocation2 + $0x310] sm:$0xff] %v925
        %942 = vst [vmem:[#allocation2 + $0x318] sm:$0xff] %v926
        %943 = vst [vmem:[#allocation2 + $0x320] sm:$0xff] %v927
        %944 = vst [vmem:[#allocation2 + $0x328] sm:$0xff] %v928
        %945 = vst [vmem:[#allocation2 + $0x330] sm:$0xff] %v929
        %946 = vst [vmem:[#allocation2 + $0x338] sm:$0xff] %v930
        %947 = vst [vmem:[#allocation2 + $0x340] sm:$0xff] %v931
        %948 = vst [vmem:[#allocation2 + $0x348] sm:$0xff] %v932
        %949 = vst [vmem:[#allocation2 + $0x350] sm:$0xff] %v933
        %950 = vst [vmem:[#allocation2 + $0x358] sm:$0xff] %v934
        %951 = vst [vmem:[#allocation2 + $0x360] sm:$0xff] %v935
        %952 = vst [vmem:[#allocation2 + $0x368] sm:$0xff] %v936
        %953 = vst [vmem:[#allocation2 + $0x370] sm:$0xff] %v937
        %954 = vst [vmem:[#allocation2 + $0x378] sm:$0xff] %v938
        %955 = vrot.lane.b32.xlu0 %v328, 112
        %v956 = vpop.permute.xlu0 %955
        %957 = vrot.lane.b32.xlu0 %v329, 112
        %v958 = vpop.permute.xlu0 %957
        %959 = vrot.lane.b32.xlu0 0.0, 112
        %v960 = vpop.permute.xlu0 %959
        %961 = vrot.lane.b32.xlu0 %v330, 112
        %v962 = vpop.permute.xlu0 %961
        %963 = vrot.lane.b32.xlu0 %v331, 112
        %v964 = vpop.permute.xlu0 %963
        %965 = vrot.lane.b32.xlu0 %v332, 112
        %v966 = vpop.permute.xlu0 %965
        %967 = vrot.lane.b32.xlu0 %v333, 112
        %v968 = vpop.permute.xlu0 %967
        %969 = vrot.lane.b32.xlu0 %v334, 112
        %v970 = vpop.permute.xlu0 %969
        %971 = vrot.lane.b32.xlu0 %v335, 112
        %v972 = vpop.permute.xlu0 %971
        %973 = vrot.lane.b32.xlu0 %v309, 112
        %v974 = vpop.permute.xlu0 %973
        %975 = vrot.lane.b32.xlu0 %v310, 112
        %v976 = vpop.permute.xlu0 %975
        %977 = vrot.lane.b32.xlu0 %v311, 112
        %v978 = vpop.permute.xlu0 %977
        %979 = vrot.lane.b32.xlu0 %v312, 112
        %v980 = vpop.permute.xlu0 %979
        %981 = vrot.lane.b32.xlu0 %v313, 112
        %v982 = vpop.permute.xlu0 %981
        %983 = vrot.lane.b32.xlu0 %v314, 112
        %v984 = vpop.permute.xlu0 %983
        %985 = vrot.lane.b32.xlu0 %v315, 112
        %v986 = vpop.permute.xlu0 %985
        %987 = vrot.lane.b32.xlu0 %v316, 112
        %v988 = vpop.permute.xlu0 %987
        %vm989 = vcmask 916480
        %v990 = vsel %vm989, %v956, %v958
        %v991 = vsel %vm989, %v958, %v960
        %v992 = vsel %vm989, %v962, %v964
        %v993 = vsel %vm989, %v964, %v960
        %v994 = vsel %vm989, %v966, %v968
        %v995 = vsel %vm989, %v968, %v960
        %v996 = vsel %vm989, %v970, %v972
        %v997 = vsel %vm989, %v972, %v960
        %v998 = vsel %vm989, %v974, %v976
        %v999 = vsel %vm989, %v976, %v960
        %v1000 = vsel %vm989, %v978, %v980
        %v1001 = vsel %vm989, %v980, %v960
        %v1002 = vsel %vm989, %v982, %v984
        %v1003 = vsel %vm989, %v984, %v960
        %v1004 = vsel %vm989, %v986, %v988
        %v1005 = vsel %vm989, %v988, %v960
        %1022 = vst [vmem:[#allocation2 + $0x380] sm:$0xff] %v990
        %1023 = vst [vmem:[#allocation2 + $0x388] sm:$0xff] %v991
        %1024 = vst [vmem:[#allocation2 + $0x390] sm:$0xff] %v992
        %1025 = vst [vmem:[#allocation2 + $0x398] sm:$0xff] %v993
        %1026 = vst [vmem:[#allocation2 + $0x3a0] sm:$0xff] %v994
        %1027 = vst [vmem:[#allocation2 + $0x3a8] sm:$0xff] %v995
        %1028 = vst [vmem:[#allocation2 + $0x3b0] sm:$0xff] %v996
        %1029 = vst [vmem:[#allocation2 + $0x3b8] sm:$0xff] %v997
        %1030 = vst [vmem:[#allocation2 + $0x3c0] sm:$0xff] %v998
        %1031 = vst [vmem:[#allocation2 + $0x3c8] sm:$0xff] %v999
        %1032 = vst [vmem:[#allocation2 + $0x3d0] sm:$0xff] %v1000
        %1033 = vst [vmem:[#allocation2 + $0x3d8] sm:$0xff] %v1001
        %1034 = vst [vmem:[#allocation2 + $0x3e0] sm:$0xff] %v1002
        %1035 = vst [vmem:[#allocation2 + $0x3e8] sm:$0xff] %v1003
        %1036 = vst [vmem:[#allocation2 + $0x3f0] sm:$0xff] %v1004
        %1037 = vst [vmem:[#allocation2 + $0x3f8] sm:$0xff] %v1005
        %1038 = vrot.lane.b32.xlu0 %v328, 111
        %v1039 = vpop.permute.xlu0 %1038
        %1040 = vrot.lane.b32.xlu0 %v329, 111
        %v1041 = vpop.permute.xlu0 %1040
        %1042 = vrot.lane.b32.xlu0 0.0, 111
        %v1043 = vpop.permute.xlu0 %1042
        %1044 = vrot.lane.b32.xlu0 %v330, 111
        %v1045 = vpop.permute.xlu0 %1044
        %1046 = vrot.lane.b32.xlu0 %v331, 111
        %v1047 = vpop.permute.xlu0 %1046
        %1048 = vrot.lane.b32.xlu0 %v332, 111
        %v1049 = vpop.permute.xlu0 %1048
        %1050 = vrot.lane.b32.xlu0 %v333, 111
        %v1051 = vpop.permute.xlu0 %1050
        %1052 = vrot.lane.b32.xlu0 %v334, 111
        %v1053 = vpop.permute.xlu0 %1052
        %1054 = vrot.lane.b32.xlu0 %v335, 111
        %v1055 = vpop.permute.xlu0 %1054
        %1056 = vrot.lane.b32.xlu0 %v309, 111
        %v1057 = vpop.permute.xlu0 %1056
        %1058 = vrot.lane.b32.xlu0 %v310, 111
        %v1059 = vpop.permute.xlu0 %1058
        %1060 = vrot.lane.b32.xlu0 %v311, 111
        %v1061 = vpop.permute.xlu0 %1060
        %1062 = vrot.lane.b32.xlu0 %v312, 111
        %v1063 = vpop.permute.xlu0 %1062
        %1064 = vrot.lane.b32.xlu0 %v313, 111
        %v1065 = vpop.permute.xlu0 %1064
        %1066 = vrot.lane.b32.xlu0 %v314, 111
        %v1067 = vpop.permute.xlu0 %1066
        %1068 = vrot.lane.b32.xlu0 %v315, 111
        %v1069 = vpop.permute.xlu0 %1068
        %1070 = vrot.lane.b32.xlu0 %v316, 111
        %v1071 = vpop.permute.xlu0 %1070
        %vm1072 = vcmask 908288
        %v1073 = vsel %vm1072, %v1039, %v1041
        %v1074 = vsel %vm1072, %v1041, %v1043
        %v1075 = vsel %vm1072, %v1045, %v1047
        %v1076 = vsel %vm1072, %v1047, %v1043
        %v1077 = vsel %vm1072, %v1049, %v1051
        %v1078 = vsel %vm1072, %v1051, %v1043
        %v1079 = vsel %vm1072, %v1053, %v1055
        %v1080 = vsel %vm1072, %v1055, %v1043
        %v1081 = vsel %vm1072, %v1057, %v1059
        %v1082 = vsel %vm1072, %v1059, %v1043
        %v1083 = vsel %vm1072, %v1061, %v1063
        %v1084 = vsel %vm1072, %v1063, %v1043
        %v1085 = vsel %vm1072, %v1065, %v1067
        %v1086 = vsel %vm1072, %v1067, %v1043
        %v1087 = vsel %vm1072, %v1069, %v1071
        %v1088 = vsel %vm1072, %v1071, %v1043
        %v1105 = vsel %vm541, %v1073, 0.0
        %v1106 = vsel %vm542, %v1074, 0.0
        %v1107 = vsel %vm541, %v1075, 0.0
        %v1108 = vsel %vm542, %v1076, 0.0
        %v1109 = vsel %vm541, %v1077, 0.0
        %v1110 = vsel %vm542, %v1078, 0.0
        %v1111 = vsel %vm541, %v1079, 0.0
        %v1112 = vsel %vm542, %v1080, 0.0
        %v1113 = vsel %vm541, %v1081, 0.0
        %v1114 = vsel %vm542, %v1082, 0.0
        %v1115 = vsel %vm541, %v1083, 0.0
        %v1116 = vsel %vm542, %v1084, 0.0
        %v1117 = vsel %vm541, %v1085, 0.0
        %v1118 = vsel %vm542, %v1086, 0.0
        %v1119 = vsel %vm541, %v1087, 0.0
        %v1120 = vsel %vm542, %v1088, 0.0
        %1121 = vst [vmem:[#allocation2 + $0x400] sm:$0xff] %v1105
        %1122 = vst [vmem:[#allocation2 + $0x408] sm:$0xff] %v1106
        %1123 = vst [vmem:[#allocation2 + $0x410] sm:$0xff] %v1107
        %1124 = vst [vmem:[#allocation2 + $0x418] sm:$0xff] %v1108
        %1125 = vst [vmem:[#allocation2 + $0x420] sm:$0xff] %v1109
        %1126 = vst [vmem:[#allocation2 + $0x428] sm:$0xff] %v1110
        %1127 = vst [vmem:[#allocation2 + $0x430] sm:$0xff] %v1111
        %1128 = vst [vmem:[#allocation2 + $0x438] sm:$0xff] %v1112
        %1129 = vst [vmem:[#allocation2 + $0x440] sm:$0xff] %v1113
        %1130 = vst [vmem:[#allocation2 + $0x448] sm:$0xff] %v1114
        %1131 = vst [vmem:[#allocation2 + $0x450] sm:$0xff] %v1115
        %1132 = vst [vmem:[#allocation2 + $0x458] sm:$0xff] %v1116
        %1133 = vst [vmem:[#allocation2 + $0x460] sm:$0xff] %v1117
        %1134 = vst [vmem:[#allocation2 + $0x468] sm:$0xff] %v1118
        %1135 = vst [vmem:[#allocation2 + $0x470] sm:$0xff] %v1119
        %1136 = vst [vmem:[#allocation2 + $0x478] sm:$0xff] %v1120
        %v1137 = vld [vmem:[%s1] sm:$0xff]
        %v1138 = vld [vmem:[%s1 + $0x8] sm:$0xff]
        %v1139 = vld [vmem:[%s1 + $0x10] sm:$0xff]
        %v1140 = vld [vmem:[%s1 + $0x18] sm:$0xff]
        %v1141 = vld [vmem:[%s1 + $0x20] sm:$0xff]
        %v1142 = vld [vmem:[%s1 + $0x28] sm:$0xff]
        %v1143 = vld [vmem:[%s1 + $0x30] sm:$0xff]
        %v1144 = vld [vmem:[%s1 + $0x38] sm:$0xff]
        %v1145 = vld [vmem:[%s1 + $0x40] sm:$0xff]
        %v1146 = vld [vmem:[%s1 + $0x48] sm:$0xff]
        %v1147 = vld [vmem:[%s1 + $0x50] sm:$0xff]
        %v1148 = vld [vmem:[%s1 + $0x58] sm:$0xff]
        %v1149 = vld [vmem:[%s1 + $0x60] sm:$0xff]
        %v1150 = vld [vmem:[%s1 + $0x68] sm:$0xff]
        %v1151 = vld [vmem:[%s1 + $0x70] sm:$0xff]
        %v1152 = vld [vmem:[%s1 + $0x78] sm:$0xff]
        %v1153 = vld [vmem:[%s1 + $0x80] sm:$0xff]
        %v1154 = vld [vmem:[%s1 + $0x88] sm:$0xff]
        %v1155 = vld [vmem:[%s1 + $0x90] sm:$0xff]
        %v1156 = vld [vmem:[%s1 + $0x98] sm:$0xff]
        %v1157 = vld [vmem:[%s1 + $0xa0] sm:$0xff]
        %v1158 = vld [vmem:[%s1 + $0xa8] sm:$0xff]
        %v1159 = vld [vmem:[%s1 + $0xb0] sm:$0xff]
        %v1160 = vld [vmem:[%s1 + $0xb8] sm:$0xff]
        %v1161 = vld [vmem:[%s1 + $0xc0] sm:$0xff]
        %v1162 = vld [vmem:[%s1 + $0xc8] sm:$0xff]
        %v1163 = vld [vmem:[%s1 + $0xd0] sm:$0xff]
        %v1164 = vld [vmem:[%s1 + $0xd8] sm:$0xff]
        %v1165 = vld [vmem:[%s1 + $0xe0] sm:$0xff]
        %v1166 = vld [vmem:[%s1 + $0xe8] sm:$0xff]
        %v1167 = vld [vmem:[%s1 + $0xf0] sm:$0xff]
        %v1168 = vld [vmem:[%s1 + $0xf8] sm:$0xff]
        %v1169 = vld [vmem:[%s1 + $0x100] sm:$0xff]
        %v1170 = vld [vmem:[%s1 + $0x108] sm:$0xff]
        %v1171 = vld [vmem:[%s1 + $0x110] sm:$0xff]
        %v1172 = vld [vmem:[%s1 + $0x118] sm:$0xff]
        %v1173 = vld [vmem:[%s1 + $0x120] sm:$0xff]
        %v1174 = vld [vmem:[%s1 + $0x128] sm:$0xff]
        %v1175 = vld [vmem:[%s1 + $0x130] sm:$0xff]
        %v1176 = vld [vmem:[%s1 + $0x138] sm:$0xff]
        %v1177 = vld [vmem:[%s1 + $0x140] sm:$0xff]
        %v1178 = vld [vmem:[%s1 + $0x148] sm:$0xff]
        %v1179 = vld [vmem:[%s1 + $0x150] sm:$0xff]
        %v1180 = vld [vmem:[%s1 + $0x158] sm:$0xff]
        %v1181 = vld [vmem:[%s1 + $0x160] sm:$0xff]
        %v1182 = vld [vmem:[%s1 + $0x168] sm:$0xff]
        %v1183 = vld [vmem:[%s1 + $0x170] sm:$0xff]
        %v1184 = vld [vmem:[%s1 + $0x178] sm:$0xff]
        %v1185 = vld [vmem:[%s1 + $0x180] sm:$0xff]
        %v1186 = vld [vmem:[%s1 + $0x188] sm:$0xff]
        %v1187 = vld [vmem:[%s1 + $0x190] sm:$0xff]
        %v1188 = vld [vmem:[%s1 + $0x198] sm:$0xff]
        %v1189 = vld [vmem:[%s1 + $0x1a0] sm:$0xff]
        %v1190 = vld [vmem:[%s1 + $0x1a8] sm:$0xff]
        %v1191 = vld [vmem:[%s1 + $0x1b0] sm:$0xff]
        %v1192 = vld [vmem:[%s1 + $0x1b8] sm:$0xff]
        %v1193 = vld [vmem:[%s1 + $0x1c0] sm:$0xff]
        %v1194 = vld [vmem:[%s1 + $0x1c8] sm:$0xff]
        %v1195 = vld [vmem:[%s1 + $0x1d0] sm:$0xff]
        %v1196 = vld [vmem:[%s1 + $0x1d8] sm:$0xff]
        %v1197 = vld [vmem:[%s1 + $0x1e0] sm:$0xff]
        %v1198 = vld [vmem:[%s1 + $0x1e8] sm:$0xff]
        %v1199 = vld [vmem:[%s1 + $0x1f0] sm:$0xff]
        %v1200 = vld [vmem:[%s1 + $0x1f8] sm:$0xff]
        %v1201 = vld [vmem:[%s1 + $0x200] sm:$0xff]
        %v1202 = vld [vmem:[%s1 + $0x208] sm:$0xff]
        %v1203 = vld [vmem:[%s1 + $0x210] sm:$0xff]
        %v1204 = vld [vmem:[%s1 + $0x218] sm:$0xff]
        %v1205 = vld [vmem:[%s1 + $0x220] sm:$0xff]
        %v1206 = vld [vmem:[%s1 + $0x228] sm:$0xff]
        %v1207 = vld [vmem:[%s1 + $0x230] sm:$0xff]
        %v1208 = vld [vmem:[%s1 + $0x238] sm:$0xff]
        %v1209 = vld [vmem:[%s1 + $0x240] sm:$0xff]
        %v1210 = vld [vmem:[%s1 + $0x248] sm:$0xff]
        %v1211 = vld [vmem:[%s1 + $0x250] sm:$0xff]
        %v1212 = vld [vmem:[%s1 + $0x258] sm:$0xff]
        %v1213 = vld [vmem:[%s1 + $0x260] sm:$0xff]
        %v1214 = vld [vmem:[%s1 + $0x268] sm:$0xff]
        %v1215 = vld [vmem:[%s1 + $0x270] sm:$0xff]
        %v1216 = vld [vmem:[%s1 + $0x278] sm:$0xff]
        %v1217 = vld [vmem:[#allocation2] sm:$0xff]
        %v1218 = vld [vmem:[#allocation2 + $0x8] sm:$0xff]
        %v1219 = vld [vmem:[#allocation2 + $0x10] sm:$0xff]
        %v1220 = vld [vmem:[#allocation2 + $0x18] sm:$0xff]
        %v1221 = vld [vmem:[#allocation2 + $0x20] sm:$0xff]
        %v1222 = vld [vmem:[#allocation2 + $0x28] sm:$0xff]
        %v1223 = vld [vmem:[#allocation2 + $0x30] sm:$0xff]
        %v1224 = vld [vmem:[#allocation2 + $0x38] sm:$0xff]
        %v1225 = vld [vmem:[#allocation2 + $0x40] sm:$0xff]
        %v1226 = vld [vmem:[#allocation2 + $0x48] sm:$0xff]
        %v1227 = vld [vmem:[#allocation2 + $0x50] sm:$0xff]
        %v1228 = vld [vmem:[#allocation2 + $0x58] sm:$0xff]
        %v1229 = vld [vmem:[#allocation2 + $0x60] sm:$0xff]
        %v1230 = vld [vmem:[#allocation2 + $0x68] sm:$0xff]
        %v1231 = vld [vmem:[#allocation2 + $0x70] sm:$0xff]
        %v1232 = vld [vmem:[#allocation2 + $0x78] sm:$0xff]
        %v1233 = vld [vmem:[#allocation2 + $0x80] sm:$0xff]
        %v1234 = vld [vmem:[#allocation2 + $0x88] sm:$0xff]
        %v1235 = vld [vmem:[#allocation2 + $0x90] sm:$0xff]
        %v1236 = vld [vmem:[#allocation2 + $0x98] sm:$0xff]
        %v1237 = vld [vmem:[#allocation2 + $0xa0] sm:$0xff]
        %v1238 = vld [vmem:[#allocation2 + $0xa8] sm:$0xff]
        %v1239 = vld [vmem:[#allocation2 + $0xb0] sm:$0xff]
        %v1240 = vld [vmem:[#allocation2 + $0xb8] sm:$0xff]
        %v1241 = vld [vmem:[#allocation2 + $0xc0] sm:$0xff]
        %v1242 = vld [vmem:[#allocation2 + $0xc8] sm:$0xff]
        %v1243 = vld [vmem:[#allocation2 + $0xd0] sm:$0xff]
        %v1244 = vld [vmem:[#allocation2 + $0xd8] sm:$0xff]
        %v1245 = vld [vmem:[#allocation2 + $0xe0] sm:$0xff]
        %v1246 = vld [vmem:[#allocation2 + $0xe8] sm:$0xff]
        %v1247 = vld [vmem:[#allocation2 + $0xf0] sm:$0xff]
        %v1248 = vld [vmem:[#allocation2 + $0xf8] sm:$0xff]
        %v1249 = vld [vmem:[#allocation2 + $0x100] sm:$0xff]
        %v1250 = vld [vmem:[#allocation2 + $0x108] sm:$0xff]
        %v1251 = vld [vmem:[#allocation2 + $0x110] sm:$0xff]
        %v1252 = vld [vmem:[#allocation2 + $0x118] sm:$0xff]
        %v1253 = vld [vmem:[#allocation2 + $0x120] sm:$0xff]
        %v1254 = vld [vmem:[#allocation2 + $0x128] sm:$0xff]
        %v1255 = vld [vmem:[#allocation2 + $0x130] sm:$0xff]
        %v1256 = vld [vmem:[#allocation2 + $0x138] sm:$0xff]
        %v1257 = vld [vmem:[#allocation2 + $0x140] sm:$0xff]
        %v1258 = vld [vmem:[#allocation2 + $0x148] sm:$0xff]
        %v1259 = vld [vmem:[#allocation2 + $0x150] sm:$0xff]
        %v1260 = vld [vmem:[#allocation2 + $0x158] sm:$0xff]
        %v1261 = vld [vmem:[#allocation2 + $0x160] sm:$0xff]
        %v1262 = vld [vmem:[#allocation2 + $0x168] sm:$0xff]
        %v1263 = vld [vmem:[#allocation2 + $0x170] sm:$0xff]
        %v1264 = vld [vmem:[#allocation2 + $0x178] sm:$0xff]
        %v1265 = vld [vmem:[#allocation2 + $0x180] sm:$0xff]
        %v1266 = vld [vmem:[#allocation2 + $0x188] sm:$0xff]
        %v1267 = vld [vmem:[#allocation2 + $0x190] sm:$0xff]
        %v1268 = vld [vmem:[#allocation2 + $0x198] sm:$0xff]
        %v1269 = vld [vmem:[#allocation2 + $0x1a0] sm:$0xff]
        %v1270 = vld [vmem:[#allocation2 + $0x1a8] sm:$0xff]
        %v1271 = vld [vmem:[#allocation2 + $0x1b0] sm:$0xff]
        %v1272 = vld [vmem:[#allocation2 + $0x1b8] sm:$0xff]
        %v1273 = vld [vmem:[#allocation2 + $0x1c0] sm:$0xff]
        %v1274 = vld [vmem:[#allocation2 + $0x1c8] sm:$0xff]
        %v1275 = vld [vmem:[#allocation2 + $0x1d0] sm:$0xff]
        %v1276 = vld [vmem:[#allocation2 + $0x1d8] sm:$0xff]
        %v1277 = vld [vmem:[#allocation2 + $0x1e0] sm:$0xff]
        %v1278 = vld [vmem:[#allocation2 + $0x1e8] sm:$0xff]
        %v1279 = vld [vmem:[#allocation2 + $0x1f0] sm:$0xff]
        %v1280 = vld [vmem:[#allocation2 + $0x1f8] sm:$0xff]
        %v1281 = vld [vmem:[#allocation2 + $0x200] sm:$0xff]
        %v1282 = vld [vmem:[#allocation2 + $0x208] sm:$0xff]
        %v1283 = vld [vmem:[#allocation2 + $0x210] sm:$0xff]
        %v1284 = vld [vmem:[#allocation2 + $0x218] sm:$0xff]
        %v1285 = vld [vmem:[#allocation2 + $0x220] sm:$0xff]
        %v1286 = vld [vmem:[#allocation2 + $0x228] sm:$0xff]
        %v1287 = vld [vmem:[#allocation2 + $0x230] sm:$0xff]
        %v1288 = vld [vmem:[#allocation2 + $0x238] sm:$0xff]
        %v1289 = vld [vmem:[#allocation2 + $0x240] sm:$0xff]
        %v1290 = vld [vmem:[#allocation2 + $0x248] sm:$0xff]
        %v1291 = vld [vmem:[#allocation2 + $0x250] sm:$0xff]
        %v1292 = vld [vmem:[#allocation2 + $0x258] sm:$0xff]
        %v1293 = vld [vmem:[#allocation2 + $0x260] sm:$0xff]
        %v1294 = vld [vmem:[#allocation2 + $0x268] sm:$0xff]
        %v1295 = vld [vmem:[#allocation2 + $0x270] sm:$0xff]
        %v1296 = vld [vmem:[#allocation2 + $0x278] sm:$0xff]
        %v1297 = vld [vmem:[#allocation2 + $0x280] sm:$0xff]
        %v1298 = vld [vmem:[#allocation2 + $0x288] sm:$0xff]
        %v1299 = vld [vmem:[#allocation2 + $0x290] sm:$0xff]
        %v1300 = vld [vmem:[#allocation2 + $0x298] sm:$0xff]
        %v1301 = vld [vmem:[#allocation2 + $0x2a0] sm:$0xff]
        %v1302 = vld [vmem:[#allocation2 + $0x2a8] sm:$0xff]
        %v1303 = vld [vmem:[#allocation2 + $0x2b0] sm:$0xff]
        %v1304 = vld [vmem:[#allocation2 + $0x2b8] sm:$0xff]
        %v1305 = vld [vmem:[#allocation2 + $0x2c0] sm:$0xff]
        %v1306 = vld [vmem:[#allocation2 + $0x2c8] sm:$0xff]
        %v1307 = vld [vmem:[#allocation2 + $0x2d0] sm:$0xff]
        %v1308 = vld [vmem:[#allocation2 + $0x2d8] sm:$0xff]
        %v1309 = vld [vmem:[#allocation2 + $0x2e0] sm:$0xff]
        %v1310 = vld [vmem:[#allocation2 + $0x2e8] sm:$0xff]
        %v1311 = vld [vmem:[#allocation2 + $0x2f0] sm:$0xff]
        %v1312 = vld [vmem:[#allocation2 + $0x2f8] sm:$0xff]
        %v1313 = vld [vmem:[#allocation2 + $0x300] sm:$0xff]
        %v1314 = vld [vmem:[#allocation2 + $0x308] sm:$0xff]
        %v1315 = vld [vmem:[#allocation2 + $0x310] sm:$0xff]
        %v1316 = vld [vmem:[#allocation2 + $0x318] sm:$0xff]
        %v1317 = vld [vmem:[#allocation2 + $0x320] sm:$0xff]
        %v1318 = vld [vmem:[#allocation2 + $0x328] sm:$0xff]
        %v1319 = vld [vmem:[#allocation2 + $0x330] sm:$0xff]
        %v1320 = vld [vmem:[#allocation2 + $0x338] sm:$0xff]
        %v1321 = vld [vmem:[#allocation2 + $0x340] sm:$0xff]
        %v1322 = vld [vmem:[#allocation2 + $0x348] sm:$0xff]
        %v1323 = vld [vmem:[#allocation2 + $0x350] sm:$0xff]
        %v1324 = vld [vmem:[#allocation2 + $0x358] sm:$0xff]
        %v1325 = vld [vmem:[#allocation2 + $0x360] sm:$0xff]
        %v1326 = vld [vmem:[#allocation2 + $0x368] sm:$0xff]
        %v1327 = vld [vmem:[#allocation2 + $0x370] sm:$0xff]
        %v1328 = vld [vmem:[#allocation2 + $0x378] sm:$0xff]
        %v1329 = vld [vmem:[#allocation2 + $0x380] sm:$0xff]
        %v1330 = vld [vmem:[#allocation2 + $0x388] sm:$0xff]
        %v1331 = vld [vmem:[#allocation2 + $0x390] sm:$0xff]
        %v1332 = vld [vmem:[#allocation2 + $0x398] sm:$0xff]
        %v1333 = vld [vmem:[#allocation2 + $0x3a0] sm:$0xff]
        %v1334 = vld [vmem:[#allocation2 + $0x3a8] sm:$0xff]
        %v1335 = vld [vmem:[#allocation2 + $0x3b0] sm:$0xff]
        %v1336 = vld [vmem:[#allocation2 + $0x3b8] sm:$0xff]
        %v1337 = vld [vmem:[#allocation2 + $0x3c0] sm:$0xff]
        %v1338 = vld [vmem:[#allocation2 + $0x3c8] sm:$0xff]
        %v1339 = vld [vmem:[#allocation2 + $0x3d0] sm:$0xff]
        %v1340 = vld [vmem:[#allocation2 + $0x3d8] sm:$0xff]
        %v1341 = vld [vmem:[#allocation2 + $0x3e0] sm:$0xff]
        %v1342 = vld [vmem:[#allocation2 + $0x3e8] sm:$0xff]
        %v1343 = vld [vmem:[#allocation2 + $0x3f0] sm:$0xff]
        %v1344 = vld [vmem:[#allocation2 + $0x3f8] sm:$0xff]
        %v1345 = vld [vmem:[#allocation2 + $0x400] sm:$0xff]
        %v1346 = vld [vmem:[#allocation2 + $0x408] sm:$0xff]
        %v1347 = vld [vmem:[#allocation2 + $0x410] sm:$0xff]
        %v1348 = vld [vmem:[#allocation2 + $0x418] sm:$0xff]
        %v1349 = vld [vmem:[#allocation2 + $0x420] sm:$0xff]
        %v1350 = vld [vmem:[#allocation2 + $0x428] sm:$0xff]
        %v1351 = vld [vmem:[#allocation2 + $0x430] sm:$0xff]
        %v1352 = vld [vmem:[#allocation2 + $0x438] sm:$0xff]
        %v1353 = vld [vmem:[#allocation2 + $0x440] sm:$0xff]
        %v1354 = vld [vmem:[#allocation2 + $0x448] sm:$0xff]
        %v1355 = vld [vmem:[#allocation2 + $0x450] sm:$0xff]
        %v1356 = vld [vmem:[#allocation2 + $0x458] sm:$0xff]
        %v1357 = vld [vmem:[#allocation2 + $0x460] sm:$0xff]
        %v1358 = vld [vmem:[#allocation2 + $0x468] sm:$0xff]
        %v1359 = vld [vmem:[#allocation2 + $0x470] sm:$0xff]
        %v1360 = vld [vmem:[#allocation2 + $0x478] sm:$0xff]
        %v1361 = vld [vmem:[%s2] sm:$0xff]
        %v1362 = vld [vmem:[%s2 + $0x8] sm:$0xff]
        %v1363 = vld [vmem:[%s2 + $0x10] sm:$0xff]
        %v1364 = vld [vmem:[%s2 + $0x18] sm:$0xff]
        %v1365 = vld [vmem:[%s2 + $0x20] sm:$0xff]
        %v1366 = vld [vmem:[%s2 + $0x28] sm:$0xff]
        %v1367 = vld [vmem:[%s2 + $0x30] sm:$0xff]
        %v1368 = vld [vmem:[%s2 + $0x38] sm:$0xff]
        %v1369 = vld [vmem:[%s2 + $0x40] sm:$0xff]
        %v1370 = vld [vmem:[%s2 + $0x48] sm:$0xff]
        %v1371 = vld [vmem:[%s2 + $0x50] sm:$0xff]
        %v1372 = vld [vmem:[%s2 + $0x58] sm:$0xff]
        %v1373 = vld [vmem:[%s2 + $0x60] sm:$0xff]
        %v1374 = vld [vmem:[%s2 + $0x68] sm:$0xff]
        %v1375 = vld [vmem:[%s2 + $0x70] sm:$0xff]
        %v1376 = vld [vmem:[%s2 + $0x78] sm:$0xff]
        %1378 = vset.pattern.permute.xlu0 0
        %1379 = vperm.xlu0 %1378, %v1361
        %v1380 = vpop.permute.xlu0 %1379
        %1383 = vset.pattern.permute.xlu0 0
        %1384 = vperm.xlu0 %1383, %v1362
        %v1385 = vpop.permute.xlu0 %1384
        %1388 = vset.pattern.permute.xlu0 0
        %1389 = vperm.xlu0 %1388, %v1363
        %v1390 = vpop.permute.xlu0 %1389
        %1393 = vset.pattern.permute.xlu0 0
        %1394 = vperm.xlu0 %1393, %v1364
        %v1395 = vpop.permute.xlu0 %1394
        %1398 = vset.pattern.permute.xlu0 0
        %1399 = vperm.xlu0 %1398, %v1365
        %v1400 = vpop.permute.xlu0 %1399
        %1403 = vset.pattern.permute.xlu0 0
        %1404 = vperm.xlu0 %1403, %v1366
        %v1405 = vpop.permute.xlu0 %1404
        %1408 = vset.pattern.permute.xlu0 0
        %1409 = vperm.xlu0 %1408, %v1367
        %v1410 = vpop.permute.xlu0 %1409
        %1413 = vset.pattern.permute.xlu0 0
        %1414 = vperm.xlu0 %1413, %v1368
        %v1415 = vpop.permute.xlu0 %1414
        %1418 = vset.pattern.permute.xlu0 0
        %1419 = vperm.xlu0 %1418, %v1369
        %v1420 = vpop.permute.xlu0 %1419
        %1423 = vset.pattern.permute.xlu0 0
        %1424 = vperm.xlu0 %1423, %v1370
        %v1425 = vpop.permute.xlu0 %1424
        %1428 = vset.pattern.permute.xlu0 0
        %1429 = vperm.xlu0 %1428, %v1371
        %v1430 = vpop.permute.xlu0 %1429
        %1433 = vset.pattern.permute.xlu0 0
        %1434 = vperm.xlu0 %1433, %v1372
        %v1435 = vpop.permute.xlu0 %1434
        %1438 = vset.pattern.permute.xlu0 0
        %1439 = vperm.xlu0 %1438, %v1373
        %v1440 = vpop.permute.xlu0 %1439
        %1443 = vset.pattern.permute.xlu0 0
        %1444 = vperm.xlu0 %1443, %v1374
        %v1445 = vpop.permute.xlu0 %1444
        %1448 = vset.pattern.permute.xlu0 0
        %1449 = vperm.xlu0 %1448, %v1375
        %v1450 = vpop.permute.xlu0 %1449
        %1453 = vset.pattern.permute.xlu0 0
        %1454 = vperm.xlu0 %1453, %v1376
        %v1455 = vpop.permute.xlu0 %1454
        %vm1457 = vcmask 523264
        %v1459 = vsel %vm1457, %v1141, 0
        %v1462 = vsel %vm1457, %v1146, 0
        %v1465 = vsel %vm1457, %v1151, 0
        %v1468 = vsel %vm1457, %v1156, 0
        %v1471 = vsel %vm1457, %v1161, 0
        %v1474 = vsel %vm1457, %v1166, 0
        %v1477 = vsel %vm1457, %v1171, 0
        %v1480 = vsel %vm1457, %v1176, 0
        %v1483 = vsel %vm1457, %v1181, 0
        %v1486 = vsel %vm1457, %v1186, 0
        %v1489 = vsel %vm1457, %v1191, 0
        %v1492 = vsel %vm1457, %v1196, 0
        %v1495 = vsel %vm1457, %v1201, 0
        %v1498 = vsel %vm1457, %v1206, 0
        %v1501 = vsel %vm1457, %v1211, 0
        %v1504 = vsel %vm1457, %v1216, 0
        %1506 = vmatprep.subr.mxu0 %v1218
        %1507 = vmatpush1.msra.mxu0 %v1217
        %1508 = vmatprep.subr.mxu0 %v1220
        %1509 = vmatpush1.msra.mxu0 %v1219
        %1510 = vmatprep.subr.mxu0 %v1222
        %1511 = vmatpush1.msra.mxu0 %v1221
        %1512 = vmatprep.subr.mxu0 %v1224
        %1513 = vmatpush1.msra.mxu0 %v1223
        %1514 = vmatprep.subr.mxu0 %v1226
        %1515 = vmatpush1.msra.mxu0 %v1225
        %1516 = vmatprep.subr.mxu0 %v1228
        %1517 = vmatpush1.msra.mxu0 %v1227
        %1518 = vmatprep.subr.mxu0 %v1230
        %1519 = vmatpush1.msra.mxu0 %v1229
        %1520 = vmatprep.subr.mxu0 %v1232
        %1521 = vmatpush1.msra.mxu0 %v1231
        %1522 = vmatprep.subr.mxu0 %v1234
        %1523 = vmatpush1.msra.mxu0 %v1233
        %1524 = vmatprep.subr.mxu0 %v1236
        %1525 = vmatpush1.msra.mxu0 %v1235
        %1526 = vmatprep.subr.mxu0 %v1238
        %1527 = vmatpush1.msra.mxu0 %v1237
        %1528 = vmatprep.subr.mxu0 %v1240
        %1529 = vmatpush1.msra.mxu0 %v1239
        %1530 = vmatprep.subr.mxu0 %v1242
        %1531 = vmatpush1.msra.mxu0 %v1241
        %1532 = vmatprep.subr.mxu0 %v1244
        %1533 = vmatpush1.msra.mxu0 %v1243
        %1534 = vmatprep.subr.mxu0 %v1246
        %1535 = vmatpush1.msra.mxu0 %v1245
        %1536 = vmatprep.subr.mxu0 %v1248
        %1537 = vmatpush1.msra.mxu0 %v1247
        %1538 = vmatprep.subr.mxu0 %v1250
        %1539 = vmatpush1.msra.mxu0 %v1249
        %1540 = vmatprep.subr.mxu0 %v1252
        %1541 = vmatpush1.msra.mxu0 %v1251
        %1542 = vmatprep.subr.mxu0 %v1254
        %1543 = vmatpush1.msra.mxu0 %v1253
        %1544 = vmatprep.subr.mxu0 %v1256
        %1545 = vmatpush1.msra.mxu0 %v1255
        %1546 = vmatprep.subr.mxu0 %v1258
        %1547 = vmatpush1.msra.mxu0 %v1257
        %1548 = vmatprep.subr.mxu0 %v1260
        %1549 = vmatpush1.msra.mxu0 %v1259
        %1550 = vmatprep.subr.mxu0 %v1262
        %1551 = vmatpush1.msra.mxu0 %v1261
        %1552 = vmatprep.subr.mxu0 %v1264
        %1553 = vmatpush1.msra.mxu0 %v1263
        %1554 = vmatprep.subr.mxu0 %v1266
        %1555 = vmatpush1.msra.mxu0 %v1265
        %1556 = vmatprep.subr.mxu0 %v1268
        %1557 = vmatpush1.msra.mxu0 %v1267
        %1558 = vmatprep.subr.mxu0 %v1270
        %1559 = vmatpush1.msra.mxu0 %v1269
        %1560 = vmatprep.subr.mxu0 %v1272
        %1561 = vmatpush1.msra.mxu0 %v1271
        %1562 = vmatprep.subr.mxu0 %v1274
        %1563 = vmatpush1.msra.mxu0 %v1273
        %1564 = vmatprep.subr.mxu0 %v1276
        %1565 = vmatpush1.msra.mxu0 %v1275
        %1566 = vmatprep.subr.mxu0 %v1278
        %1567 = vmatpush1.msra.mxu0 %v1277
        %1568 = vmatprep.subr.mxu0 %v1280
        %1569 = vmatpush1.msra.mxu0 %v1279
        %1570 = vmatprep.mubr.f32.mxu0 %v1138
        %1571 = vmatmul.mubr.f32.gmra.mrb[0].mxu0 %v1137
        %v1572 = vpop.f32.mrb[0].mxu0
        %v1573 = vadd.f32 %v1380, %v1572
        %v1574 = vpop.f32.mrb[0].mxu0
        %v1575 = vadd.f32 %v1380, %v1574
        %1576 = vmatprep.mubr.f32.mxu0 %v1143
        %1577 = vmatmul.mubr.f32.gmra.mrb[0].mxu0 %v1142
        %v1578 = vpop.f32.mrb[0].mxu0
        %v1579 = vadd.f32 %v1385, %v1578
        %v1580 = vpop.f32.mrb[0].mxu0
        %v1581 = vadd.f32 %v1385, %v1580
        %1582 = vmatprep.mubr.f32.mxu0 %v1148
        %1583 = vmatmul.mubr.f32.gmra.mrb[0].mxu0 %v1147
        %v1584 = vpop.f32.mrb[0].mxu0
        %v1585 = vadd.f32 %v1390, %v1584
        %v1586 = vpop.f32.mrb[0].mxu0
        %v1587 = vadd.f32 %v1390, %v1586
        %1588 = vmatprep.mubr.f32.mxu0 %v1153
        %1589 = vmatmul.mubr.f32.gmra.mrb[0].mxu0 %v1152
        %v1590 = vpop.f32.mrb[0].mxu0
        %v1591 = vadd.f32 %v1395, %v1590
        %v1592 = vpop.f32.mrb[0].mxu0
        %v1593 = vadd.f32 %v1395, %v1592
        %1594 = vmatprep.mubr.f32.mxu0 %v1158
        %1595 = vmatmul.mubr.f32.gmra.mrb[0].mxu0 %v1157
        %v1596 = vpop.f32.mrb[0].mxu0
        %v1597 = vadd.f32 %v1400, %v1596
        %v1598 = vpop.f32.mrb[0].mxu0
        %v1599 = vadd.f32 %v1400, %v1598
        %1600 = vmatprep.mubr.f32.mxu0 %v1163
        %1601 = vmatmul.mubr.f32.gmra.mrb[0].mxu0 %v1162
        %v1602 = vpop.f32.mrb[0].mxu0
        %v1603 = vadd.f32 %v1405, %v1602
        %v1604 = vpop.f32.mrb[0].mxu0
        %v1605 = vadd.f32 %v1405, %v1604
        %1606 = vmatprep.mubr.f32.mxu0 %v1168
        %1607 = vmatmul.mubr.f32.gmra.mrb[0].mxu0 %v1167
        %v1608 = vpop.f32.mrb[0].mxu0
        %v1609 = vadd.f32 %v1410, %v1608
        %v1610 = vpop.f32.mrb[0].mxu0
        %v1611 = vadd.f32 %v1410, %v1610
        %1612 = vmatprep.mubr.f32.mxu0 %v1173
        %1613 = vmatmul.mubr.f32.gmra.mrb[0].mxu0 %v1172
        %v1614 = vpop.f32.mrb[0].mxu0
        %v1615 = vadd.f32 %v1415, %v1614
        %v1616 = vpop.f32.mrb[0].mxu0
        %v1617 = vadd.f32 %v1415, %v1616
        %1618 = vmatprep.mubr.f32.mxu0 %v1178
        %1619 = vmatmul.mubr.f32.gmra.mrb[0].mxu0 %v1177
        %v1620 = vpop.f32.mrb[0].mxu0
        %v1621 = vadd.f32 %v1420, %v1620
        %v1622 = vpop.f32.mrb[0].mxu0
        %v1623 = vadd.f32 %v1420, %v1622
        %1624 = vmatprep.mubr.f32.mxu0 %v1183
        %1625 = vmatmul.mubr.f32.gmra.mrb[0].mxu0 %v1182
        %v1626 = vpop.f32.mrb[0].mxu0
        %v1627 = vadd.f32 %v1425, %v1626
        %v1628 = vpop.f32.mrb[0].mxu0
        %v1629 = vadd.f32 %v1425, %v1628
        %1630 = vmatprep.mubr.f32.mxu0 %v1188
        %1631 = vmatmul.mubr.f32.gmra.mrb[0].mxu0 %v1187
        %v1632 = vpop.f32.mrb[0].mxu0
        %v1633 = vadd.f32 %v1430, %v1632
        %v1634 = vpop.f32.mrb[0].mxu0
        %v1635 = vadd.f32 %v1430, %v1634
        %1636 = vmatprep.mubr.f32.mxu0 %v1193
        %1637 = vmatmul.mubr.f32.gmra.mrb[0].mxu0 %v1192
        %v1638 = vpop.f32.mrb[0].mxu0
        %v1639 = vadd.f32 %v1435, %v1638
        %v1640 = vpop.f32.mrb[0].mxu0
        %v1641 = vadd.f32 %v1435, %v1640
        %1642 = vmatprep.mubr.f32.mxu0 %v1198
        %1643 = vmatmul.mubr.f32.gmra.mrb[0].mxu0 %v1197
        %v1644 = vpop.f32.mrb[0].mxu0
        %v1645 = vadd.f32 %v1440, %v1644
        %v1646 = vpop.f32.mrb[0].mxu0
        %v1647 = vadd.f32 %v1440, %v1646
        %1648 = vmatprep.mubr.f32.mxu0 %v1203
        %1649 = vmatmul.mubr.f32.gmra.mrb[0].mxu0 %v1202
        %v1650 = vpop.f32.mrb[0].mxu0
        %v1651 = vadd.f32 %v1445, %v1650
        %v1652 = vpop.f32.mrb[0].mxu0
        %v1653 = vadd.f32 %v1445, %v1652
        %1654 = vmatprep.mubr.f32.mxu0 %v1208
        %1655 = vmatmul.mubr.f32.gmra.mrb[0].mxu0 %v1207
        %v1656 = vpop.f32.mrb[0].mxu0
        %v1657 = vadd.f32 %v1450, %v1656
        %v1658 = vpop.f32.mrb[0].mxu0
        %v1659 = vadd.f32 %v1450, %v1658
        %1660 = vmatprep.mubr.f32.mxu0 %v1213
        %1661 = vmatmul.mubr.f32.gmra.mrb[0].mxu0 %v1212
        %v1662 = vpop.f32.mrb[0].mxu0
        %v1663 = vadd.f32 %v1455, %v1662
        %v1664 = vpop.f32.mrb[0].mxu0
        %v1665 = vadd.f32 %v1455, %v1664
        %1666 = vdwg.mxu0
        %1667 = vmatprep.subr.mxu0 %v1282
        %1668 = vmatpush1.msra.mxu0 %v1281
        %1669 = vmatprep.subr.mxu0 %v1284
        %1670 = vmatpush1.msra.mxu0 %v1283
        %1671 = vmatprep.subr.mxu0 %v1286
        %1672 = vmatpush1.msra.mxu0 %v1285
        %1673 = vmatprep.subr.mxu0 %v1288
        %1674 = vmatpush1.msra.mxu0 %v1287
        %1675 = vmatprep.subr.mxu0 %v1290
        %1676 = vmatpush1.msra.mxu0 %v1289
        %1677 = vmatprep.subr.mxu0 %v1292
        %1678 = vmatpush1.msra.mxu0 %v1291
        %1679 = vmatprep.subr.mxu0 %v1294
        %1680 = vmatpush1.msra.mxu0 %v1293
        %1681 = vmatprep.subr.mxu0 %v1296
        %1682 = vmatpush1.msra.mxu0 %v1295
        %1683 = vmatprep.subr.mxu0 %v1298
        %1684 = vmatpush1.msra.mxu0 %v1297
        %1685 = vmatprep.subr.mxu0 %v1300
        %1686 = vmatpush1.msra.mxu0 %v1299
        %1687 = vmatprep.subr.mxu0 %v1302
        %1688 = vmatpush1.msra.mxu0 %v1301
        %1689 = vmatprep.subr.mxu0 %v1304
        %1690 = vmatpush1.msra.mxu0 %v1303
        %1691 = vmatprep.subr.mxu0 %v1306
        %1692 = vmatpush1.msra.mxu0 %v1305
        %1693 = vmatprep.subr.mxu0 %v1308
        %1694 = vmatpush1.msra.mxu0 %v1307
        %1695 = vmatprep.subr.mxu0 %v1310
        %1696 = vmatpush1.msra.mxu0 %v1309
        %1697 = vmatprep.subr.mxu0 %v1312
        %1698 = vmatpush1.msra.mxu0 %v1311
        %1699 = vmatprep.subr.mxu0 %v1314
        %1700 = vmatpush1.msra.mxu0 %v1313
        %1701 = vmatprep.subr.mxu0 %v1316
        %1702 = vmatpush1.msra.mxu0 %v1315
        %1703 = vmatprep.subr.mxu0 %v1318
        %1704 = vmatpush1.msra.mxu0 %v1317
        %1705 = vmatprep.subr.mxu0 %v1320
        %1706 = vmatpush1.msra.mxu0 %v1319
        %1707 = vmatprep.subr.mxu0 %v1322
        %1708 = vmatpush1.msra.mxu0 %v1321
        %1709 = vmatprep.subr.mxu0 %v1324
        %1710 = vmatpush1.msra.mxu0 %v1323
        %1711 = vmatprep.subr.mxu0 %v1326
        %1712 = vmatpush1.msra.mxu0 %v1325
        %1713 = vmatprep.subr.mxu0 %v1328
        %1714 = vmatpush1.msra.mxu0 %v1327
        %1715 = vmatprep.subr.mxu0 %v1330
        %1716 = vmatpush1.msra.mxu0 %v1329
        %1717 = vmatprep.subr.mxu0 %v1332
        %1718 = vmatpush1.msra.mxu0 %v1331
        %1719 = vmatprep.subr.mxu0 %v1334
        %1720 = vmatpush1.msra.mxu0 %v1333
        %1721 = vmatprep.subr.mxu0 %v1336
        %1722 = vmatpush1.msra.mxu0 %v1335
        %1723 = vmatprep.subr.mxu0 %v1338
        %1724 = vmatpush1.msra.mxu0 %v1337
        %1725 = vmatprep.subr.mxu0 %v1340
        %1726 = vmatpush1.msra.mxu0 %v1339
        %1727 = vmatprep.subr.mxu0 %v1342
        %1728 = vmatpush1.msra.mxu0 %v1341
        %1729 = vmatprep.subr.mxu0 %v1344
        %1730 = vmatpush1.msra.mxu0 %v1343
        %1731 = vmatprep.mubr.f32.mxu0 %v1140
        %1732 = vmatmul.mubr.f32.gmra.mrb[0].mxu0 %v1139
        %v1733 = vpop.f32.mrb[0].mxu0
        %v1734 = vadd.f32 %v1573, %v1733
        %v1735 = vpop.f32.mrb[0].mxu0
        %v1736 = vadd.f32 %v1575, %v1735
        %1737 = vmatprep.mubr.f32.mxu0 %v1145
        %1738 = vmatmul.mubr.f32.gmra.mrb[0].mxu0 %v1144
        %v1739 = vpop.f32.mrb[0].mxu0
        %v1740 = vadd.f32 %v1579, %v1739
        %v1741 = vpop.f32.mrb[0].mxu0
        %v1742 = vadd.f32 %v1581, %v1741
        %1743 = vmatprep.mubr.f32.mxu0 %v1150
        %1744 = vmatmul.mubr.f32.gmra.mrb[0].mxu0 %v1149
        %v1745 = vpop.f32.mrb[0].mxu0
        %v1746 = vadd.f32 %v1585, %v1745
        %v1747 = vpop.f32.mrb[0].mxu0
        %v1748 = vadd.f32 %v1587, %v1747
        %1749 = vmatprep.mubr.f32.mxu0 %v1155
        %1750 = vmatmul.mubr.f32.gmra.mrb[0].mxu0 %v1154
        %v1751 = vpop.f32.mrb[0].mxu0
        %v1752 = vadd.f32 %v1591, %v1751
        %v1753 = vpop.f32.mrb[0].mxu0
        %v1754 = vadd.f32 %v1593, %v1753
        %1755 = vmatprep.mubr.f32.mxu0 %v1160
        %1756 = vmatmul.mubr.f32.gmra.mrb[0].mxu0 %v1159
        %v1757 = vpop.f32.mrb[0].mxu0
        %v1758 = vadd.f32 %v1597, %v1757
        %v1759 = vpop.f32.mrb[0].mxu0
        %v1760 = vadd.f32 %v1599, %v1759
        %1761 = vmatprep.mubr.f32.mxu0 %v1165
        %1762 = vmatmul.mubr.f32.gmra.mrb[0].mxu0 %v1164
        %v1763 = vpop.f32.mrb[0].mxu0
        %v1764 = vadd.f32 %v1603, %v1763
        %v1765 = vpop.f32.mrb[0].mxu0
        %v1766 = vadd.f32 %v1605, %v1765
        %1767 = vmatprep.mubr.f32.mxu0 %v1170
        %1768 = vmatmul.mubr.f32.gmra.mrb[0].mxu0 %v1169
        %v1769 = vpop.f32.mrb[0].mxu0
        %v1770 = vadd.f32 %v1609, %v1769
        %v1771 = vpop.f32.mrb[0].mxu0
        %v1772 = vadd.f32 %v1611, %v1771
        %1773 = vmatprep.mubr.f32.mxu0 %v1175
        %1774 = vmatmul.mubr.f32.gmra.mrb[0].mxu0 %v1174
        %v1775 = vpop.f32.mrb[0].mxu0
        %v1776 = vadd.f32 %v1615, %v1775
        %v1777 = vpop.f32.mrb[0].mxu0
        %v1778 = vadd.f32 %v1617, %v1777
        %1779 = vmatprep.mubr.f32.mxu0 %v1180
        %1780 = vmatmul.mubr.f32.gmra.mrb[0].mxu0 %v1179
        %v1781 = vpop.f32.mrb[0].mxu0
        %v1782 = vadd.f32 %v1621, %v1781
        %v1783 = vpop.f32.mrb[0].mxu0
        %v1784 = vadd.f32 %v1623, %v1783
        %1785 = vmatprep.mubr.f32.mxu0 %v1185
        %1786 = vmatmul.mubr.f32.gmra.mrb[0].mxu0 %v1184
        %v1787 = vpop.f32.mrb[0].mxu0
        %v1788 = vadd.f32 %v1627, %v1787
        %v1789 = vpop.f32.mrb[0].mxu0
        %v1790 = vadd.f32 %v1629, %v1789
        %1791 = vmatprep.mubr.f32.mxu0 %v1190
        %1792 = vmatmul.mubr.f32.gmra.mrb[0].mxu0 %v1189
        %v1793 = vpop.f32.mrb[0].mxu0
        %v1794 = vadd.f32 %v1633, %v1793
        %v1795 = vpop.f32.mrb[0].mxu0
        %v1796 = vadd.f32 %v1635, %v1795
        %1797 = vmatprep.mubr.f32.mxu0 %v1195
        %1798 = vmatmul.mubr.f32.gmra.mrb[0].mxu0 %v1194
        %v1799 = vpop.f32.mrb[0].mxu0
        %v1800 = vadd.f32 %v1639, %v1799
        %v1801 = vpop.f32.mrb[0].mxu0
        %v1802 = vadd.f32 %v1641, %v1801
        %1803 = vmatprep.mubr.f32.mxu0 %v1200
        %1804 = vmatmul.mubr.f32.gmra.mrb[0].mxu0 %v1199
        %v1805 = vpop.f32.mrb[0].mxu0
        %v1806 = vadd.f32 %v1645, %v1805
        %v1807 = vpop.f32.mrb[0].mxu0
        %v1808 = vadd.f32 %v1647, %v1807
        %1809 = vmatprep.mubr.f32.mxu0 %v1205
        %1810 = vmatmul.mubr.f32.gmra.mrb[0].mxu0 %v1204
        %v1811 = vpop.f32.mrb[0].mxu0
        %v1812 = vadd.f32 %v1651, %v1811
        %v1813 = vpop.f32.mrb[0].mxu0
        %v1814 = vadd.f32 %v1653, %v1813
        %1815 = vmatprep.mubr.f32.mxu0 %v1210
        %1816 = vmatmul.mubr.f32.gmra.mrb[0].mxu0 %v1209
        %v1817 = vpop.f32.mrb[0].mxu0
        %v1818 = vadd.f32 %v1657, %v1817
        %v1819 = vpop.f32.mrb[0].mxu0
        %v1820 = vadd.f32 %v1659, %v1819
        %1821 = vmatprep.mubr.f32.mxu0 %v1215
        %1822 = vmatmul.mubr.f32.gmra.mrb[0].mxu0 %v1214
        %v1823 = vpop.f32.mrb[0].mxu0
        %v1824 = vadd.f32 %v1663, %v1823
        %v1825 = vpop.f32.mrb[0].mxu0
        %v1826 = vadd.f32 %v1665, %v1825
        %1827 = vdwg.mxu0
        %1828 = vmatprep.subr.mxu0 %v1346
        %1829 = vmatpush1.msra.mxu0 %v1345
        %1830 = vmatprep.subr.mxu0 %v1348
        %1831 = vmatpush1.msra.mxu0 %v1347
        %1832 = vmatprep.subr.mxu0 %v1350
        %1833 = vmatpush1.msra.mxu0 %v1349
        %1834 = vmatprep.subr.mxu0 %v1352
        %1835 = vmatpush1.msra.mxu0 %v1351
        %1836 = vmatprep.subr.mxu0 %v1354
        %1837 = vmatpush1.msra.mxu0 %v1353
        %1838 = vmatprep.subr.mxu0 %v1356
        %1839 = vmatpush1.msra.mxu0 %v1355
        %1840 = vmatprep.subr.mxu0 %v1358
        %1841 = vmatpush1.msra.mxu0 %v1357
        %1842 = vmatprep.subr.mxu0 %v1360
        %1843 = vmatpush1.msra.mxu0 %v1359
        %1844 = vmatprep.subr.mxu0 0.0
        %1845 = vmatpush1.msra.mxu0 0.0
        %1846 = vmatprep.subr.mxu0 0.0
        %1847 = vmatpush1.msra.mxu0 0.0
        %1848 = vmatprep.subr.mxu0 0.0
        %1849 = vmatpush1.msra.mxu0 0.0
        %1850 = vmatprep.subr.mxu0 0.0
        %1851 = vmatpush1.msra.mxu0 0.0
        %1852 = vmatprep.subr.mxu0 0.0
        %1853 = vmatpush1.msra.mxu0 0.0
        %1854 = vmatprep.subr.mxu0 0.0
        %1855 = vmatpush1.msra.mxu0 0.0
        %1856 = vmatprep.subr.mxu0 0.0
        %1857 = vmatpush1.msra.mxu0 0.0
        %1858 = vmatprep.subr.mxu0 0.0
        %1859 = vmatpush1.msra.mxu0 0.0
        %1860 = vmatprep.subr.mxu0 0.0
        %1861 = vmatpush1.msra.mxu0 0.0
        %1862 = vmatprep.subr.mxu0 0.0
        %1863 = vmatpush1.msra.mxu0 0.0
        %1864 = vmatprep.subr.mxu0 0.0
        %1865 = vmatpush1.msra.mxu0 0.0
        %1866 = vmatprep.subr.mxu0 0.0
        %1867 = vmatpush1.msra.mxu0 0.0
        %1868 = vmatprep.subr.mxu0 0.0
        %1869 = vmatpush1.msra.mxu0 0.0
        %1870 = vmatprep.subr.mxu0 0.0
        %1871 = vmatpush1.msra.mxu0 0.0
        %1872 = vmatprep.subr.mxu0 0.0
        %1873 = vmatpush1.msra.mxu0 0.0
        %1874 = vmatprep.subr.mxu0 0.0
        %1875 = vmatpush1.msra.mxu0 0.0
        %1876 = vmatprep.subr.mxu0 0.0
        %1877 = vmatpush1.msra.mxu0 0.0
        %1878 = vmatprep.subr.mxu0 0.0
        %1879 = vmatpush1.msra.mxu0 0.0
        %1880 = vmatprep.subr.mxu0 0.0
        %1881 = vmatpush1.msra.mxu0 0.0
        %1882 = vmatprep.subr.mxu0 0.0
        %1883 = vmatpush1.msra.mxu0 0.0
        %1884 = vmatprep.subr.mxu0 0.0
        %1885 = vmatpush1.msra.mxu0 0.0
        %1886 = vmatprep.subr.mxu0 0.0
        %1887 = vmatpush1.msra.mxu0 0.0
        %1888 = vmatprep.subr.mxu0 0.0
        %1889 = vmatpush1.msra.mxu0 0.0
        %1890 = vmatprep.subr.mxu0 0.0
        %1891 = vmatpush1.msra.mxu0 0.0
        %1892 = vmatprep.mubr.f32.mxu0 0.0
        %1893 = vmatmul.mubr.f32.gmra.mrb[0].mxu0 %v1459
        %v1894 = vpop.f32.mrb[0].mxu0
        %v1895 = vadd.f32 %v1734, %v1894
        %v1896 = vpop.f32.mrb[0].mxu0
        %v1897 = vadd.f32 %v1736, %v1896
        %1898 = vmatprep.mubr.f32.mxu0 0.0
        %1899 = vmatmul.mubr.f32.gmra.mrb[0].mxu0 %v1462
        %v1900 = vpop.f32.mrb[0].mxu0
        %v1901 = vadd.f32 %v1740, %v1900
        %v1902 = vpop.f32.mrb[0].mxu0
        %v1903 = vadd.f32 %v1742, %v1902
        %1904 = vmatprep.mubr.f32.mxu0 0.0
        %1905 = vmatmul.mubr.f32.gmra.mrb[0].mxu0 %v1465
        %v1906 = vpop.f32.mrb[0].mxu0
        %v1907 = vadd.f32 %v1746, %v1906
        %v1908 = vpop.f32.mrb[0].mxu0
        %v1909 = vadd.f32 %v1748, %v1908
        %1910 = vmatprep.mubr.f32.mxu0 0.0
        %1911 = vmatmul.mubr.f32.gmra.mrb[0].mxu0 %v1468
        %v1912 = vpop.f32.mrb[0].mxu0
        %v1913 = vadd.f32 %v1752, %v1912
        %v1914 = vpop.f32.mrb[0].mxu0
        %v1915 = vadd.f32 %v1754, %v1914
        %1916 = vmatprep.mubr.f32.mxu0 0.0
        %1917 = vmatmul.mubr.f32.gmra.mrb[0].mxu0 %v1471
        %v1918 = vpop.f32.mrb[0].mxu0
        %v1919 = vadd.f32 %v1758, %v1918
        %v1920 = vpop.f32.mrb[0].mxu0
        %v1921 = vadd.f32 %v1760, %v1920
        %1922 = vmatprep.mubr.f32.mxu0 0.0
        %1923 = vmatmul.mubr.f32.gmra.mrb[0].mxu0 %v1474
        %v1924 = vpop.f32.mrb[0].mxu0
        %v1925 = vadd.f32 %v1764, %v1924
        %v1926 = vpop.f32.mrb[0].mxu0
        %v1927 = vadd.f32 %v1766, %v1926
        %1928 = vmatprep.mubr.f32.mxu0 0.0
        %1929 = vmatmul.mubr.f32.gmra.mrb[0].mxu0 %v1477
        %v1930 = vpop.f32.mrb[0].mxu0
        %v1931 = vadd.f32 %v1770, %v1930
        %v1932 = vpop.f32.mrb[0].mxu0
        %v1933 = vadd.f32 %v1772, %v1932
        %1934 = vmatprep.mubr.f32.mxu0 0.0
        %1935 = vmatmul.mubr.f32.gmra.mrb[0].mxu0 %v1480
        %v1936 = vpop.f32.mrb[0].mxu0
        %v1937 = vadd.f32 %v1776, %v1936
        %v1938 = vpop.f32.mrb[0].mxu0
        %v1939 = vadd.f32 %v1778, %v1938
        %1940 = vmatprep.mubr.f32.mxu0 0.0
        %1941 = vmatmul.mubr.f32.gmra.mrb[0].mxu0 %v1483
        %v1942 = vpop.f32.mrb[0].mxu0
        %v1943 = vadd.f32 %v1782, %v1942
        %v1944 = vpop.f32.mrb[0].mxu0
        %v1945 = vadd.f32 %v1784, %v1944
        %1946 = vmatprep.mubr.f32.mxu0 0.0
        %1947 = vmatmul.mubr.f32.gmra.mrb[0].mxu0 %v1486
        %v1948 = vpop.f32.mrb[0].mxu0
        %v1949 = vadd.f32 %v1788, %v1948
        %v1950 = vpop.f32.mrb[0].mxu0
        %v1951 = vadd.f32 %v1790, %v1950
        %1952 = vmatprep.mubr.f32.mxu0 0.0
        %1953 = vmatmul.mubr.f32.gmra.mrb[0].mxu0 %v1489
        %v1954 = vpop.f32.mrb[0].mxu0
        %v1955 = vadd.f32 %v1794, %v1954
        %v1956 = vpop.f32.mrb[0].mxu0
        %v1957 = vadd.f32 %v1796, %v1956
        %1958 = vmatprep.mubr.f32.mxu0 0.0
        %1959 = vmatmul.mubr.f32.gmra.mrb[0].mxu0 %v1492
        %v1960 = vpop.f32.mrb[0].mxu0
        %v1961 = vadd.f32 %v1800, %v1960
        %v1962 = vpop.f32.mrb[0].mxu0
        %v1963 = vadd.f32 %v1802, %v1962
        %1964 = vmatprep.mubr.f32.mxu0 0.0
        %1965 = vmatmul.mubr.f32.gmra.mrb[0].mxu0 %v1495
        %v1966 = vpop.f32.mrb[0].mxu0
        %v1967 = vadd.f32 %v1806, %v1966
        %v1968 = vpop.f32.mrb[0].mxu0
        %v1969 = vadd.f32 %v1808, %v1968
        %1970 = vmatprep.mubr.f32.mxu0 0.0
        %1971 = vmatmul.mubr.f32.gmra.mrb[0].mxu0 %v1498
        %v1972 = vpop.f32.mrb[0].mxu0
        %v1973 = vadd.f32 %v1812, %v1972
        %v1974 = vpop.f32.mrb[0].mxu0
        %v1975 = vadd.f32 %v1814, %v1974
        %1976 = vmatprep.mubr.f32.mxu0 0.0
        %1977 = vmatmul.mubr.f32.gmra.mrb[0].mxu0 %v1501
        %v1978 = vpop.f32.mrb[0].mxu0
        %v1979 = vadd.f32 %v1818, %v1978
        %v1980 = vpop.f32.mrb[0].mxu0
        %v1981 = vadd.f32 %v1820, %v1980
        %1982 = vmatprep.mubr.f32.mxu0 0.0
        %1983 = vmatmul.mubr.f32.gmra.mrb[0].mxu0 %v1504
        %v1984 = vpop.f32.mrb[0].mxu0
        %v1985 = vadd.f32 %v1824, %v1984
        %v1986 = vpop.f32.mrb[0].mxu0
        %v1987 = vadd.f32 %v1826, %v1986
        %1988 = vdwg.mxu0
        %v1989 = vmul.f32 %v1895, %v287
        %v1990 = vmul.f32 %v1897, %v287
        %v1991 = vmul.f32 %v1901, %v288
        %v1992 = vmul.f32 %v1903, %v288
        %v1993 = vmul.f32 %v1907, %v289
        %v1994 = vmul.f32 %v1909, %v289
        %v1995 = vmul.f32 %v1913, %v290
        %v1996 = vmul.f32 %v1915, %v290
        %v1997 = vmul.f32 %v1919, %v291
        %v1998 = vmul.f32 %v1921, %v291
        %v1999 = vmul.f32 %v1925, %v292
        %v2000 = vmul.f32 %v1927, %v292
        %v2001 = vmul.f32 %v1931, %v293
        %v2002 = vmul.f32 %v1933, %v293
        %v2003 = vmul.f32 %v1937, %v294
        %v2004 = vmul.f32 %v1939, %v294
        %v2005 = vmul.f32 %v1943, %v295
        %v2006 = vmul.f32 %v1945, %v295
        %v2007 = vmul.f32 %v1949, %v296
        %v2008 = vmul.f32 %v1951, %v296
        %v2009 = vmul.f32 %v1955, %v297
        %v2010 = vmul.f32 %v1957, %v297
        %v2011 = vmul.f32 %v1961, %v298
        %v2012 = vmul.f32 %v1963, %v298
        %v2013 = vmul.f32 %v1967, %v299
        %v2014 = vmul.f32 %v1969, %v299
        %v2015 = vmul.f32 %v1973, %v300
        %v2016 = vmul.f32 %v1975, %v300
        %v2017 = vmul.f32 %v1979, %v301
        %v2018 = vmul.f32 %v1981, %v301
        %v2019 = vmul.f32 %v1985, %v302
        %v2020 = vmul.f32 %v1987, %v302
        %v2021 = vtanh.pop %v1989
        %v2022 = vtanh.pop %v1990
        %v2023 = vtanh.pop %v1991
        %v2024 = vtanh.pop %v1992
        %v2025 = vtanh.pop %v1993
        %v2026 = vtanh.pop %v1994
        %v2027 = vtanh.pop %v1995
        %v2028 = vtanh.pop %v1996
        %v2029 = vtanh.pop %v1997
        %v2030 = vtanh.pop %v1998
        %v2031 = vtanh.pop %v1999
        %v2032 = vtanh.pop %v2000
        %v2033 = vtanh.pop %v2001
        %v2034 = vtanh.pop %v2002
        %v2035 = vtanh.pop %v2003
        %v2036 = vtanh.pop %v2004
        %v2037 = vtanh.pop %v2005
        %v2038 = vtanh.pop %v2006
        %v2039 = vtanh.pop %v2007
        %v2040 = vtanh.pop %v2008
        %v2041 = vtanh.pop %v2009
        %v2042 = vtanh.pop %v2010
        %v2043 = vtanh.pop %v2011
        %v2044 = vtanh.pop %v2012
        %v2045 = vtanh.pop %v2013
        %v2046 = vtanh.pop %v2014
        %v2047 = vtanh.pop %v2015
        %v2048 = vtanh.pop %v2016
        %v2049 = vtanh.pop %v2017
        %v2050 = vtanh.pop %v2018
        %v2051 = vtanh.pop %v2019
        %v2052 = vtanh.pop %v2020
        %v2053 = vmul.f32 %v2021, 0.5
        %v2054 = vmul.f32 %v2022, 0.5
        %v2055 = vmul.f32 %v2023, 0.5
        %v2056 = vmul.f32 %v2024, 0.5
        %v2057 = vmul.f32 %v2025, 0.5
        %v2058 = vmul.f32 %v2026, 0.5
        %v2059 = vmul.f32 %v2027, 0.5
        %v2060 = vmul.f32 %v2028, 0.5
        %v2061 = vmul.f32 %v2029, 0.5
        %v2062 = vmul.f32 %v2030, 0.5
        %v2063 = vmul.f32 %v2031, 0.5
        %v2064 = vmul.f32 %v2032, 0.5
        %v2065 = vmul.f32 %v2033, 0.5
        %v2066 = vmul.f32 %v2034, 0.5
        %v2067 = vmul.f32 %v2035, 0.5
        %v2068 = vmul.f32 %v2036, 0.5
        %v2069 = vmul.f32 %v2037, 0.5
        %v2070 = vmul.f32 %v2038, 0.5
        %v2071 = vmul.f32 %v2039, 0.5
        %v2072 = vmul.f32 %v2040, 0.5
        %v2073 = vmul.f32 %v2041, 0.5
        %v2074 = vmul.f32 %v2042, 0.5
        %v2075 = vmul.f32 %v2043, 0.5
        %v2076 = vmul.f32 %v2044, 0.5
        %v2077 = vmul.f32 %v2045, 0.5
        %v2078 = vmul.f32 %v2046, 0.5
        %v2079 = vmul.f32 %v2047, 0.5
        %v2080 = vmul.f32 %v2048, 0.5
        %v2081 = vmul.f32 %v2049, 0.5
        %v2082 = vmul.f32 %v2050, 0.5
        %v2083 = vmul.f32 %v2051, 0.5
        %v2084 = vmul.f32 %v2052, 0.5
        %v2085 = vadd.f32 %v2053, 0.5
        %v2086 = vadd.f32 %v2054, 0.5
        %v2087 = vadd.f32 %v2055, 0.5
        %v2088 = vadd.f32 %v2056, 0.5
        %v2089 = vadd.f32 %v2057, 0.5
        %v2090 = vadd.f32 %v2058, 0.5
        %v2091 = vadd.f32 %v2059, 0.5
        %v2092 = vadd.f32 %v2060, 0.5
        %v2093 = vadd.f32 %v2061, 0.5
        %v2094 = vadd.f32 %v2062, 0.5
        %v2095 = vadd.f32 %v2063, 0.5
        %v2096 = vadd.f32 %v2064, 0.5
        %v2097 = vadd.f32 %v2065, 0.5
        %v2098 = vadd.f32 %v2066, 0.5
        %v2099 = vadd.f32 %v2067, 0.5
        %v2100 = vadd.f32 %v2068, 0.5
        %v2101 = vadd.f32 %v2069, 0.5
        %v2102 = vadd.f32 %v2070, 0.5
        %v2103 = vadd.f32 %v2071, 0.5
        %v2104 = vadd.f32 %v2072, 0.5
        %v2105 = vadd.f32 %v2073, 0.5
        %v2106 = vadd.f32 %v2074, 0.5
        %v2107 = vadd.f32 %v2075, 0.5
        %v2108 = vadd.f32 %v2076, 0.5
        %v2109 = vadd.f32 %v2077, 0.5
        %v2110 = vadd.f32 %v2078, 0.5
        %v2111 = vadd.f32 %v2079, 0.5
        %v2112 = vadd.f32 %v2080, 0.5
        %v2113 = vadd.f32 %v2081, 0.5
        %v2114 = vadd.f32 %v2082, 0.5
        %v2115 = vadd.f32 %v2083, 0.5
        %v2116 = vadd.f32 %v2084, 0.5
        %v2117 = vsel %vm271, 1, 0
        %v2118 = vsel %vm272, 1, 0
        %v2119 = vsel %vm273, 1, 0
        %v2120 = vsel %vm274, 1, 0
        %v2121 = vsel %vm275, 1, 0
        %v2122 = vsel %vm276, 1, 0
        %v2123 = vsel %vm277, 1, 0
        %v2124 = vsel %vm278, 1, 0
        %v2125 = vsel %vm279, 1, 0
        %v2126 = vsel %vm280, 1, 0
        %v2127 = vsel %vm281, 1, 0
        %v2128 = vsel %vm282, 1, 0
        %v2129 = vsel %vm283, 1, 0
        %v2130 = vsel %vm284, 1, 0
        %v2131 = vsel %vm285, 1, 0
        %v2132 = vsel %vm286, 1, 0
        %vm2133 = vcmp.eq.s32.totalorder %v2117, 1
        %vm2134 = vcmp.eq.s32.totalorder %v2118, 1
        %vm2135 = vcmp.eq.s32.totalorder %v2119, 1
        %vm2136 = vcmp.eq.s32.totalorder %v2120, 1
        %vm2137 = vcmp.eq.s32.totalorder %v2121, 1
        %vm2138 = vcmp.eq.s32.totalorder %v2122, 1
        %vm2139 = vcmp.eq.s32.totalorder %v2123, 1
        %vm2140 = vcmp.eq.s32.totalorder %v2124, 1
        %vm2141 = vcmp.eq.s32.totalorder %v2125, 1
        %vm2142 = vcmp.eq.s32.totalorder %v2126, 1
        %vm2143 = vcmp.eq.s32.totalorder %v2127, 1
        %vm2144 = vcmp.eq.s32.totalorder %v2128, 1
        %vm2145 = vcmp.eq.s32.totalorder %v2129, 1
        %vm2146 = vcmp.eq.s32.totalorder %v2130, 1
        %vm2147 = vcmp.eq.s32.totalorder %v2131, 1
        %vm2148 = vcmp.eq.s32.totalorder %v2132, 1
        %v2149 = vsel %vm2133, %v2085, %v2021
        %v2150 = vsel %vm2133, %v2086, %v2022
        %v2151 = vsel %vm2134, %v2087, %v2023
        %v2152 = vsel %vm2134, %v2088, %v2024
        %v2153 = vsel %vm2135, %v2089, %v2025
        %v2154 = vsel %vm2135, %v2090, %v2026
        %v2155 = vsel %vm2136, %v2091, %v2027
        %v2156 = vsel %vm2136, %v2092, %v2028
        %v2157 = vsel %vm2137, %v2093, %v2029
        %v2158 = vsel %vm2137, %v2094, %v2030
        %v2159 = vsel %vm2138, %v2095, %v2031
        %v2160 = vsel %vm2138, %v2096, %v2032
        %v2161 = vsel %vm2139, %v2097, %v2033
        %v2162 = vsel %vm2139, %v2098, %v2034
        %v2163 = vsel %vm2140, %v2099, %v2035
        %v2164 = vsel %vm2140, %v2100, %v2036
        %v2165 = vsel %vm2141, %v2101, %v2037
        %v2166 = vsel %vm2141, %v2102, %v2038
        %v2167 = vsel %vm2142, %v2103, %v2039
        %v2168 = vsel %vm2142, %v2104, %v2040
        %v2169 = vsel %vm2143, %v2105, %v2041
        %v2170 = vsel %vm2143, %v2106, %v2042
        %v2171 = vsel %vm2144, %v2107, %v2043
        %v2172 = vsel %vm2144, %v2108, %v2044
        %v2173 = vsel %vm2145, %v2109, %v2045
        %v2174 = vsel %vm2145, %v2110, %v2046
        %v2175 = vsel %vm2146, %v2111, %v2047
        %v2176 = vsel %vm2146, %v2112, %v2048
        %v2177 = vsel %vm2147, %v2113, %v2049
        %v2178 = vsel %vm2147, %v2114, %v2050
        %v2179 = vsel %vm2148, %v2115, %v2051
        %v2180 = vsel %vm2148, %v2116, %v2052
        %v2181 = vmul.f32 %v2157, %v317
        %v2182 = vmul.f32 %v2158, %v318
        %v2183 = vmul.f32 %v2159, %v319
        %v2184 = vmul.f32 %v2160, %v320
        %v2185 = vmul.f32 %v2161, %v321
        %v2186 = vmul.f32 %v2162, %v322
        %v2187 = vmul.f32 %v2163, %v323
        %v2188 = vmul.f32 %v2164, %v324
        %v2189 = vmul.f32 %v2149, %v2173
        %v2190 = vmul.f32 %v2150, %v2174
        %v2191 = vmul.f32 %v2151, %v2175
        %v2192 = vmul.f32 %v2152, %v2176
        %v2193 = vmul.f32 %v2153, %v2177
        %v2194 = vmul.f32 %v2154, %v2178
        %v2195 = vmul.f32 %v2155, %v2179
        %v2196 = vmul.f32 %v2156, %v2180
        %v2197 = vadd.f32 %v2181, %v2189
        %v2198 = vadd.f32 %v2182, %v2190
        %v2199 = vadd.f32 %v2183, %v2191
        %v2200 = vadd.f32 %v2184, %v2192
        %v2201 = vadd.f32 %v2185, %v2193
        %v2202 = vadd.f32 %v2186, %v2194
        %v2203 = vadd.f32 %v2187, %v2195
        %v2204 = vadd.f32 %v2188, %v2196
        %v2205 = vtanh.pop %v2197
        %v2206 = vtanh.pop %v2198
        %v2207 = vtanh.pop %v2199
        %v2208 = vtanh.pop %v2200
        %v2209 = vtanh.pop %v2201
        %v2210 = vtanh.pop %v2202
        %v2211 = vtanh.pop %v2203
        %v2212 = vtanh.pop %v2204
        %v2213 = vmul.f32 %v2165, %v2205
        %v2214 = vmul.f32 %v2166, %v2206
        %v2215 = vmul.f32 %v2167, %v2207
        %v2216 = vmul.f32 %v2168, %v2208
        %v2217 = vmul.f32 %v2169, %v2209
        %v2218 = vmul.f32 %v2170, %v2210
        %v2219 = vmul.f32 %v2171, %v2211
        %v2220 = vmul.f32 %v2172, %v2212
        %s2221 = smul.addr %s325, 8
        %s2222 = scalar_lea.vmem %s205, %s2221
        %2223 = vst [vmem:[%s2222] sm:$0xff] %v2213
        %2224 = vst [vmem:[%s2222 + $0x8] sm:$0xff] %v2214
        %2225 = vst [vmem:[%s2222 + $0x10] sm:$0xff] %v2215
        %2226 = vst [vmem:[%s2222 + $0x18] sm:$0xff] %v2216
        %2227 = vst [vmem:[%s2222 + $0x20] sm:$0xff] %v2217
        %2228 = vst [vmem:[%s2222 + $0x28] sm:$0xff] %v2218
        %2229 = vst [vmem:[%s2222 + $0x30] sm:$0xff] %v2219
        %2230 = vst [vmem:[%s2222 + $0x38] sm:$0xff] %v2220
      $region37: #{convlstm_forward.3} parent=31 // loop_footer
        %s308 = sadd.s32 1, %s304
      $region38: #{convlstm_forward.3} parent=31 // loop_footer_branch
        %303 = sbr.rel target = $region34
      $region39: #{convlstm_forward.3} parent=31 // loop_exit
        _
      %2231 = vst [vmem:[%s210] sm:$0xff] %v317
      %2232 = vst [vmem:[%s210 + $0x8] sm:$0xff] %v318
      %2233 = vst [vmem:[%s210 + $0x10] sm:$0xff] %v319
      %2234 = vst [vmem:[%s210 + $0x18] sm:$0xff] %v320
      %2235 = vst [vmem:[%s210 + $0x20] sm:$0xff] %v321
      %2236 = vst [vmem:[%s210 + $0x28] sm:$0xff] %v322
      %2237 = vst [vmem:[%s210 + $0x30] sm:$0xff] %v323
      %2238 = vst [vmem:[%s210 + $0x38] sm:$0xff] %v324
      %p2239 = scmp.lt.s32.totalorder %s16, 1
      %s2240 = scalar_select %p2239, %s16, 1
      %s2241 = smul.addr %s2240, 64
      %s2242 = smul.addr %s2241, 8
      %s2243 = scalar_lea.vmem %s3, %s2242
      %p2244 = scmp.lt.s32.totalorder %s16, 1
      %s2245 = scalar_select %p2244, %s16, 1
      %s2246 = smul.addr %s2245, 8
      %s2247 = smul.addr %s2246, 8
      %s2248 = scalar_lea.vmem %s4, %s2247
      // Predicated region
      $region40: #{convlstm_forward.3} parent=31 // pred_check
        %p2249 = pneg %p102
      $region41: #{convlstm_forward.3} parent=31 // pred_check_branch
        %2251 = sbr.rel (%p2249) target = $region43
      $region42: #{convlstm_forward.3} parent=31 // pred_region
        _
      $region43: #{convlstm_forward.3} parent=31 // pred_fallthru
        _
      // Predicated region
      $region44: #{convlstm_forward.3} parent=31 // pred_check
        %p2252 = pneg %p128
      $region45: #{convlstm_forward.3} parent=31 // pred_check_branch
        %2254 = sbr.rel (%p2252) target = $region47
      $region46: #{convlstm_forward.3} parent=31 // pred_region
        _
      $region47: #{convlstm_forward.3} parent=31 // pred_fallthru
        _
    $region32: #{convlstm_forward.3} parent=5 // pred_fallthru
      _
    %p2255 = scmp.le.s32.totalorder 2, %s11
    // Predicated region
    $region48: #{convlstm_forward.3} parent=5 // pred_check
      %p2256 = pneg %p2255
    $region49: #{convlstm_forward.3} parent=5 // pred_check_branch
      %2258 = sbr.rel (%p2256) target = $region51
    $region50: #{convlstm_forward.3} parent=5 // pred_region
      %s2259 = ssub.s32 %s11, 2
      // Predicated region
      $region52: #{convlstm_forward.3} parent=50 // pred_check
        %p2260 = pneg %p108
      $region53: #{convlstm_forward.3} parent=50 // pred_check_branch
        %2262 = sbr.rel (%p2260) target = $region55
      $region54: #{convlstm_forward.3} parent=50 // pred_region
        %p2263 = scmp.lt.s32.totalorder %s17, 1
        %s2264 = scalar_select %p2263, %s17, 1
        %s2265 = smul.addr %s2264, 64
        %s2266 = smul.addr %s2265, 8
        %s2267 = scalar_lea.vmem %s3, %s2266
      $region55: #{convlstm_forward.3} parent=50 // pred_fallthru
        _
      // Predicated region
      $region56: #{convlstm_forward.3} parent=50 // pred_check
        %p2268 = pneg %p134
      $region57: #{convlstm_forward.3} parent=50 // pred_check_branch
        %2270 = sbr.rel (%p2268) target = $region59
      $region58: #{convlstm_forward.3} parent=50 // pred_region
        %p2271 = scmp.lt.s32.totalorder %s17, 1
        %s2272 = scalar_select %p2271, %s17, 1
        %s2273 = smul.addr %s2272, 8
        %s2274 = smul.addr %s2273, 8
        %s2275 = scalar_lea.vmem %s4, %s2274
      $region59: #{convlstm_forward.3} parent=50 // pred_fallthru
        _
    $region51: #{convlstm_forward.3} parent=5 // pred_fallthru
      _
  $region6: #{convlstm_forward.3} parent=0 // loop_footer
    %s15 = sadd.s32 1, %s11
  $region7: #{convlstm_forward.3} parent=0 // loop_footer_branch
    %10 = sbr.rel target = $region3
  $region8: #{convlstm_forward.3} parent=0 // loop_exit
    _

</llo_original>
